<compile_context>
chip_gen: v7x
topology: tpu7x:2x2x1
jax: 0.10.0
libtpu: 0.0.40
codegen_flags: <defaults>
</compile_context>

<pallas_src>
import functools
import jax
import jax.numpy as jnp
from jax.experimental import pallas as pl
from jax.experimental.pallas import tpu as pltpu


# ----------------------------------------------------------------------------------
# Single fused decoder kernel (NB batch elements folded into rows per grid step)
# ----------------------------------------------------------------------------------
def _fused_decoder_kernel(
    labels_ref, key_ref, emb_ref,
    wq_s_ref, bq_s_ref, wk_s_ref, bk_s_ref, wv_s_ref, bv_s_ref,
    wo_s_ref, bo_s_ref, g_s_ref, be_s_ref,
    wq_c_ref, bq_c_ref, wk_c_ref, bk_c_ref, wv_c_ref, bv_c_ref,
    wo_c_ref, bo_c_ref, g_c_ref, be_c_ref,
    w1_ref, b1_ref, w2_ref, b2_ref, g_f_ref, be_f_ref,
    dw_ref, db_ref,
    m_hd_ref, self_mask_ref, cross_mask_ref,
    out_ref,
    *, num_heads, seq_len, voc_len, nb,
):
    f32 = jnp.float32
    bf16 = jnp.bfloat16
    H = num_heads
    R = nb * seq_len                      # folded (batch, seq) rows per grid step

    def dot_nn(a, b):                     # (m,k)@(k,n), bf16 operands, f32 accumulation
        return jnp.dot(a, b, preferred_element_type=f32)

    def dot_nt(a, b):                     # contract last dims of both: (m,k)·(n,k) -> (m,n)
        return jax.lax.dot_general(a, b, (((1,), (1,)), ((), ())),
                                   preferred_element_type=f32)

    def layernorm(x, g, b):
        mu = jnp.mean(x, axis=-1, keepdims=True)
        var = jnp.mean(jnp.square(x - mu), axis=-1, keepdims=True)
        return (x - mu) * jax.lax.rsqrt(var + 1e-5) * g + b

    def masked_softmax(s, mask_add):
        s = s + mask_add                  # additive mask: 0 where allowed, -1e9 otherwise
        s = s - jnp.max(s, axis=-1, keepdims=True)
        p = jnp.exp(s)
        return p * pl.reciprocal(jnp.sum(p, axis=-1, keepdims=True), approx=True)

    m_hd = m_hd_ref[...]                  # (H*R, D) 0/1 head-block lane mask

    def heads_stack(q_full):
        # (R, D) f32 -> (H*R, D) bf16: replicate rows per head (sublane-aligned copies),
        # zero every lane outside the row's own head block (block-diagonal Q).
        q_rep = jnp.concatenate([q_full] * H, axis=0)
        return (q_rep * m_hd).astype(bf16)

    def heads_merge(z):
        # (H*R, D) -> (R, D): sum the per-head output-projection partials
        # (static sublane-aligned slices, R is a multiple of 8).
        acc = z[0:R, :]
        for h in range(1, H):
            acc = acc + z[h * R:(h + 1) * R, :]
        return acc

    def attention(q_src_bf, kv_src_bf, wq, bq, wk, bk, wv, bv, wo, bo,
                  mask_add, residual):
        # Q is head-stacked / block-diagonal; K,V keep the natural (rows, D) layout.
        q_bd = heads_stack(dot_nn(q_src_bf, wq[...]) + bq[...])       # (H*R, D), pre-scaled
        k = (dot_nn(kv_src_bf, wk[...]) + bk[...]).astype(bf16)       # (Lk, D)
        v = (dot_nn(kv_src_bf, wv[...]) + bv[...]).astype(bf16)       # (Lk, D)
        s = dot_nt(q_bd, k)                                           # (H*R, Lk)
        p = masked_softmax(s, mask_add).astype(bf16)                  # (H*R, Lk)
        ctx = (dot_nn(p, v) * m_hd).astype(bf16)                      # (H*R, D), own-head lanes
        z = dot_nn(ctx, wo[...])                                      # fused output projection
        return heads_merge(z) + bo[...] + residual

    # ---- embedding: in-kernel one-hot x pre-scaled table -----------------------------
    labels = labels_ref[...]                                          # (R, 1) int32
    iota_v = jax.lax.broadcasted_iota(jnp.int32, (R, voc_len), 1)
    onehot = (iota_v == labels).astype(bf16)                          # (R, V)
    x = dot_nn(onehot, emb_ref[...])                                  # (R, D) f32, *sqrt(D)
    x_bf = x.astype(bf16)

    # ---- causal label self-attention (same-batch ∧ causal additive mask) -------------
    a1 = attention(x_bf, x_bf,
                   wq_s_ref, bq_s_ref, wk_s_ref, bk_s_ref, wv_s_ref, bv_s_ref,
                   wo_s_ref, bo_s_ref, self_mask_ref[...], x)
    y1 = layernorm(a1, g_s_ref[...], be_s_ref[...])
    y1_bf = y1.astype(bf16)

    # ---- image/label cross-attention (same-batch additive mask, no causality) --------
    a2 = attention(y1_bf, key_ref[...],
                   wq_c_ref, bq_c_ref, wk_c_ref, bk_c_ref, wv_c_ref, bv_c_ref,
                   wo_c_ref, bo_c_ref, cross_mask_ref[...], y1)
    y2 = layernorm(a2, g_c_ref[...], be_c_ref[...])
    y2_bf = y2.astype(bf16)

    # ---- position-wise feed-forward ---------------------------------------------------
    hid = jnp.maximum(dot_nn(y2_bf, w1_ref[...]) + b1_ref[...], 0.0)
    ff = dot_nn(hid.astype(bf16), w2_ref[...]) + b2_ref[...]
    y3 = layernorm(ff + y2, g_f_ref[...], be_f_ref[...])

    # ---- lane-dense (128-padded) vocabulary projection --------------------------------
    out_ref[...] = dot_nn(y3.astype(bf16), dw_ref[...]) + db_ref[...]  # (R, Vpad) f32


# ----------------------------------------------------------------------------------
# Parameter preparation: fold scales, pre-cast matmul weights to bf16, pad vocab
# ----------------------------------------------------------------------------------
_W_ORDER = (
    "emb",
    "wq_s", "bq_s", "wk_s", "bk_s", "wv_s", "bv_s", "wo_s", "bo_s", "g_s", "be_s",
    "wq_c", "bq_c", "wk_c", "bk_c", "wv_c", "bv_c", "wo_c", "bo_c", "g_c", "be_c",
    "w1", "b1", "w2", "b2", "g_f", "be_f",
    "dw", "db",
)


def prepare_fused_params(params, cfg):
    dim, num_heads, voc_len = cfg["dim"], cfg["num_heads"], cfg["voc_len"]
    dh = dim // num_heads
    qscale = 1.0 / float(dh) ** 0.5
    vpad = ((voc_len + 127) // 128) * 128
    f32, bf16 = jnp.float32, jnp.bfloat16

    def row(v):
        return v.reshape(1, -1).astype(f32)

    la, ca, ff = params["label_att"], params["att"], params["ff"]
    fused = dict(
        emb=(params["emb_table"] * (float(dim) ** 0.5)).astype(bf16),
        # self-attention (Q pre-scaled by 1/sqrt(dh); all matmul weights bf16)
        wq_s=(la["wq"] * qscale).astype(bf16), bq_s=row(la["bq"] * qscale),
        wk_s=la["wk"].astype(bf16), bk_s=row(la["bk"]),
        wv_s=la["wv"].astype(bf16), bv_s=row(la["bv"]),
        wo_s=la["wo"].astype(bf16), bo_s=row(la["bo"]),
        g_s=row(la["ln_g"]), be_s=row(la["ln_b"]),
        # cross-attention
        wq_c=(ca["wq"] * qscale).astype(bf16), bq_c=row(ca["bq"] * qscale),
        wk_c=ca["wk"].astype(bf16), bk_c=row(ca["bk"]),
        wv_c=ca["wv"].astype(bf16), bv_c=row(ca["bv"]),
        wo_c=ca["wo"].astype(bf16), bo_c=row(ca["bo"]),
        g_c=row(ca["ln_g"]), be_c=row(ca["ln_b"]),
        # feed-forward
        w1=ff["w1"].astype(bf16), b1=row(ff["b1"]),
        w2=ff["w2"].astype(bf16), b2=row(ff["b2"]),
        g_f=row(ff["ln_g"]), be_f=row(ff["ln_b"]),
        # vocab projection padded to lane-dense 128
        dw=jnp.pad(params["dec_w"], ((0, 0), (0, vpad - voc_len))).astype(bf16),
        db=jnp.pad(params["dec_b"], (0, vpad - voc_len)).reshape(1, vpad).astype(f32),
    )
    return fused, vpad


# ----------------------------------------------------------------------------------
# Decoder forward (teacher-forcing / training-mode path) — one fused pallas_call
# ----------------------------------------------------------------------------------
def decoder_forward(fused, vpad, rois_features_nchw, input_labels, cfg):
    N, S = input_labels.shape
    dim, voc_len, num_heads = cfg["dim"], cfg["voc_len"], cfg["num_heads"]
    dh = dim // num_heads
    start_token = voc_len - 3

    # rois_features: N x (C*num_instances) x H x W -> (N*H*W) x C   (glue, outside kernel)
    img = jnp.transpose(rois_features_nchw, (0, 2, 3, 1))
    Ni, Hh, Ww, C = img.shape
    L = Hh * Ww
    key_flat = img.reshape(Ni * L, C).astype(jnp.bfloat16)

    # teacher forcing shift: labels[:, 1:] = labels[:, :-1]; labels[:, 0] = START_TOKEN
    shifted = jnp.concatenate(
        [jnp.full((N, 1), start_token, dtype=jnp.int32),
         input_labels[:, :-1].astype(jnp.int32)], axis=1)
    labels2d = shifted.reshape(N * S, 1)

    # fold batch into matmul rows; keep a 2-step "parallel" grid when possible (v7x 2 TCs)
    num_blocks = 2 if (N % 2 == 0 and N >= 2) else 1
    nb = N // num_blocks
    R = nb * S
    HR = num_heads * R

    # ---- constant masks, built once (tiny, DMA'd with constant block index) ----------
    # head-block lane mask for the block-diagonal (head-stacked) query / context
    row_head = jnp.arange(HR) // R
    m_hd = (row_head[:, None] == (jnp.arange(dim) // dh)[None, :]).astype(jnp.float32)
    # self-attention: rows (h, b, i), cols (b', j): allow iff same batch and causal
    rr = jnp.arange(HR) % R
    bq, iq = rr // S, rr % S
    ck = jnp.arange(R)
    allowed = (bq[:, None] == (ck // S)[None, :]) & ((ck % S)[None, :] <= iq[:, None])
    self_mask = jnp.where(allowed, 0.0, -1e9).astype(jnp.float32)
    # cross-attention: rows (h, b, i), cols (b', l): allow iff same batch
    cl = jnp.arange(nb * L)
    cross_mask = jnp.where(bq[:, None] == (cl // L)[None, :], 0.0, -1e9).astype(jnp.float32)

    kernel = functools.partial(
        _fused_decoder_kernel, num_heads=num_heads, seq_len=S, voc_len=voc_len, nb=nb)

    def full_spec(arr):
        return pl.BlockSpec(arr.shape, lambda g, nd=arr.ndim: (0,) * nd)

    weight_args = [fused[k] for k in _W_ORDER] + [m_hd, self_mask, cross_mask]
    in_specs = (
        [pl.BlockSpec((R, 1), lambda g: (g, 0)),            # shifted labels (rows = (b, i))
         pl.BlockSpec((nb * L, dim), lambda g: (g, 0))]      # image features (rows = (b, l))
        + [full_spec(a) for a in weight_args]                # weights/masks: constant index
    )
    out_spec = pl.BlockSpec((R, vpad), lambda g: (g, 0))     # lane-dense padded logits

    logits_pad = pl.pallas_call(
        kernel,
        out_shape=jax.ShapeDtypeStruct((N * S, vpad), jnp.float32),
        grid=(num_blocks,),
        in_specs=in_specs,
        out_specs=out_spec,
        compiler_params=pltpu.CompilerParams(dimension_semantics=("parallel",)),
    )(labels2d, key_flat, *weight_args)

    # TODO(synk): eval-mode autoregressive greedy-decode loop (the `else` branch of the
    # PyTorch forward) is not implemented; this covers the teacher-forcing path only.
    return logits_pad.reshape(N, S, vpad)[:, :, :voc_len]


# ----------------------------------------------------------------------------------
# Deterministic parameter construction (reference transformer sub-block parameters)
# ----------------------------------------------------------------------------------
def make_params(cfg, seed=42):
    dim, voc_len, ff_hidden = cfg["dim"], cfg["voc_len"], cfg["ff_hidden"]
    key = jax.random.PRNGKey(seed)

    def nxt():
        nonlocal key
        key, sub = jax.random.split(key)
        return sub

    def lin(din, dout):
        return (0.02 * jax.random.normal(nxt(), (din, dout), jnp.float32),
                jnp.zeros((dout,), jnp.float32))

    def mha_params():
        wq, bq = lin(dim, dim); wk, bk = lin(dim, dim)
        wv, bv = lin(dim, dim); wo, bo = lin(dim, dim)
        return dict(wq=wq, bq=bq, wk=wk, bk=bk, wv=wv, bv=bv, wo=wo, bo=bo,
                    ln_g=jnp.ones((dim,), jnp.float32), ln_b=jnp.zeros((dim,), jnp.float32))

    w1, b1 = lin(dim, ff_hidden)
    w2, b2 = lin(ff_hidden, dim)
    dec_w, dec_b = lin(dim, voc_len)

    return dict(
        emb_table=0.02 * jax.random.normal(nxt(), (voc_len, dim), jnp.float32),
        label_att=mha_params(),
        att=mha_params(),
        ff=dict(w1=w1, b1=b1, w2=w2, b2=b2,
                ln_g=jnp.ones((dim,), jnp.float32), ln_b=jnp.zeros((dim,), jnp.float32)),
        dec_w=dec_w, dec_b=dec_b,
    )


# ----------------------------------------------------------------------------------
if __name__ == "__main__":
    cfg = dict(
        num_instances=1,
        seq_len=8,
        voc_len=16,      # START=13, PAD=14
        dim=32,
        num_heads=4,
        ff_hidden=64,
    )

    params = make_params(cfg)
    fused, vpad = prepare_fused_params(params, cfg)

    key = jax.random.PRNGKey(0)
    k1, k2 = jax.random.split(key)
    N, C, H, W = 4, cfg["dim"], 4, 4
    rois_features = jax.random.normal(k1, (N, C, H, W), jnp.float32)          # NCHW
    input_labels = jax.random.randint(k2, (N, cfg["seq_len"]), 0, cfg["voc_len"] - 3,
                                      dtype=jnp.int32)

    logits = decoder_forward(fused, vpad, rois_features, input_labels, cfg)
    logits = jax.block_until_ready(logits)
    assert logits.shape == (N, cfg["seq_len"], cfg["voc_len"])
    print("KERNEL_OK")
</pallas_src>

<mosaic_0001>
module attributes {stable_mosaic.version = 11 : i64} {
  func.func @_fused_decoder_kernel(%arg0: i32, %arg1: memref<16x1xi32, #tpu.memory_space<vmem>>, %arg2: memref<32x32xbf16, #tpu.memory_space<vmem>>, %arg3: memref<16x32xbf16, #tpu.memory_space<vmem>>, %arg4: memref<32x32xbf16, #tpu.memory_space<vmem>>, %arg5: memref<1x32xf32, #tpu.memory_space<vmem>>, %arg6: memref<32x32xbf16, #tpu.memory_space<vmem>>, %arg7: memref<1x32xf32, #tpu.memory_space<vmem>>, %arg8: memref<32x32xbf16, #tpu.memory_space<vmem>>, %arg9: memref<1x32xf32, #tpu.memory_space<vmem>>, %arg10: memref<32x32xbf16, #tpu.memory_space<vmem>>, %arg11: memref<1x32xf32, #tpu.memory_space<vmem>>, %arg12: memref<1x32xf32, #tpu.memory_space<vmem>>, %arg13: memref<1x32xf32, #tpu.memory_space<vmem>>, %arg14: memref<32x32xbf16, #tpu.memory_space<vmem>>, %arg15: memref<1x32xf32, #tpu.memory_space<vmem>>, %arg16: memref<32x32xbf16, #tpu.memory_space<vmem>>, %arg17: memref<1x32xf32, #tpu.memory_space<vmem>>, %arg18: memref<32x32xbf16, #tpu.memory_space<vmem>>, %arg19: memref<1x32xf32, #tpu.memory_space<vmem>>, %arg20: memref<32x32xbf16, #tpu.memory_space<vmem>>, %arg21: memref<1x32xf32, #tpu.memory_space<vmem>>, %arg22: memref<1x32xf32, #tpu.memory_space<vmem>>, %arg23: memref<1x32xf32, #tpu.memory_space<vmem>>, %arg24: memref<32x64xbf16, #tpu.memory_space<vmem>>, %arg25: memref<1x64xf32, #tpu.memory_space<vmem>>, %arg26: memref<64x32xbf16, #tpu.memory_space<vmem>>, %arg27: memref<1x32xf32, #tpu.memory_space<vmem>>, %arg28: memref<1x32xf32, #tpu.memory_space<vmem>>, %arg29: memref<1x32xf32, #tpu.memory_space<vmem>>, %arg30: memref<32x128xbf16, #tpu.memory_space<vmem>>, %arg31: memref<1x128xf32, #tpu.memory_space<vmem>>, %arg32: memref<64x32xf32, #tpu.memory_space<vmem>>, %arg33: memref<64x16xf32, #tpu.memory_space<vmem>>, %arg34: memref<64x32xf32, #tpu.memory_space<vmem>>, %arg35: memref<16x128xf32, #tpu.memory_space<vmem>>) attributes {dimension_semantics = [#tpu.dimension_semantics<parallel>], iteration_bounds = array<i64: 2>, scalar_prefetch = 0 : i64, scratch_operands = 0 : i64, tpu.core_type = #tpu.core_type<tc>, window_params = [{transform_indices = @transform_0, window_bounds = array<i64: 16, 1>}, {transform_indices = @transform_1, window_bounds = array<i64: 32, 32>}, {pipeline_mode = #tpu.pipeline_mode<synchronous>, transform_indices = @transform_2, window_bounds = array<i64: 16, 32>}, {pipeline_mode = #tpu.pipeline_mode<synchronous>, transform_indices = @transform_3, window_bounds = array<i64: 32, 32>}, {pipeline_mode = #tpu.pipeline_mode<synchronous>, transform_indices = @transform_4, window_bounds = array<i64: 1, 32>}, {pipeline_mode = #tpu.pipeline_mode<synchronous>, transform_indices = @transform_5, window_bounds = array<i64: 32, 32>}, {pipeline_mode = #tpu.pipeline_mode<synchronous>, transform_indices = @transform_6, window_bounds = array<i64: 1, 32>}, {pipeline_mode = #tpu.pipeline_mode<synchronous>, transform_indices = @transform_7, window_bounds = array<i64: 32, 32>}, {pipeline_mode = #tpu.pipeline_mode<synchronous>, transform_indices = @transform_8, window_bounds = array<i64: 1, 32>}, {pipeline_mode = #tpu.pipeline_mode<synchronous>, transform_indices = @transform_9, window_bounds = array<i64: 32, 32>}, {pipeline_mode = #tpu.pipeline_mode<synchronous>, transform_indices = @transform_10, window_bounds = array<i64: 1, 32>}, {pipeline_mode = #tpu.pipeline_mode<synchronous>, transform_indices = @transform_11, window_bounds = array<i64: 1, 32>}, {pipeline_mode = #tpu.pipeline_mode<synchronous>, transform_indices = @transform_12, window_bounds = array<i64: 1, 32>}, {pipeline_mode = #tpu.pipeline_mode<synchronous>, transform_indices = @transform_13, window_bounds = array<i64: 32, 32>}, {pipeline_mode = #tpu.pipeline_mode<synchronous>, transform_indices = @transform_14, window_bounds = array<i64: 1, 32>}, {pipeline_mode = #tpu.pipeline_mode<synchronous>, transform_indices = @transform_15, window_bounds = array<i64: 32, 32>}, {pipeline_mode = #tpu.pipeline_mode<synchronous>, transform_indices = @transform_16, window_bounds = array<i64: 1, 32>}, {pipeline_mode = #tpu.pipeline_mode<synchronous>, transform_indices = @transform_17, window_bounds = array<i64: 32, 32>}, {pipeline_mode = #tpu.pipeline_mode<synchronous>, transform_indices = @transform_18, window_bounds = array<i64: 1, 32>}, {pipeline_mode = #tpu.pipeline_mode<synchronous>, transform_indices = @transform_19, window_bounds = array<i64: 32, 32>}, {pipeline_mode = #tpu.pipeline_mode<synchronous>, transform_indices = @transform_20, window_bounds = array<i64: 1, 32>}, {pipeline_mode = #tpu.pipeline_mode<synchronous>, transform_indices = @transform_21, window_bounds = array<i64: 1, 32>}, {pipeline_mode = #tpu.pipeline_mode<synchronous>, transform_indices = @transform_22, window_bounds = array<i64: 1, 32>}, {pipeline_mode = #tpu.pipeline_mode<synchronous>, transform_indices = @transform_23, window_bounds = array<i64: 32, 64>}, {pipeline_mode = #tpu.pipeline_mode<synchronous>, transform_indices = @transform_24, window_bounds = array<i64: 1, 64>}, {pipeline_mode = #tpu.pipeline_mode<synchronous>, transform_indices = @transform_25, window_bounds = array<i64: 64, 32>}, {pipeline_mode = #tpu.pipeline_mode<synchronous>, transform_indices = @transform_26, window_bounds = array<i64: 1, 32>}, {pipeline_mode = #tpu.pipeline_mode<synchronous>, transform_indices = @transform_27, window_bounds = array<i64: 1, 32>}, {pipeline_mode = #tpu.pipeline_mode<synchronous>, transform_indices = @transform_28, window_bounds = array<i64: 1, 32>}, {pipeline_mode = #tpu.pipeline_mode<synchronous>, transform_indices = @transform_29, window_bounds = array<i64: 32, 128>}, {pipeline_mode = #tpu.pipeline_mode<synchronous>, transform_indices = @transform_30, window_bounds = array<i64: 1, 128>}, {pipeline_mode = #tpu.pipeline_mode<synchronous>, transform_indices = @transform_31, window_bounds = array<i64: 64, 32>}, {pipeline_mode = #tpu.pipeline_mode<synchronous>, transform_indices = @transform_32, window_bounds = array<i64: 64, 16>}, {pipeline_mode = #tpu.pipeline_mode<synchronous>, transform_indices = @transform_33, window_bounds = array<i64: 64, 32>}, {transform_indices = @transform_34, window_bounds = array<i64: 16, 128>}]} {
    %c0 = arith.constant 0 : index
    %c0_0 = arith.constant 0 : index
    %0 = vector.load %arg32[%c0, %c0_0] : memref<64x32xf32, #tpu.memory_space<vmem>>, vector<64x32xf32>
    %c0_1 = arith.constant 0 : index
    %c0_2 = arith.constant 0 : index
    %1 = vector.load %arg1[%c0_1, %c0_2] : memref<16x1xi32, #tpu.memory_space<vmem>>, vector<16x1xi32>
    %2 = tpu.iota {dimensions = array<i32: 1>} : vector<16x16xi32>
    %3 = vector.broadcast %1 : vector<16x1xi32> to vector<16x16xi32>
    %4 = arith.cmpi eq, %2, %3 : vector<16x16xi32>
    %5 = arith.extui %4 : vector<16x16xi1> to vector<16x16xi32>
    %6 = arith.sitofp %5 : vector<16x16xi32> to vector<16x16xf32>
    %7 = arith.truncf %6 : vector<16x16xf32> to vector<16x16xbf16>
    %c0_3 = arith.constant 0 : index
    %c0_4 = arith.constant 0 : index
    %8 = vector.load %arg3[%c0_3, %c0_4] : memref<16x32xbf16, #tpu.memory_space<vmem>>, vector<16x32xbf16>
    %cst = arith.constant dense<0.000000e+00> : vector<16x32xf32>
    %9 = tpu.matmul %7, %8, %cst {dimension_numbers = #tpu.dot_dimension_numbers<[1], [0], [0], [1], [0, 0, 1, 1], [], []>} : vector<16x16xbf16>, vector<16x32xbf16>, vector<16x32xf32> -> vector<16x32xf32>
    %10 = arith.truncf %9 : vector<16x32xf32> to vector<16x32xbf16>
    %c0_5 = arith.constant 0 : index
    %c0_6 = arith.constant 0 : index
    %11 = vector.load %arg33[%c0_5, %c0_6] : memref<64x16xf32, #tpu.memory_space<vmem>>, vector<64x16xf32>
    %c0_7 = arith.constant 0 : index
    %c0_8 = arith.constant 0 : index
    %12 = vector.load %arg4[%c0_7, %c0_8] : memref<32x32xbf16, #tpu.memory_space<vmem>>, vector<32x32xbf16>
    %cst_9 = arith.constant dense<0.000000e+00> : vector<16x32xf32>
    %13 = tpu.matmul %10, %12, %cst_9 {dimension_numbers = #tpu.dot_dimension_numbers<[1], [0], [0], [1], [0, 0, 1, 1], [], []>} : vector<16x32xbf16>, vector<32x32xbf16>, vector<16x32xf32> -> vector<16x32xf32>
    %c0_10 = arith.constant 0 : index
    %c0_11 = arith.constant 0 : index
    %14 = vector.load %arg5[%c0_10, %c0_11] : memref<1x32xf32, #tpu.memory_space<vmem>>, vector<1x32xf32>
    %15 = vector.broadcast %14 : vector<1x32xf32> to vector<16x32xf32>
    %16 = arith.addf %13, %15 : vector<16x32xf32>
    %17 = tpu.concatenate %16, %16, %16, %16 in 0 : vector<16x32xf32>, vector<16x32xf32>, vector<16x32xf32>, vector<16x32xf32> -> vector<64x32xf32>
    %18 = arith.mulf %17, %0 : vector<64x32xf32>
    %19 = arith.truncf %18 : vector<64x32xf32> to vector<64x32xbf16>
    %c0_12 = arith.constant 0 : index
    %c0_13 = arith.constant 0 : index
    %20 = vector.load %arg6[%c0_12, %c0_13] : memref<32x32xbf16, #tpu.memory_space<vmem>>, vector<32x32xbf16>
    %cst_14 = arith.constant dense<0.000000e+00> : vector<16x32xf32>
    %21 = tpu.matmul %10, %20, %cst_14 {dimension_numbers = #tpu.dot_dimension_numbers<[1], [0], [0], [1], [0, 0, 1, 1], [], []>} : vector<16x32xbf16>, vector<32x32xbf16>, vector<16x32xf32> -> vector<16x32xf32>
    %c0_15 = arith.constant 0 : index
    %c0_16 = arith.constant 0 : index
    %22 = vector.load %arg7[%c0_15, %c0_16] : memref<1x32xf32, #tpu.memory_space<vmem>>, vector<1x32xf32>
    %23 = vector.broadcast %22 : vector<1x32xf32> to vector<16x32xf32>
    %24 = arith.addf %21, %23 : vector<16x32xf32>
    %25 = arith.truncf %24 : vector<16x32xf32> to vector<16x32xbf16>
    %c0_17 = arith.constant 0 : index
    %c0_18 = arith.constant 0 : index
    %26 = vector.load %arg8[%c0_17, %c0_18] : memref<32x32xbf16, #tpu.memory_space<vmem>>, vector<32x32xbf16>
    %cst_19 = arith.constant dense<0.000000e+00> : vector<16x32xf32>
    %27 = tpu.matmul %10, %26, %cst_19 {dimension_numbers = #tpu.dot_dimension_numbers<[1], [0], [0], [1], [0, 0, 1, 1], [], []>} : vector<16x32xbf16>, vector<32x32xbf16>, vector<16x32xf32> -> vector<16x32xf32>
    %c0_20 = arith.constant 0 : index
    %c0_21 = arith.constant 0 : index
    %28 = vector.load %arg9[%c0_20, %c0_21] : memref<1x32xf32, #tpu.memory_space<vmem>>, vector<1x32xf32>
    %29 = vector.broadcast %28 : vector<1x32xf32> to vector<16x32xf32>
    %30 = arith.addf %27, %29 : vector<16x32xf32>
    %31 = arith.truncf %30 : vector<16x32xf32> to vector<16x32xbf16>
    %cst_22 = arith.constant dense<0.000000e+00> : vector<64x16xf32>
    %32 = tpu.matmul %19, %25, %cst_22 {dimension_numbers = #tpu.dot_dimension_numbers<[1], [1], [0], [0], [0, 0, 1, 0], [], []>} : vector<64x32xbf16>, vector<16x32xbf16>, vector<64x16xf32> -> vector<64x16xf32>
    %33 = arith.addf %32, %11 : vector<64x16xf32>
    %cst_23 = arith.constant dense<0xFF800000> : vector<64xf32>
    %34 = vector.multi_reduction <maximumf>, %33, %cst_23 [1] : vector<64x16xf32> to vector<64xf32>
    %35 = vector.shape_cast %34 : vector<64xf32> to vector<64x1xf32>
    %36 = vector.broadcast %35 : vector<64x1xf32> to vector<64x16xf32>
    %37 = arith.subf %33, %36 : vector<64x16xf32>
    %38 = math.exp %37 : vector<64x16xf32>
    %cst_24 = arith.constant dense<0.000000e+00> : vector<64xf32>
    %39 = vector.multi_reduction <add>, %38, %cst_24 [1] : vector<64x16xf32> to vector<64xf32>
    %40 = vector.shape_cast %39 : vector<64xf32> to vector<64x1xf32>
    %41 = tpu.reciprocal %40 {approx = true} : vector<64x1xf32> -> vector<64x1xf32>
    %42 = vector.broadcast %41 : vector<64x1xf32> to vector<64x16xf32>
    %43 = arith.mulf %38, %42 : vector<64x16xf32>
    %44 = arith.truncf %43 : vector<64x16xf32> to vector<64x16xbf16>
    %cst_25 = arith.constant dense<0.000000e+00> : vector<64x32xf32>
    %45 = tpu.matmul %44, %31, %cst_25 {dimension_numbers = #tpu.dot_dimension_numbers<[1], [0], [0], [1], [0, 0, 1, 1], [], []>} : vector<64x16xbf16>, vector<16x32xbf16>, vector<64x32xf32> -> vector<64x32xf32>
    %46 = arith.mulf %45, %0 : vector<64x32xf32>
    %47 = arith.truncf %46 : vector<64x32xf32> to vector<64x32xbf16>
    %c0_26 = arith.constant 0 : index
    %c0_27 = arith.constant 0 : index
    %48 = vector.load %arg10[%c0_26, %c0_27] : memref<32x32xbf16, #tpu.memory_space<vmem>>, vector<32x32xbf16>
    %cst_28 = arith.constant dense<0.000000e+00> : vector<64x32xf32>
    %49 = tpu.matmul %47, %48, %cst_28 {dimension_numbers = #tpu.dot_dimension_numbers<[1], [0], [0], [1], [0, 0, 1, 1], [], []>} : vector<64x32xbf16>, vector<32x32xbf16>, vector<64x32xf32> -> vector<64x32xf32>
    %50 = vector.extract_strided_slice %49 {offsets = [0, 0], sizes = [16, 32], strides = [1, 1]} : vector<64x32xf32> to vector<16x32xf32>
    %51 = vector.extract_strided_slice %49 {offsets = [16, 0], sizes = [16, 32], strides = [1, 1]} : vector<64x32xf32> to vector<16x32xf32>
    %52 = arith.addf %50, %51 : vector<16x32xf32>
    %53 = vector.extract_strided_slice %49 {offsets = [32, 0], sizes = [16, 32], strides = [1, 1]} : vector<64x32xf32> to vector<16x32xf32>
    %54 = arith.addf %52, %53 : vector<16x32xf32>
    %55 = vector.extract_strided_slice %49 {offsets = [48, 0], sizes = [16, 32], strides = [1, 1]} : vector<64x32xf32> to vector<16x32xf32>
    %56 = arith.addf %54, %55 : vector<16x32xf32>
    %c0_29 = arith.constant 0 : index
    %c0_30 = arith.constant 0 : index
    %57 = vector.load %arg11[%c0_29, %c0_30] : memref<1x32xf32, #tpu.memory_space<vmem>>, vector<1x32xf32>
    %58 = vector.broadcast %57 : vector<1x32xf32> to vector<16x32xf32>
    %59 = arith.addf %56, %58 : vector<16x32xf32>
    %60 = arith.addf %59, %9 : vector<16x32xf32>
    %c0_31 = arith.constant 0 : index
    %c0_32 = arith.constant 0 : index
    %61 = vector.load %arg12[%c0_31, %c0_32] : memref<1x32xf32, #tpu.memory_space<vmem>>, vector<1x32xf32>
    %c0_33 = arith.constant 0 : index
    %c0_34 = arith.constant 0 : index
    %62 = vector.load %arg13[%c0_33, %c0_34] : memref<1x32xf32, #tpu.memory_space<vmem>>, vector<1x32xf32>
    %cst_35 = arith.constant dense<0.000000e+00> : vector<16xf32>
    %63 = vector.multi_reduction <add>, %60, %cst_35 [1] : vector<16x32xf32> to vector<16xf32>
    %64 = vector.shape_cast %63 : vector<16xf32> to vector<16x1xf32>
    %cst_36 = arith.constant 3.200000e+01 : f32
    %65 = vector.broadcast %cst_36 : f32 to vector<16x1xf32>
    %66 = arith.divf %64, %65 : vector<16x1xf32>
    %67 = vector.broadcast %66 : vector<16x1xf32> to vector<16x32xf32>
    %68 = arith.subf %60, %67 : vector<16x32xf32>
    %69 = arith.mulf %68, %68 : vector<16x32xf32>
    %cst_37 = arith.constant dense<0.000000e+00> : vector<16xf32>
    %70 = vector.multi_reduction <add>, %69, %cst_37 [1] : vector<16x32xf32> to vector<16xf32>
    %71 = vector.shape_cast %70 : vector<16xf32> to vector<16x1xf32>
    %cst_38 = arith.constant 3.200000e+01 : f32
    %72 = vector.broadcast %cst_38 : f32 to vector<16x1xf32>
    %73 = arith.divf %71, %72 : vector<16x1xf32>
    %74 = vector.broadcast %66 : vector<16x1xf32> to vector<16x32xf32>
    %75 = arith.subf %60, %74 : vector<16x32xf32>
    %cst_39 = arith.constant 9.99999974E-6 : f32
    %76 = vector.broadcast %cst_39 : f32 to vector<16x1xf32>
    %77 = arith.addf %73, %76 : vector<16x1xf32>
    %78 = math.rsqrt %77 : vector<16x1xf32>
    %79 = vector.broadcast %78 : vector<16x1xf32> to vector<16x32xf32>
    %80 = arith.mulf %75, %79 : vector<16x32xf32>
    %81 = vector.broadcast %61 : vector<1x32xf32> to vector<16x32xf32>
    %82 = arith.mulf %80, %81 : vector<16x32xf32>
    %83 = vector.broadcast %62 : vector<1x32xf32> to vector<16x32xf32>
    %84 = arith.addf %82, %83 : vector<16x32xf32>
    %85 = arith.truncf %84 : vector<16x32xf32> to vector<16x32xbf16>
    %c0_40 = arith.constant 0 : index
    %c0_41 = arith.constant 0 : index
    %86 = vector.load %arg2[%c0_40, %c0_41] : memref<32x32xbf16, #tpu.memory_space<vmem>>, vector<32x32xbf16>
    %c0_42 = arith.constant 0 : index
    %c0_43 = arith.constant 0 : index
    %87 = vector.load %arg34[%c0_42, %c0_43] : memref<64x32xf32, #tpu.memory_space<vmem>>, vector<64x32xf32>
    %c0_44 = arith.constant 0 : index
    %c0_45 = arith.constant 0 : index
    %88 = vector.load %arg14[%c0_44, %c0_45] : memref<32x32xbf16, #tpu.memory_space<vmem>>, vector<32x32xbf16>
    %cst_46 = arith.constant dense<0.000000e+00> : vector<16x32xf32>
    %89 = tpu.matmul %85, %88, %cst_46 {dimension_numbers = #tpu.dot_dimension_numbers<[1], [0], [0], [1], [0, 0, 1, 1], [], []>} : vector<16x32xbf16>, vector<32x32xbf16>, vector<16x32xf32> -> vector<16x32xf32>
    %c0_47 = arith.constant 0 : index
    %c0_48 = arith.constant 0 : index
    %90 = vector.load %arg15[%c0_47, %c0_48] : memref<1x32xf32, #tpu.memory_space<vmem>>, vector<1x32xf32>
    %91 = vector.broadcast %90 : vector<1x32xf32> to vector<16x32xf32>
    %92 = arith.addf %89, %91 : vector<16x32xf32>
    %93 = tpu.concatenate %92, %92, %92, %92 in 0 : vector<16x32xf32>, vector<16x32xf32>, vector<16x32xf32>, vector<16x32xf32> -> vector<64x32xf32>
    %94 = arith.mulf %93, %0 : vector<64x32xf32>
    %95 = arith.truncf %94 : vector<64x32xf32> to vector<64x32xbf16>
    %c0_49 = arith.constant 0 : index
    %c0_50 = arith.constant 0 : index
    %96 = vector.load %arg16[%c0_49, %c0_50] : memref<32x32xbf16, #tpu.memory_space<vmem>>, vector<32x32xbf16>
    %cst_51 = arith.constant dense<0.000000e+00> : vector<32x32xf32>
    %97 = tpu.matmul %86, %96, %cst_51 {dimension_numbers = #tpu.dot_dimension_numbers<[1], [0], [0], [1], [0, 0, 1, 1], [], []>} : vector<32x32xbf16>, vector<32x32xbf16>, vector<32x32xf32> -> vector<32x32xf32>
    %c0_52 = arith.constant 0 : index
    %c0_53 = arith.constant 0 : index
    %98 = vector.load %arg17[%c0_52, %c0_53] : memref<1x32xf32, #tpu.memory_space<vmem>>, vector<1x32xf32>
    %99 = vector.broadcast %98 : vector<1x32xf32> to vector<32x32xf32>
    %100 = arith.addf %97, %99 : vector<32x32xf32>
    %101 = arith.truncf %100 : vector<32x32xf32> to vector<32x32xbf16>
    %c0_54 = arith.constant 0 : index
    %c0_55 = arith.constant 0 : index
    %102 = vector.load %arg18[%c0_54, %c0_55] : memref<32x32xbf16, #tpu.memory_space<vmem>>, vector<32x32xbf16>
    %cst_56 = arith.constant dense<0.000000e+00> : vector<32x32xf32>
    %103 = tpu.matmul %86, %102, %cst_56 {dimension_numbers = #tpu.dot_dimension_numbers<[1], [0], [0], [1], [0, 0, 1, 1], [], []>} : vector<32x32xbf16>, vector<32x32xbf16>, vector<32x32xf32> -> vector<32x32xf32>
    %c0_57 = arith.constant 0 : index
    %c0_58 = arith.constant 0 : index
    %104 = vector.load %arg19[%c0_57, %c0_58] : memref<1x32xf32, #tpu.memory_space<vmem>>, vector<1x32xf32>
    %105 = vector.broadcast %104 : vector<1x32xf32> to vector<32x32xf32>
    %106 = arith.addf %103, %105 : vector<32x32xf32>
    %107 = arith.truncf %106 : vector<32x32xf32> to vector<32x32xbf16>
    %cst_59 = arith.constant dense<0.000000e+00> : vector<64x32xf32>
    %108 = tpu.matmul %95, %101, %cst_59 {dimension_numbers = #tpu.dot_dimension_numbers<[1], [1], [0], [0], [0, 0, 1, 0], [], []>} : vector<64x32xbf16>, vector<32x32xbf16>, vector<64x32xf32> -> vector<64x32xf32>
    %109 = arith.addf %108, %87 : vector<64x32xf32>
    %cst_60 = arith.constant dense<0xFF800000> : vector<64xf32>
    %110 = vector.multi_reduction <maximumf>, %109, %cst_60 [1] : vector<64x32xf32> to vector<64xf32>
    %111 = vector.shape_cast %110 : vector<64xf32> to vector<64x1xf32>
    %112 = vector.broadcast %111 : vector<64x1xf32> to vector<64x32xf32>
    %113 = arith.subf %109, %112 : vector<64x32xf32>
    %114 = math.exp %113 : vector<64x32xf32>
    %cst_61 = arith.constant dense<0.000000e+00> : vector<64xf32>
    %115 = vector.multi_reduction <add>, %114, %cst_61 [1] : vector<64x32xf32> to vector<64xf32>
    %116 = vector.shape_cast %115 : vector<64xf32> to vector<64x1xf32>
    %117 = tpu.reciprocal %116 {approx = true} : vector<64x1xf32> -> vector<64x1xf32>
    %118 = vector.broadcast %117 : vector<64x1xf32> to vector<64x32xf32>
    %119 = arith.mulf %114, %118 : vector<64x32xf32>
    %120 = arith.truncf %119 : vector<64x32xf32> to vector<64x32xbf16>
    %cst_62 = arith.constant dense<0.000000e+00> : vector<64x32xf32>
    %121 = tpu.matmul %120, %107, %cst_62 {dimension_numbers = #tpu.dot_dimension_numbers<[1], [0], [0], [1], [0, 0, 1, 1], [], []>} : vector<64x32xbf16>, vector<32x32xbf16>, vector<64x32xf32> -> vector<64x32xf32>
    %122 = arith.mulf %121, %0 : vector<64x32xf32>
    %123 = arith.truncf %122 : vector<64x32xf32> to vector<64x32xbf16>
    %c0_63 = arith.constant 0 : index
    %c0_64 = arith.constant 0 : index
    %124 = vector.load %arg20[%c0_63, %c0_64] : memref<32x32xbf16, #tpu.memory_space<vmem>>, vector<32x32xbf16>
    %cst_65 = arith.constant dense<0.000000e+00> : vector<64x32xf32>
    %125 = tpu.matmul %123, %124, %cst_65 {dimension_numbers = #tpu.dot_dimension_numbers<[1], [0], [0], [1], [0, 0, 1, 1], [], []>} : vector<64x32xbf16>, vector<32x32xbf16>, vector<64x32xf32> -> vector<64x32xf32>
    %126 = vector.extract_strided_slice %125 {offsets = [0, 0], sizes = [16, 32], strides = [1, 1]} : vector<64x32xf32> to vector<16x32xf32>
    %127 = vector.extract_strided_slice %125 {offsets = [16, 0], sizes = [16, 32], strides = [1, 1]} : vector<64x32xf32> to vector<16x32xf32>
    %128 = arith.addf %126, %127 : vector<16x32xf32>
    %129 = vector.extract_strided_slice %125 {offsets = [32, 0], sizes = [16, 32], strides = [1, 1]} : vector<64x32xf32> to vector<16x32xf32>
    %130 = arith.addf %128, %129 : vector<16x32xf32>
    %131 = vector.extract_strided_slice %125 {offsets = [48, 0], sizes = [16, 32], strides = [1, 1]} : vector<64x32xf32> to vector<16x32xf32>
    %132 = arith.addf %130, %131 : vector<16x32xf32>
    %c0_66 = arith.constant 0 : index
    %c0_67 = arith.constant 0 : index
    %133 = vector.load %arg21[%c0_66, %c0_67] : memref<1x32xf32, #tpu.memory_space<vmem>>, vector<1x32xf32>
    %134 = vector.broadcast %133 : vector<1x32xf32> to vector<16x32xf32>
    %135 = arith.addf %132, %134 : vector<16x32xf32>
    %136 = arith.addf %135, %84 : vector<16x32xf32>
    %c0_68 = arith.constant 0 : index
    %c0_69 = arith.constant 0 : index
    %137 = vector.load %arg22[%c0_68, %c0_69] : memref<1x32xf32, #tpu.memory_space<vmem>>, vector<1x32xf32>
    %c0_70 = arith.constant 0 : index
    %c0_71 = arith.constant 0 : index
    %138 = vector.load %arg23[%c0_70, %c0_71] : memref<1x32xf32, #tpu.memory_space<vmem>>, vector<1x32xf32>
    %cst_72 = arith.constant dense<0.000000e+00> : vector<16xf32>
    %139 = vector.multi_reduction <add>, %136, %cst_72 [1] : vector<16x32xf32> to vector<16xf32>
    %140 = vector.shape_cast %139 : vector<16xf32> to vector<16x1xf32>
    %cst_73 = arith.constant 3.200000e+01 : f32
    %141 = vector.broadcast %cst_73 : f32 to vector<16x1xf32>
    %142 = arith.divf %140, %141 : vector<16x1xf32>
    %143 = vector.broadcast %142 : vector<16x1xf32> to vector<16x32xf32>
    %144 = arith.subf %136, %143 : vector<16x32xf32>
    %145 = arith.mulf %144, %144 : vector<16x32xf32>
    %cst_74 = arith.constant dense<0.000000e+00> : vector<16xf32>
    %146 = vector.multi_reduction <add>, %145, %cst_74 [1] : vector<16x32xf32> to vector<16xf32>
    %147 = vector.shape_cast %146 : vector<16xf32> to vector<16x1xf32>
    %cst_75 = arith.constant 3.200000e+01 : f32
    %148 = vector.broadcast %cst_75 : f32 to vector<16x1xf32>
    %149 = arith.divf %147, %148 : vector<16x1xf32>
    %150 = vector.broadcast %142 : vector<16x1xf32> to vector<16x32xf32>
    %151 = arith.subf %136, %150 : vector<16x32xf32>
    %cst_76 = arith.constant 9.99999974E-6 : f32
    %152 = vector.broadcast %cst_76 : f32 to vector<16x1xf32>
    %153 = arith.addf %149, %152 : vector<16x1xf32>
    %154 = math.rsqrt %153 : vector<16x1xf32>
    %155 = vector.broadcast %154 : vector<16x1xf32> to vector<16x32xf32>
    %156 = arith.mulf %151, %155 : vector<16x32xf32>
    %157 = vector.broadcast %137 : vector<1x32xf32> to vector<16x32xf32>
    %158 = arith.mulf %156, %157 : vector<16x32xf32>
    %159 = vector.broadcast %138 : vector<1x32xf32> to vector<16x32xf32>
    %160 = arith.addf %158, %159 : vector<16x32xf32>
    %161 = arith.truncf %160 : vector<16x32xf32> to vector<16x32xbf16>
    %c0_77 = arith.constant 0 : index
    %c0_78 = arith.constant 0 : index
    %162 = vector.load %arg24[%c0_77, %c0_78] : memref<32x64xbf16, #tpu.memory_space<vmem>>, vector<32x64xbf16>
    %cst_79 = arith.constant dense<0.000000e+00> : vector<16x64xf32>
    %163 = tpu.matmul %161, %162, %cst_79 {dimension_numbers = #tpu.dot_dimension_numbers<[1], [0], [0], [1], [0, 0, 1, 1], [], []>} : vector<16x32xbf16>, vector<32x64xbf16>, vector<16x64xf32> -> vector<16x64xf32>
    %c0_80 = arith.constant 0 : index
    %c0_81 = arith.constant 0 : index
    %164 = vector.load %arg25[%c0_80, %c0_81] : memref<1x64xf32, #tpu.memory_space<vmem>>, vector<1x64xf32>
    %165 = vector.broadcast %164 : vector<1x64xf32> to vector<16x64xf32>
    %166 = arith.addf %163, %165 : vector<16x64xf32>
    %cst_82 = arith.constant 0.000000e+00 : f32
    %167 = vector.broadcast %cst_82 : f32 to vector<16x64xf32>
    %168 = arith.maximumf %166, %167 : vector<16x64xf32>
    %169 = arith.truncf %168 : vector<16x64xf32> to vector<16x64xbf16>
    %c0_83 = arith.constant 0 : index
    %c0_84 = arith.constant 0 : index
    %170 = vector.load %arg26[%c0_83, %c0_84] : memref<64x32xbf16, #tpu.memory_space<vmem>>, vector<64x32xbf16>
    %cst_85 = arith.constant dense<0.000000e+00> : vector<16x32xf32>
    %171 = tpu.matmul %169, %170, %cst_85 {dimension_numbers = #tpu.dot_dimension_numbers<[1], [0], [0], [1], [0, 0, 1, 1], [], []>} : vector<16x64xbf16>, vector<64x32xbf16>, vector<16x32xf32> -> vector<16x32xf32>
    %c0_86 = arith.constant 0 : index
    %c0_87 = arith.constant 0 : index
    %172 = vector.load %arg27[%c0_86, %c0_87] : memref<1x32xf32, #tpu.memory_space<vmem>>, vector<1x32xf32>
    %173 = vector.broadcast %172 : vector<1x32xf32> to vector<16x32xf32>
    %174 = arith.addf %171, %173 : vector<16x32xf32>
    %175 = arith.addf %174, %160 : vector<16x32xf32>
    %c0_88 = arith.constant 0 : index
    %c0_89 = arith.constant 0 : index
    %176 = vector.load %arg28[%c0_88, %c0_89] : memref<1x32xf32, #tpu.memory_space<vmem>>, vector<1x32xf32>
    %c0_90 = arith.constant 0 : index
    %c0_91 = arith.constant 0 : index
    %177 = vector.load %arg29[%c0_90, %c0_91] : memref<1x32xf32, #tpu.memory_space<vmem>>, vector<1x32xf32>
    %cst_92 = arith.constant dense<0.000000e+00> : vector<16xf32>
    %178 = vector.multi_reduction <add>, %175, %cst_92 [1] : vector<16x32xf32> to vector<16xf32>
    %179 = vector.shape_cast %178 : vector<16xf32> to vector<16x1xf32>
    %cst_93 = arith.constant 3.200000e+01 : f32
    %180 = vector.broadcast %cst_93 : f32 to vector<16x1xf32>
    %181 = arith.divf %179, %180 : vector<16x1xf32>
    %182 = vector.broadcast %181 : vector<16x1xf32> to vector<16x32xf32>
    %183 = arith.subf %175, %182 : vector<16x32xf32>
    %184 = arith.mulf %183, %183 : vector<16x32xf32>
    %cst_94 = arith.constant dense<0.000000e+00> : vector<16xf32>
    %185 = vector.multi_reduction <add>, %184, %cst_94 [1] : vector<16x32xf32> to vector<16xf32>
    %186 = vector.shape_cast %185 : vector<16xf32> to vector<16x1xf32>
    %cst_95 = arith.constant 3.200000e+01 : f32
    %187 = vector.broadcast %cst_95 : f32 to vector<16x1xf32>
    %188 = arith.divf %186, %187 : vector<16x1xf32>
    %189 = vector.broadcast %181 : vector<16x1xf32> to vector<16x32xf32>
    %190 = arith.subf %175, %189 : vector<16x32xf32>
    %cst_96 = arith.constant 9.99999974E-6 : f32
    %191 = vector.broadcast %cst_96 : f32 to vector<16x1xf32>
    %192 = arith.addf %188, %191 : vector<16x1xf32>
    %193 = math.rsqrt %192 : vector<16x1xf32>
    %194 = vector.broadcast %193 : vector<16x1xf32> to vector<16x32xf32>
    %195 = arith.mulf %190, %194 : vector<16x32xf32>
    %196 = vector.broadcast %176 : vector<1x32xf32> to vector<16x32xf32>
    %197 = arith.mulf %195, %196 : vector<16x32xf32>
    %198 = vector.broadcast %177 : vector<1x32xf32> to vector<16x32xf32>
    %199 = arith.addf %197, %198 : vector<16x32xf32>
    %200 = arith.truncf %199 : vector<16x32xf32> to vector<16x32xbf16>
    %c0_97 = arith.constant 0 : index
    %c0_98 = arith.constant 0 : index
    %201 = vector.load %arg30[%c0_97, %c0_98] : memref<32x128xbf16, #tpu.memory_space<vmem>>, vector<32x128xbf16>
    %cst_99 = arith.constant dense<0.000000e+00> : vector<16x128xf32>
    %202 = tpu.matmul %200, %201, %cst_99 {dimension_numbers = #tpu.dot_dimension_numbers<[1], [0], [0], [1], [0, 0, 1, 1], [], []>} : vector<16x32xbf16>, vector<32x128xbf16>, vector<16x128xf32> -> vector<16x128xf32>
    %c0_100 = arith.constant 0 : index
    %c0_101 = arith.constant 0 : index
    %203 = vector.load %arg31[%c0_100, %c0_101] : memref<1x128xf32, #tpu.memory_space<vmem>>, vector<1x128xf32>
    %204 = vector.broadcast %203 : vector<1x128xf32> to vector<16x128xf32>
    %205 = arith.addf %202, %204 : vector<16x128xf32>
    %c0_102 = arith.constant 0 : index
    %c0_103 = arith.constant 0 : index
    %206 = vector.load %arg35[%c0_102, %c0_103] : memref<16x128xf32, #tpu.memory_space<vmem>>, vector<16x128xf32>
    tpu.vector_store %arg35[%c0_102, %c0_103], %205 {strides = array<i32>} : memref<16x128xf32, #tpu.memory_space<vmem>>, vector<16x128xf32>,
    return
  }
  func.func @transform_0(%arg0: i32) -> (i32, i32) {
    %c0_i32 = arith.constant 0 : i32
    %c0_i32_0 = arith.constant 0 : i32
    return %arg0, %c0_i32 : i32, i32
  }
  func.func @transform_1(%arg0: i32) -> (i32, i32) {
    %c0_i32 = arith.constant 0 : i32
    %c0_i32_0 = arith.constant 0 : i32
    return %arg0, %c0_i32 : i32, i32
  }
  func.func @transform_2(%arg0: i32) -> (i32, i32) {
    %c0_i32 = arith.constant 0 : i32
    %c0_i32_0 = arith.constant 0 : i32
    %c0_i32_1 = arith.constant 0 : i32
    return %c0_i32, %c0_i32_0 : i32, i32
  }
  func.func @transform_3(%arg0: i32) -> (i32, i32) {
    %c0_i32 = arith.constant 0 : i32
    %c0_i32_0 = arith.constant 0 : i32
    %c0_i32_1 = arith.constant 0 : i32
    return %c0_i32, %c0_i32_0 : i32, i32
  }
  func.func @transform_4(%arg0: i32) -> (i32, i32) {
    %c0_i32 = arith.constant 0 : i32
    %c0_i32_0 = arith.constant 0 : i32
    %c0_i32_1 = arith.constant 0 : i32
    return %c0_i32, %c0_i32_0 : i32, i32
  }
  func.func @transform_5(%arg0: i32) -> (i32, i32) {
    %c0_i32 = arith.constant 0 : i32
    %c0_i32_0 = arith.constant 0 : i32
    %c0_i32_1 = arith.constant 0 : i32
    return %c0_i32, %c0_i32_0 : i32, i32
  }
  func.func @transform_6(%arg0: i32) -> (i32, i32) {
    %c0_i32 = arith.constant 0 : i32
    %c0_i32_0 = arith.constant 0 : i32
    %c0_i32_1 = arith.constant 0 : i32
    return %c0_i32, %c0_i32_0 : i32, i32
  }
  func.func @transform_7(%arg0: i32) -> (i32, i32) {
    %c0_i32 = arith.constant 0 : i32
    %c0_i32_0 = arith.constant 0 : i32
    %c0_i32_1 = arith.constant 0 : i32
    return %c0_i32, %c0_i32_0 : i32, i32
  }
  func.func @transform_8(%arg0: i32) -> (i32, i32) {
    %c0_i32 = arith.constant 0 : i32
    %c0_i32_0 = arith.constant 0 : i32
    %c0_i32_1 = arith.constant 0 : i32
    return %c0_i32, %c0_i32_0 : i32, i32
  }
  func.func @transform_9(%arg0: i32) -> (i32, i32) {
    %c0_i32 = arith.constant 0 : i32
    %c0_i32_0 = arith.constant 0 : i32
    %c0_i32_1 = arith.constant 0 : i32
    return %c0_i32, %c0_i32_0 : i32, i32
  }
  func.func @transform_10(%arg0: i32) -> (i32, i32) {
    %c0_i32 = arith.constant 0 : i32
    %c0_i32_0 = arith.constant 0 : i32
    %c0_i32_1 = arith.constant 0 : i32
    return %c0_i32, %c0_i32_0 : i32, i32
  }
  func.func @transform_11(%arg0: i32) -> (i32, i32) {
    %c0_i32 = arith.constant 0 : i32
    %c0_i32_0 = arith.constant 0 : i32
    %c0_i32_1 = arith.constant 0 : i32
    return %c0_i32, %c0_i32_0 : i32, i32
  }
  func.func @transform_12(%arg0: i32) -> (i32, i32) {
    %c0_i32 = arith.constant 0 : i32
    %c0_i32_0 = arith.constant 0 : i32
    %c0_i32_1 = arith.constant 0 : i32
    return %c0_i32, %c0_i32_0 : i32, i32
  }
  func.func @transform_13(%arg0: i32) -> (i32, i32) {
    %c0_i32 = arith.constant 0 : i32
    %c0_i32_0 = arith.constant 0 : i32
    %c0_i32_1 = arith.constant 0 : i32
    return %c0_i32, %c0_i32_0 : i32, i32
  }
  func.func @transform_14(%arg0: i32) -> (i32, i32) {
    %c0_i32 = arith.constant 0 : i32
    %c0_i32_0 = arith.constant 0 : i32
    %c0_i32_1 = arith.constant 0 : i32
    return %c0_i32, %c0_i32_0 : i32, i32
  }
  func.func @transform_15(%arg0: i32) -> (i32, i32) {
    %c0_i32 = arith.constant 0 : i32
    %c0_i32_0 = arith.constant 0 : i32
    %c0_i32_1 = arith.constant 0 : i32
    return %c0_i32, %c0_i32_0 : i32, i32
  }
  func.func @transform_16(%arg0: i32) -> (i32, i32) {
    %c0_i32 = arith.constant 0 : i32
    %c0_i32_0 = arith.constant 0 : i32
    %c0_i32_1 = arith.constant 0 : i32
    return %c0_i32, %c0_i32_0 : i32, i32
  }
  func.func @transform_17(%arg0: i32) -> (i32, i32) {
    %c0_i32 = arith.constant 0 : i32
    %c0_i32_0 = arith.constant 0 : i32
    %c0_i32_1 = arith.constant 0 : i32
    return %c0_i32, %c0_i32_0 : i32, i32
  }
  func.func @transform_18(%arg0: i32) -> (i32, i32) {
    %c0_i32 = arith.constant 0 : i32
    %c0_i32_0 = arith.constant 0 : i32
    %c0_i32_1 = arith.constant 0 : i32
    return %c0_i32, %c0_i32_0 : i32, i32
  }
  func.func @transform_19(%arg0: i32) -> (i32, i32) {
    %c0_i32 = arith.constant 0 : i32
    %c0_i32_0 = arith.constant 0 : i32
    %c0_i32_1 = arith.constant 0 : i32
    return %c0_i32, %c0_i32_0 : i32, i32
  }
  func.func @transform_20(%arg0: i32) -> (i32, i32) {
    %c0_i32 = arith.constant 0 : i32
    %c0_i32_0 = arith.constant 0 : i32
    %c0_i32_1 = arith.constant 0 : i32
    return %c0_i32, %c0_i32_0 : i32, i32
  }
  func.func @transform_21(%arg0: i32) -> (i32, i32) {
    %c0_i32 = arith.constant 0 : i32
    %c0_i32_0 = arith.constant 0 : i32
    %c0_i32_1 = arith.constant 0 : i32
    return %c0_i32, %c0_i32_0 : i32, i32
  }
  func.func @transform_22(%arg0: i32) -> (i32, i32) {
    %c0_i32 = arith.constant 0 : i32
    %c0_i32_0 = arith.constant 0 : i32
    %c0_i32_1 = arith.constant 0 : i32
    return %c0_i32, %c0_i32_0 : i32, i32
  }
  func.func @transform_23(%arg0: i32) -> (i32, i32) {
    %c0_i32 = arith.constant 0 : i32
    %c0_i32_0 = arith.constant 0 : i32
    %c0_i32_1 = arith.constant 0 : i32
    return %c0_i32, %c0_i32_0 : i32, i32
  }
  func.func @transform_24(%arg0: i32) -> (i32, i32) {
    %c0_i32 = arith.constant 0 : i32
    %c0_i32_0 = arith.constant 0 : i32
    %c0_i32_1 = arith.constant 0 : i32
    return %c0_i32, %c0_i32_0 : i32, i32
  }
  func.func @transform_25(%arg0: i32) -> (i32, i32) {
    %c0_i32 = arith.constant 0 : i32
    %c0_i32_0 = arith.constant 0 : i32
    %c0_i32_1 = arith.constant 0 : i32
    return %c0_i32, %c0_i32_0 : i32, i32
  }
  func.func @transform_26(%arg0: i32) -> (i32, i32) {
    %c0_i32 = arith.constant 0 : i32
    %c0_i32_0 = arith.constant 0 : i32
    %c0_i32_1 = arith.constant 0 : i32
    return %c0_i32, %c0_i32_0 : i32, i32
  }
  func.func @transform_27(%arg0: i32) -> (i32, i32) {
    %c0_i32 = arith.constant 0 : i32
    %c0_i32_0 = arith.constant 0 : i32
    %c0_i32_1 = arith.constant 0 : i32
    return %c0_i32, %c0_i32_0 : i32, i32
  }
  func.func @transform_28(%arg0: i32) -> (i32, i32) {
    %c0_i32 = arith.constant 0 : i32
    %c0_i32_0 = arith.constant 0 : i32
    %c0_i32_1 = arith.constant 0 : i32
    return %c0_i32, %c0_i32_0 : i32, i32
  }
  func.func @transform_29(%arg0: i32) -> (i32, i32) {
    %c0_i32 = arith.constant 0 : i32
    %c0_i32_0 = arith.constant 0 : i32
    %c0_i32_1 = arith.constant 0 : i32
    return %c0_i32, %c0_i32_0 : i32, i32
  }
  func.func @transform_30(%arg0: i32) -> (i32, i32) {
    %c0_i32 = arith.constant 0 : i32
    %c0_i32_0 = arith.constant 0 : i32
    %c0_i32_1 = arith.constant 0 : i32
    return %c0_i32, %c0_i32_0 : i32, i32
  }
  func.func @transform_31(%arg0: i32) -> (i32, i32) {
    %c0_i32 = arith.constant 0 : i32
    %c0_i32_0 = arith.constant 0 : i32
    %c0_i32_1 = arith.constant 0 : i32
    return %c0_i32, %c0_i32_0 : i32, i32
  }
  func.func @transform_32(%arg0: i32) -> (i32, i32) {
    %c0_i32 = arith.constant 0 : i32
    %c0_i32_0 = arith.constant 0 : i32
    %c0_i32_1 = arith.constant 0 : i32
    return %c0_i32, %c0_i32_0 : i32, i32
  }
  func.func @transform_33(%arg0: i32) -> (i32, i32) {
    %c0_i32 = arith.constant 0 : i32
    %c0_i32_0 = arith.constant 0 : i32
    %c0_i32_1 = arith.constant 0 : i32
    return %c0_i32, %c0_i32_0 : i32, i32
  }
  func.func @transform_34(%arg0: i32) -> (i32, i32) {
    %c0_i32 = arith.constant 0 : i32
    %c0_i32_0 = arith.constant 0 : i32
    return %arg0, %c0_i32 : i32, i32
  }
}

</mosaic_0001>

<llo_original>
// kernel: tpu_custom_call.1
$region0: #{tpu_custom_call.1}
  #allocation0 [shape = 'u32[]', space=smem, size = 0x4, offset = 0x4, fixed_abs, tag = 'smem constant byte address 0x4 - core index']
  #allocation1 [shape = 'u32[144,128]{1,0:T(1,128)}', space=vmem, size = 0x12000, scoped, tag = 'internal scratch']
  %s0 = inlined_call_operand.smem [shape: u32[35], index: -1, kind: input, shape index: {}]
  %s1 = sld [smem:[%s0]]
  %s2 = scalar_lea.smem %s0, 1
  %s3 = sld [smem:[%s2]]
  %s4 = scalar_lea.smem %s0, 2
  %s5 = sld [smem:[%s4]]
  %s6 = scalar_lea.smem %s0, 3
  %s7 = sld [smem:[%s6]]
  %s8 = scalar_lea.smem %s0, 4
  %s9 = sld [smem:[%s8]]
  %s10 = scalar_lea.smem %s0, 5
  %s11 = sld [smem:[%s10]]
  %s12 = scalar_lea.smem %s0, 6
  %s13 = sld [smem:[%s12]]
  %s14 = scalar_lea.smem %s0, 7
  %s15 = sld [smem:[%s14]]
  %s16 = scalar_lea.smem %s0, 8
  %s17 = sld [smem:[%s16]]
  %s18 = scalar_lea.smem %s0, 9
  %s19 = sld [smem:[%s18]]
  %s20 = scalar_lea.smem %s0, 10
  %s21 = sld [smem:[%s20]]
  %s22 = scalar_lea.smem %s0, 11
  %s23 = sld [smem:[%s22]]
  %s24 = scalar_lea.smem %s0, 12
  %s25 = sld [smem:[%s24]]
  %s26 = scalar_lea.smem %s0, 13
  %s27 = sld [smem:[%s26]]
  %s28 = scalar_lea.smem %s0, 14
  %s29 = sld [smem:[%s28]]
  %s30 = scalar_lea.smem %s0, 15
  %s31 = sld [smem:[%s30]]
  %s32 = scalar_lea.smem %s0, 16
  %s33 = sld [smem:[%s32]]
  %s34 = scalar_lea.smem %s0, 17
  %s35 = sld [smem:[%s34]]
  %s36 = scalar_lea.smem %s0, 18
  %s37 = sld [smem:[%s36]]
  %s38 = scalar_lea.smem %s0, 19
  %s39 = sld [smem:[%s38]]
  %s40 = scalar_lea.smem %s0, 20
  %s41 = sld [smem:[%s40]]
  %s42 = scalar_lea.smem %s0, 21
  %s43 = sld [smem:[%s42]]
  %s44 = scalar_lea.smem %s0, 22
  %s45 = sld [smem:[%s44]]
  %s46 = scalar_lea.smem %s0, 23
  %s47 = sld [smem:[%s46]]
  %s48 = scalar_lea.smem %s0, 24
  %s49 = sld [smem:[%s48]]
  %s50 = scalar_lea.smem %s0, 25
  %s51 = sld [smem:[%s50]]
  %s52 = scalar_lea.smem %s0, 26
  %s53 = sld [smem:[%s52]]
  %s54 = scalar_lea.smem %s0, 27
  %s55 = sld [smem:[%s54]]
  %s56 = scalar_lea.smem %s0, 28
  %s57 = sld [smem:[%s56]]
  %s58 = scalar_lea.smem %s0, 29
  %s59 = sld [smem:[%s58]]
  %s60 = scalar_lea.smem %s0, 30
  %s61 = sld [smem:[%s60]]
  %s62 = scalar_lea.smem %s0, 31
  %s63 = sld [smem:[%s62]]
  %s64 = scalar_lea.smem %s0, 32
  %s65 = sld [smem:[%s64]]
  %s66 = scalar_lea.smem %s0, 33
  %s67 = sld [smem:[%s66]]
  %s68 = scalar_lea.smem %s0, 34
  %s69 = sld [smem:[%s68]]
  %s70 = sld [smem:[#allocation0]]
  $region169: #{tpu_custom_call.1} parent=0
    _
  %s72 = ssub.s32 1, %s70
  %s73 = scalar_select 0, %s72, %s70
  $region1: #{tpu_custom_call.1} parent=0
    #allocation2 [shape = 'u8[16384]{0}', space=vmem, size = 0x4000, scoped, tag = 'output window, operand 0']
    #allocation3 [shape = 's32[2]{0}', space=sflag, size = 0x8, scoped, tag = 'scoped memory for tpu_custom_call.1']
    %74 = vsyncpa [#allocation3], 0
    %s75 = scalar_lea.sflag [#allocation3], 1
    %76 = vsyncpa %s75, 0
    loop: start=0, step=1, limit=4
    $region2: #{tpu_custom_call.1} parent=1 // loop_pre_header
      _
    $region3: #{tpu_custom_call.1} parent=1 // loop_header
      %s78 = sphi 0, %s82
      %p79 = scmp.ge.s32.totalorder %s78, 4
      %s88 = sphi 0, %s90
      %s91 = sphi 0, %s88
      %s92 = sphi 0, %s91
      %s108 = sphi 0, %s92
      %s114 = sphi 0, %s116
      %s117 = sphi 0, %s114
      %s118 = sphi 0, %s117
      %s134 = sphi 0, %s118
      %s138 = sphi 0, %s138
      %s140 = sphi 0, %s138
      %s141 = sphi 0, %s140
      %s155 = sphi 0, %s141
      %s159 = sphi 0, %s159
      %s161 = sphi 0, %s159
      %s162 = sphi 0, %s161
      %s176 = sphi 0, %s162
      %s180 = sphi 0, %s180
      %s182 = sphi 0, %s180
      %s183 = sphi 0, %s182
      %s197 = sphi 0, %s183
      %s201 = sphi 0, %s201
      %s203 = sphi 0, %s201
      %s204 = sphi 0, %s203
      %s218 = sphi 0, %s204
      %s222 = sphi 0, %s222
      %s224 = sphi 0, %s222
      %s225 = sphi 0, %s224
      %s239 = sphi 0, %s225
      %s243 = sphi 0, %s243
      %s245 = sphi 0, %s243
      %s246 = sphi 0, %s245
      %s260 = sphi 0, %s246
      %s264 = sphi 0, %s264
      %s266 = sphi 0, %s264
      %s267 = sphi 0, %s266
      %s281 = sphi 0, %s267
      %s285 = sphi 0, %s285
      %s287 = sphi 0, %s285
      %s288 = sphi 0, %s287
      %s302 = sphi 0, %s288
      %s306 = sphi 0, %s306
      %s308 = sphi 0, %s306
      %s309 = sphi 0, %s308
      %s323 = sphi 0, %s309
      %s327 = sphi 0, %s327
      %s329 = sphi 0, %s327
      %s330 = sphi 0, %s329
      %s344 = sphi 0, %s330
      %s348 = sphi 0, %s348
      %s350 = sphi 0, %s348
      %s351 = sphi 0, %s350
      %s365 = sphi 0, %s351
      %s369 = sphi 0, %s369
      %s371 = sphi 0, %s369
      %s372 = sphi 0, %s371
      %s386 = sphi 0, %s372
      %s390 = sphi 0, %s390
      %s392 = sphi 0, %s390
      %s393 = sphi 0, %s392
      %s407 = sphi 0, %s393
      %s411 = sphi 0, %s411
      %s413 = sphi 0, %s411
      %s414 = sphi 0, %s413
      %s428 = sphi 0, %s414
      %s432 = sphi 0, %s432
      %s434 = sphi 0, %s432
      %s435 = sphi 0, %s434
      %s449 = sphi 0, %s435
      %s453 = sphi 0, %s453
      %s455 = sphi 0, %s453
      %s456 = sphi 0, %s455
      %s470 = sphi 0, %s456
      %s474 = sphi 0, %s474
      %s476 = sphi 0, %s474
      %s477 = sphi 0, %s476
      %s491 = sphi 0, %s477
      %s495 = sphi 0, %s495
      %s497 = sphi 0, %s495
      %s498 = sphi 0, %s497
      %s512 = sphi 0, %s498
      %s516 = sphi 0, %s516
      %s518 = sphi 0, %s516
      %s519 = sphi 0, %s518
      %s533 = sphi 0, %s519
      %s537 = sphi 0, %s537
      %s539 = sphi 0, %s537
      %s540 = sphi 0, %s539
      %s554 = sphi 0, %s540
      %s558 = sphi 0, %s558
      %s560 = sphi 0, %s558
      %s561 = sphi 0, %s560
      %s575 = sphi 0, %s561
      %s579 = sphi 0, %s579
      %s581 = sphi 0, %s579
      %s582 = sphi 0, %s581
      %s596 = sphi 0, %s582
      %s600 = sphi 0, %s600
      %s602 = sphi 0, %s600
      %s603 = sphi 0, %s602
      %s617 = sphi 0, %s603
      %s621 = sphi 0, %s621
      %s623 = sphi 0, %s621
      %s624 = sphi 0, %s623
      %s638 = sphi 0, %s624
      %s642 = sphi 0, %s642
      %s644 = sphi 0, %s642
      %s645 = sphi 0, %s644
      %s659 = sphi 0, %s645
      %s663 = sphi 0, %s663
      %s665 = sphi 0, %s663
      %s666 = sphi 0, %s665
      %s680 = sphi 0, %s666
      %s684 = sphi 0, %s684
      %s686 = sphi 0, %s684
      %s687 = sphi 0, %s686
      %s701 = sphi 0, %s687
      %s705 = sphi 0, %s705
      %s707 = sphi 0, %s705
      %s708 = sphi 0, %s707
      %s722 = sphi 0, %s708
      %s726 = sphi 0, %s726
      %s728 = sphi 0, %s726
      %s729 = sphi 0, %s728
      %s743 = sphi 0, %s729
      %s747 = sphi 0, %s747
      %s749 = sphi 0, %s747
      %s750 = sphi 0, %s749
      %s764 = sphi 0, %s750
      %s768 = sphi 0, %s768
      %s770 = sphi 0, %s768
      %s771 = sphi 0, %s770
      %s785 = sphi 0, %s771
      %s789 = sphi 0, %s789
      %s791 = sphi 0, %s789
      %s792 = sphi 0, %s791
      %s806 = sphi 0, %s792
      %s812 = sphi 0, %s814
      %s815 = sphi 0, %s812
      %s816 = sphi 0, %s815
      %s832 = sphi 0, %s816
    $region4: #{tpu_custom_call.1} parent=1 // loop_header_branch
      %81 = sbr.rel (%p79) target = $region8
    $region5: #{tpu_custom_call.1} parent=1 // loop_body
      %s83 = ssub.s32 %s78, 1
      %s84 = ssub.s32 %s78, 2
      %s85 = sadd.s32 %s78, 1
      %s86 = ssub.s32 %s78, %s85
      %p87 = scmp.eq.s32.totalorder %s86, 0
      %s89 = sadd.s32 %s88, 1
      %s90 = scalar_select %p87, %s88, %s89
      %p93 = pneg %p87
      %p94 = scmp.eq.s32.totalorder %s78, 1
      %p95 = por %p93, %p94
      %p96 = scmp.ne.s32.totalorder %s88, %s91
      %p97 = scmp.eq.s32.totalorder %s78, 0
      %p98 = por %p96, %p97
      %p99 = scmp.ne.s32.totalorder %s88, %s91
      %p100 = scmp.eq.s32.totalorder %s83, 1
      %p101 = por %p99, %p100
      %p102 = scmp.ne.s32.totalorder %s91, %s92
      %p103 = scmp.eq.s32.totalorder %s83, 0
      %p104 = por %p102, %p103
      %p105 = scmp.ne.s32.totalorder %s91, %s92
      %p106 = scmp.eq.s32.totalorder %s84, 1
      %p107 = por %p105, %p106
      %p109 = scmp.ne.s32.totalorder %s92, %s108
      %p110 = scmp.eq.s32.totalorder %s84, 0
      %p111 = por %p109, %p110
      %s112 = ssub.s32 %s78, %s85
      %p113 = scmp.eq.s32.totalorder %s112, 0
      %s115 = sadd.s32 %s114, 1
      %s116 = scalar_select %p113, %s114, %s115
      %p119 = pneg %p113
      %p120 = scmp.eq.s32.totalorder %s78, 1
      %p121 = por %p119, %p120
      %p122 = scmp.ne.s32.totalorder %s114, %s117
      %p123 = scmp.eq.s32.totalorder %s78, 0
      %p124 = por %p122, %p123
      %p125 = scmp.ne.s32.totalorder %s114, %s117
      %p126 = scmp.eq.s32.totalorder %s83, 1
      %p127 = por %p125, %p126
      %p128 = scmp.ne.s32.totalorder %s117, %s118
      %p129 = scmp.eq.s32.totalorder %s83, 0
      %p130 = por %p128, %p129
      %p131 = scmp.ne.s32.totalorder %s117, %s118
      %p132 = scmp.eq.s32.totalorder %s84, 1
      %p133 = por %p131, %p132
      %p135 = scmp.ne.s32.totalorder %s118, %s134
      %p136 = scmp.eq.s32.totalorder %s84, 0
      %p137 = por %p135, %p136
      %s139 = sadd.s32 %s138, 1
      %p142 = scmp.eq.s32.totalorder %s78, 1
      %p143 = scmp.ne.s32.totalorder %s138, %s140
      %p144 = scmp.eq.s32.totalorder %s78, 0
      %p145 = por %p143, %p144
      %p146 = scmp.ne.s32.totalorder %s138, %s140
      %p147 = scmp.eq.s32.totalorder %s83, 1
      %p148 = por %p146, %p147
      %p149 = scmp.ne.s32.totalorder %s140, %s141
      %p150 = scmp.eq.s32.totalorder %s83, 0
      %p151 = por %p149, %p150
      %p152 = scmp.ne.s32.totalorder %s140, %s141
      %p153 = scmp.eq.s32.totalorder %s84, 1
      %p154 = por %p152, %p153
      %p156 = scmp.ne.s32.totalorder %s141, %s155
      %p157 = scmp.eq.s32.totalorder %s84, 0
      %p158 = por %p156, %p157
      %s160 = sadd.s32 %s159, 1
      %p163 = scmp.eq.s32.totalorder %s78, 1
      %p164 = scmp.ne.s32.totalorder %s159, %s161
      %p165 = scmp.eq.s32.totalorder %s78, 0
      %p166 = por %p164, %p165
      %p167 = scmp.ne.s32.totalorder %s159, %s161
      %p168 = scmp.eq.s32.totalorder %s83, 1
      %p169 = por %p167, %p168
      %p170 = scmp.ne.s32.totalorder %s161, %s162
      %p171 = scmp.eq.s32.totalorder %s83, 0
      %p172 = por %p170, %p171
      %p173 = scmp.ne.s32.totalorder %s161, %s162
      %p174 = scmp.eq.s32.totalorder %s84, 1
      %p175 = por %p173, %p174
      %p177 = scmp.ne.s32.totalorder %s162, %s176
      %p178 = scmp.eq.s32.totalorder %s84, 0
      %p179 = por %p177, %p178
      %s181 = sadd.s32 %s180, 1
      %p184 = scmp.eq.s32.totalorder %s78, 1
      %p185 = scmp.ne.s32.totalorder %s180, %s182
      %p186 = scmp.eq.s32.totalorder %s78, 0
      %p187 = por %p185, %p186
      %p188 = scmp.ne.s32.totalorder %s180, %s182
      %p189 = scmp.eq.s32.totalorder %s83, 1
      %p190 = por %p188, %p189
      %p191 = scmp.ne.s32.totalorder %s182, %s183
      %p192 = scmp.eq.s32.totalorder %s83, 0
      %p193 = por %p191, %p192
      %p194 = scmp.ne.s32.totalorder %s182, %s183
      %p195 = scmp.eq.s32.totalorder %s84, 1
      %p196 = por %p194, %p195
      %p198 = scmp.ne.s32.totalorder %s183, %s197
      %p199 = scmp.eq.s32.totalorder %s84, 0
      %p200 = por %p198, %p199
      %s202 = sadd.s32 %s201, 1
      %p205 = scmp.eq.s32.totalorder %s78, 1
      %p206 = scmp.ne.s32.totalorder %s201, %s203
      %p207 = scmp.eq.s32.totalorder %s78, 0
      %p208 = por %p206, %p207
      %p209 = scmp.ne.s32.totalorder %s201, %s203
      %p210 = scmp.eq.s32.totalorder %s83, 1
      %p211 = por %p209, %p210
      %p212 = scmp.ne.s32.totalorder %s203, %s204
      %p213 = scmp.eq.s32.totalorder %s83, 0
      %p214 = por %p212, %p213
      %p215 = scmp.ne.s32.totalorder %s203, %s204
      %p216 = scmp.eq.s32.totalorder %s84, 1
      %p217 = por %p215, %p216
      %p219 = scmp.ne.s32.totalorder %s204, %s218
      %p220 = scmp.eq.s32.totalorder %s84, 0
      %p221 = por %p219, %p220
      %s223 = sadd.s32 %s222, 1
      %p226 = scmp.eq.s32.totalorder %s78, 1
      %p227 = scmp.ne.s32.totalorder %s222, %s224
      %p228 = scmp.eq.s32.totalorder %s78, 0
      %p229 = por %p227, %p228
      %p230 = scmp.ne.s32.totalorder %s222, %s224
      %p231 = scmp.eq.s32.totalorder %s83, 1
      %p232 = por %p230, %p231
      %p233 = scmp.ne.s32.totalorder %s224, %s225
      %p234 = scmp.eq.s32.totalorder %s83, 0
      %p235 = por %p233, %p234
      %p236 = scmp.ne.s32.totalorder %s224, %s225
      %p237 = scmp.eq.s32.totalorder %s84, 1
      %p238 = por %p236, %p237
      %p240 = scmp.ne.s32.totalorder %s225, %s239
      %p241 = scmp.eq.s32.totalorder %s84, 0
      %p242 = por %p240, %p241
      %s244 = sadd.s32 %s243, 1
      %p247 = scmp.eq.s32.totalorder %s78, 1
      %p248 = scmp.ne.s32.totalorder %s243, %s245
      %p249 = scmp.eq.s32.totalorder %s78, 0
      %p250 = por %p248, %p249
      %p251 = scmp.ne.s32.totalorder %s243, %s245
      %p252 = scmp.eq.s32.totalorder %s83, 1
      %p253 = por %p251, %p252
      %p254 = scmp.ne.s32.totalorder %s245, %s246
      %p255 = scmp.eq.s32.totalorder %s83, 0
      %p256 = por %p254, %p255
      %p257 = scmp.ne.s32.totalorder %s245, %s246
      %p258 = scmp.eq.s32.totalorder %s84, 1
      %p259 = por %p257, %p258
      %p261 = scmp.ne.s32.totalorder %s246, %s260
      %p262 = scmp.eq.s32.totalorder %s84, 0
      %p263 = por %p261, %p262
      %s265 = sadd.s32 %s264, 1
      %p268 = scmp.eq.s32.totalorder %s78, 1
      %p269 = scmp.ne.s32.totalorder %s264, %s266
      %p270 = scmp.eq.s32.totalorder %s78, 0
      %p271 = por %p269, %p270
      %p272 = scmp.ne.s32.totalorder %s264, %s266
      %p273 = scmp.eq.s32.totalorder %s83, 1
      %p274 = por %p272, %p273
      %p275 = scmp.ne.s32.totalorder %s266, %s267
      %p276 = scmp.eq.s32.totalorder %s83, 0
      %p277 = por %p275, %p276
      %p278 = scmp.ne.s32.totalorder %s266, %s267
      %p279 = scmp.eq.s32.totalorder %s84, 1
      %p280 = por %p278, %p279
      %p282 = scmp.ne.s32.totalorder %s267, %s281
      %p283 = scmp.eq.s32.totalorder %s84, 0
      %p284 = por %p282, %p283
      %s286 = sadd.s32 %s285, 1
      %p289 = scmp.eq.s32.totalorder %s78, 1
      %p290 = scmp.ne.s32.totalorder %s285, %s287
      %p291 = scmp.eq.s32.totalorder %s78, 0
      %p292 = por %p290, %p291
      %p293 = scmp.ne.s32.totalorder %s285, %s287
      %p294 = scmp.eq.s32.totalorder %s83, 1
      %p295 = por %p293, %p294
      %p296 = scmp.ne.s32.totalorder %s287, %s288
      %p297 = scmp.eq.s32.totalorder %s83, 0
      %p298 = por %p296, %p297
      %p299 = scmp.ne.s32.totalorder %s287, %s288
      %p300 = scmp.eq.s32.totalorder %s84, 1
      %p301 = por %p299, %p300
      %p303 = scmp.ne.s32.totalorder %s288, %s302
      %p304 = scmp.eq.s32.totalorder %s84, 0
      %p305 = por %p303, %p304
      %s307 = sadd.s32 %s306, 1
      %p310 = scmp.eq.s32.totalorder %s78, 1
      %p311 = scmp.ne.s32.totalorder %s306, %s308
      %p312 = scmp.eq.s32.totalorder %s78, 0
      %p313 = por %p311, %p312
      %p314 = scmp.ne.s32.totalorder %s306, %s308
      %p315 = scmp.eq.s32.totalorder %s83, 1
      %p316 = por %p314, %p315
      %p317 = scmp.ne.s32.totalorder %s308, %s309
      %p318 = scmp.eq.s32.totalorder %s83, 0
      %p319 = por %p317, %p318
      %p320 = scmp.ne.s32.totalorder %s308, %s309
      %p321 = scmp.eq.s32.totalorder %s84, 1
      %p322 = por %p320, %p321
      %p324 = scmp.ne.s32.totalorder %s309, %s323
      %p325 = scmp.eq.s32.totalorder %s84, 0
      %p326 = por %p324, %p325
      %s328 = sadd.s32 %s327, 1
      %p331 = scmp.eq.s32.totalorder %s78, 1
      %p332 = scmp.ne.s32.totalorder %s327, %s329
      %p333 = scmp.eq.s32.totalorder %s78, 0
      %p334 = por %p332, %p333
      %p335 = scmp.ne.s32.totalorder %s327, %s329
      %p336 = scmp.eq.s32.totalorder %s83, 1
      %p337 = por %p335, %p336
      %p338 = scmp.ne.s32.totalorder %s329, %s330
      %p339 = scmp.eq.s32.totalorder %s83, 0
      %p340 = por %p338, %p339
      %p341 = scmp.ne.s32.totalorder %s329, %s330
      %p342 = scmp.eq.s32.totalorder %s84, 1
      %p343 = por %p341, %p342
      %p345 = scmp.ne.s32.totalorder %s330, %s344
      %p346 = scmp.eq.s32.totalorder %s84, 0
      %p347 = por %p345, %p346
      %s349 = sadd.s32 %s348, 1
      %p352 = scmp.eq.s32.totalorder %s78, 1
      %p353 = scmp.ne.s32.totalorder %s348, %s350
      %p354 = scmp.eq.s32.totalorder %s78, 0
      %p355 = por %p353, %p354
      %p356 = scmp.ne.s32.totalorder %s348, %s350
      %p357 = scmp.eq.s32.totalorder %s83, 1
      %p358 = por %p356, %p357
      %p359 = scmp.ne.s32.totalorder %s350, %s351
      %p360 = scmp.eq.s32.totalorder %s83, 0
      %p361 = por %p359, %p360
      %p362 = scmp.ne.s32.totalorder %s350, %s351
      %p363 = scmp.eq.s32.totalorder %s84, 1
      %p364 = por %p362, %p363
      %p366 = scmp.ne.s32.totalorder %s351, %s365
      %p367 = scmp.eq.s32.totalorder %s84, 0
      %p368 = por %p366, %p367
      %s370 = sadd.s32 %s369, 1
      %p373 = scmp.eq.s32.totalorder %s78, 1
      %p374 = scmp.ne.s32.totalorder %s369, %s371
      %p375 = scmp.eq.s32.totalorder %s78, 0
      %p376 = por %p374, %p375
      %p377 = scmp.ne.s32.totalorder %s369, %s371
      %p378 = scmp.eq.s32.totalorder %s83, 1
      %p379 = por %p377, %p378
      %p380 = scmp.ne.s32.totalorder %s371, %s372
      %p381 = scmp.eq.s32.totalorder %s83, 0
      %p382 = por %p380, %p381
      %p383 = scmp.ne.s32.totalorder %s371, %s372
      %p384 = scmp.eq.s32.totalorder %s84, 1
      %p385 = por %p383, %p384
      %p387 = scmp.ne.s32.totalorder %s372, %s386
      %p388 = scmp.eq.s32.totalorder %s84, 0
      %p389 = por %p387, %p388
      %s391 = sadd.s32 %s390, 1
      %p394 = scmp.eq.s32.totalorder %s78, 1
      %p395 = scmp.ne.s32.totalorder %s390, %s392
      %p396 = scmp.eq.s32.totalorder %s78, 0
      %p397 = por %p395, %p396
      %p398 = scmp.ne.s32.totalorder %s390, %s392
      %p399 = scmp.eq.s32.totalorder %s83, 1
      %p400 = por %p398, %p399
      %p401 = scmp.ne.s32.totalorder %s392, %s393
      %p402 = scmp.eq.s32.totalorder %s83, 0
      %p403 = por %p401, %p402
      %p404 = scmp.ne.s32.totalorder %s392, %s393
      %p405 = scmp.eq.s32.totalorder %s84, 1
      %p406 = por %p404, %p405
      %p408 = scmp.ne.s32.totalorder %s393, %s407
      %p409 = scmp.eq.s32.totalorder %s84, 0
      %p410 = por %p408, %p409
      %s412 = sadd.s32 %s411, 1
      %p415 = scmp.eq.s32.totalorder %s78, 1
      %p416 = scmp.ne.s32.totalorder %s411, %s413
      %p417 = scmp.eq.s32.totalorder %s78, 0
      %p418 = por %p416, %p417
      %p419 = scmp.ne.s32.totalorder %s411, %s413
      %p420 = scmp.eq.s32.totalorder %s83, 1
      %p421 = por %p419, %p420
      %p422 = scmp.ne.s32.totalorder %s413, %s414
      %p423 = scmp.eq.s32.totalorder %s83, 0
      %p424 = por %p422, %p423
      %p425 = scmp.ne.s32.totalorder %s413, %s414
      %p426 = scmp.eq.s32.totalorder %s84, 1
      %p427 = por %p425, %p426
      %p429 = scmp.ne.s32.totalorder %s414, %s428
      %p430 = scmp.eq.s32.totalorder %s84, 0
      %p431 = por %p429, %p430
      %s433 = sadd.s32 %s432, 1
      %p436 = scmp.eq.s32.totalorder %s78, 1
      %p437 = scmp.ne.s32.totalorder %s432, %s434
      %p438 = scmp.eq.s32.totalorder %s78, 0
      %p439 = por %p437, %p438
      %p440 = scmp.ne.s32.totalorder %s432, %s434
      %p441 = scmp.eq.s32.totalorder %s83, 1
      %p442 = por %p440, %p441
      %p443 = scmp.ne.s32.totalorder %s434, %s435
      %p444 = scmp.eq.s32.totalorder %s83, 0
      %p445 = por %p443, %p444
      %p446 = scmp.ne.s32.totalorder %s434, %s435
      %p447 = scmp.eq.s32.totalorder %s84, 1
      %p448 = por %p446, %p447
      %p450 = scmp.ne.s32.totalorder %s435, %s449
      %p451 = scmp.eq.s32.totalorder %s84, 0
      %p452 = por %p450, %p451
      %s454 = sadd.s32 %s453, 1
      %p457 = scmp.eq.s32.totalorder %s78, 1
      %p458 = scmp.ne.s32.totalorder %s453, %s455
      %p459 = scmp.eq.s32.totalorder %s78, 0
      %p460 = por %p458, %p459
      %p461 = scmp.ne.s32.totalorder %s453, %s455
      %p462 = scmp.eq.s32.totalorder %s83, 1
      %p463 = por %p461, %p462
      %p464 = scmp.ne.s32.totalorder %s455, %s456
      %p465 = scmp.eq.s32.totalorder %s83, 0
      %p466 = por %p464, %p465
      %p467 = scmp.ne.s32.totalorder %s455, %s456
      %p468 = scmp.eq.s32.totalorder %s84, 1
      %p469 = por %p467, %p468
      %p471 = scmp.ne.s32.totalorder %s456, %s470
      %p472 = scmp.eq.s32.totalorder %s84, 0
      %p473 = por %p471, %p472
      %s475 = sadd.s32 %s474, 1
      %p478 = scmp.eq.s32.totalorder %s78, 1
      %p479 = scmp.ne.s32.totalorder %s474, %s476
      %p480 = scmp.eq.s32.totalorder %s78, 0
      %p481 = por %p479, %p480
      %p482 = scmp.ne.s32.totalorder %s474, %s476
      %p483 = scmp.eq.s32.totalorder %s83, 1
      %p484 = por %p482, %p483
      %p485 = scmp.ne.s32.totalorder %s476, %s477
      %p486 = scmp.eq.s32.totalorder %s83, 0
      %p487 = por %p485, %p486
      %p488 = scmp.ne.s32.totalorder %s476, %s477
      %p489 = scmp.eq.s32.totalorder %s84, 1
      %p490 = por %p488, %p489
      %p492 = scmp.ne.s32.totalorder %s477, %s491
      %p493 = scmp.eq.s32.totalorder %s84, 0
      %p494 = por %p492, %p493
      %s496 = sadd.s32 %s495, 1
      %p499 = scmp.eq.s32.totalorder %s78, 1
      %p500 = scmp.ne.s32.totalorder %s495, %s497
      %p501 = scmp.eq.s32.totalorder %s78, 0
      %p502 = por %p500, %p501
      %p503 = scmp.ne.s32.totalorder %s495, %s497
      %p504 = scmp.eq.s32.totalorder %s83, 1
      %p505 = por %p503, %p504
      %p506 = scmp.ne.s32.totalorder %s497, %s498
      %p507 = scmp.eq.s32.totalorder %s83, 0
      %p508 = por %p506, %p507
      %p509 = scmp.ne.s32.totalorder %s497, %s498
      %p510 = scmp.eq.s32.totalorder %s84, 1
      %p511 = por %p509, %p510
      %p513 = scmp.ne.s32.totalorder %s498, %s512
      %p514 = scmp.eq.s32.totalorder %s84, 0
      %p515 = por %p513, %p514
      %s517 = sadd.s32 %s516, 1
      %p520 = scmp.eq.s32.totalorder %s78, 1
      %p521 = scmp.ne.s32.totalorder %s516, %s518
      %p522 = scmp.eq.s32.totalorder %s78, 0
      %p523 = por %p521, %p522
      %p524 = scmp.ne.s32.totalorder %s516, %s518
      %p525 = scmp.eq.s32.totalorder %s83, 1
      %p526 = por %p524, %p525
      %p527 = scmp.ne.s32.totalorder %s518, %s519
      %p528 = scmp.eq.s32.totalorder %s83, 0
      %p529 = por %p527, %p528
      %p530 = scmp.ne.s32.totalorder %s518, %s519
      %p531 = scmp.eq.s32.totalorder %s84, 1
      %p532 = por %p530, %p531
      %p534 = scmp.ne.s32.totalorder %s519, %s533
      %p535 = scmp.eq.s32.totalorder %s84, 0
      %p536 = por %p534, %p535
      %s538 = sadd.s32 %s537, 1
      %p541 = scmp.eq.s32.totalorder %s78, 1
      %p542 = scmp.ne.s32.totalorder %s537, %s539
      %p543 = scmp.eq.s32.totalorder %s78, 0
      %p544 = por %p542, %p543
      %p545 = scmp.ne.s32.totalorder %s537, %s539
      %p546 = scmp.eq.s32.totalorder %s83, 1
      %p547 = por %p545, %p546
      %p548 = scmp.ne.s32.totalorder %s539, %s540
      %p549 = scmp.eq.s32.totalorder %s83, 0
      %p550 = por %p548, %p549
      %p551 = scmp.ne.s32.totalorder %s539, %s540
      %p552 = scmp.eq.s32.totalorder %s84, 1
      %p553 = por %p551, %p552
      %p555 = scmp.ne.s32.totalorder %s540, %s554
      %p556 = scmp.eq.s32.totalorder %s84, 0
      %p557 = por %p555, %p556
      %s559 = sadd.s32 %s558, 1
      %p562 = scmp.eq.s32.totalorder %s78, 1
      %p563 = scmp.ne.s32.totalorder %s558, %s560
      %p564 = scmp.eq.s32.totalorder %s78, 0
      %p565 = por %p563, %p564
      %p566 = scmp.ne.s32.totalorder %s558, %s560
      %p567 = scmp.eq.s32.totalorder %s83, 1
      %p568 = por %p566, %p567
      %p569 = scmp.ne.s32.totalorder %s560, %s561
      %p570 = scmp.eq.s32.totalorder %s83, 0
      %p571 = por %p569, %p570
      %p572 = scmp.ne.s32.totalorder %s560, %s561
      %p573 = scmp.eq.s32.totalorder %s84, 1
      %p574 = por %p572, %p573
      %p576 = scmp.ne.s32.totalorder %s561, %s575
      %p577 = scmp.eq.s32.totalorder %s84, 0
      %p578 = por %p576, %p577
      %s580 = sadd.s32 %s579, 1
      %p583 = scmp.eq.s32.totalorder %s78, 1
      %p584 = scmp.ne.s32.totalorder %s579, %s581
      %p585 = scmp.eq.s32.totalorder %s78, 0
      %p586 = por %p584, %p585
      %p587 = scmp.ne.s32.totalorder %s579, %s581
      %p588 = scmp.eq.s32.totalorder %s83, 1
      %p589 = por %p587, %p588
      %p590 = scmp.ne.s32.totalorder %s581, %s582
      %p591 = scmp.eq.s32.totalorder %s83, 0
      %p592 = por %p590, %p591
      %p593 = scmp.ne.s32.totalorder %s581, %s582
      %p594 = scmp.eq.s32.totalorder %s84, 1
      %p595 = por %p593, %p594
      %p597 = scmp.ne.s32.totalorder %s582, %s596
      %p598 = scmp.eq.s32.totalorder %s84, 0
      %p599 = por %p597, %p598
      %s601 = sadd.s32 %s600, 1
      %p604 = scmp.eq.s32.totalorder %s78, 1
      %p605 = scmp.ne.s32.totalorder %s600, %s602
      %p606 = scmp.eq.s32.totalorder %s78, 0
      %p607 = por %p605, %p606
      %p608 = scmp.ne.s32.totalorder %s600, %s602
      %p609 = scmp.eq.s32.totalorder %s83, 1
      %p610 = por %p608, %p609
      %p611 = scmp.ne.s32.totalorder %s602, %s603
      %p612 = scmp.eq.s32.totalorder %s83, 0
      %p613 = por %p611, %p612
      %p614 = scmp.ne.s32.totalorder %s602, %s603
      %p615 = scmp.eq.s32.totalorder %s84, 1
      %p616 = por %p614, %p615
      %p618 = scmp.ne.s32.totalorder %s603, %s617
      %p619 = scmp.eq.s32.totalorder %s84, 0
      %p620 = por %p618, %p619
      %s622 = sadd.s32 %s621, 1
      %p625 = scmp.eq.s32.totalorder %s78, 1
      %p626 = scmp.ne.s32.totalorder %s621, %s623
      %p627 = scmp.eq.s32.totalorder %s78, 0
      %p628 = por %p626, %p627
      %p629 = scmp.ne.s32.totalorder %s621, %s623
      %p630 = scmp.eq.s32.totalorder %s83, 1
      %p631 = por %p629, %p630
      %p632 = scmp.ne.s32.totalorder %s623, %s624
      %p633 = scmp.eq.s32.totalorder %s83, 0
      %p634 = por %p632, %p633
      %p635 = scmp.ne.s32.totalorder %s623, %s624
      %p636 = scmp.eq.s32.totalorder %s84, 1
      %p637 = por %p635, %p636
      %p639 = scmp.ne.s32.totalorder %s624, %s638
      %p640 = scmp.eq.s32.totalorder %s84, 0
      %p641 = por %p639, %p640
      %s643 = sadd.s32 %s642, 1
      %p646 = scmp.eq.s32.totalorder %s78, 1
      %p647 = scmp.ne.s32.totalorder %s642, %s644
      %p648 = scmp.eq.s32.totalorder %s78, 0
      %p649 = por %p647, %p648
      %p650 = scmp.ne.s32.totalorder %s642, %s644
      %p651 = scmp.eq.s32.totalorder %s83, 1
      %p652 = por %p650, %p651
      %p653 = scmp.ne.s32.totalorder %s644, %s645
      %p654 = scmp.eq.s32.totalorder %s83, 0
      %p655 = por %p653, %p654
      %p656 = scmp.ne.s32.totalorder %s644, %s645
      %p657 = scmp.eq.s32.totalorder %s84, 1
      %p658 = por %p656, %p657
      %p660 = scmp.ne.s32.totalorder %s645, %s659
      %p661 = scmp.eq.s32.totalorder %s84, 0
      %p662 = por %p660, %p661
      %s664 = sadd.s32 %s663, 1
      %p667 = scmp.eq.s32.totalorder %s78, 1
      %p668 = scmp.ne.s32.totalorder %s663, %s665
      %p669 = scmp.eq.s32.totalorder %s78, 0
      %p670 = por %p668, %p669
      %p671 = scmp.ne.s32.totalorder %s663, %s665
      %p672 = scmp.eq.s32.totalorder %s83, 1
      %p673 = por %p671, %p672
      %p674 = scmp.ne.s32.totalorder %s665, %s666
      %p675 = scmp.eq.s32.totalorder %s83, 0
      %p676 = por %p674, %p675
      %p677 = scmp.ne.s32.totalorder %s665, %s666
      %p678 = scmp.eq.s32.totalorder %s84, 1
      %p679 = por %p677, %p678
      %p681 = scmp.ne.s32.totalorder %s666, %s680
      %p682 = scmp.eq.s32.totalorder %s84, 0
      %p683 = por %p681, %p682
      %s685 = sadd.s32 %s684, 1
      %p688 = scmp.eq.s32.totalorder %s78, 1
      %p689 = scmp.ne.s32.totalorder %s684, %s686
      %p690 = scmp.eq.s32.totalorder %s78, 0
      %p691 = por %p689, %p690
      %p692 = scmp.ne.s32.totalorder %s684, %s686
      %p693 = scmp.eq.s32.totalorder %s83, 1
      %p694 = por %p692, %p693
      %p695 = scmp.ne.s32.totalorder %s686, %s687
      %p696 = scmp.eq.s32.totalorder %s83, 0
      %p697 = por %p695, %p696
      %p698 = scmp.ne.s32.totalorder %s686, %s687
      %p699 = scmp.eq.s32.totalorder %s84, 1
      %p700 = por %p698, %p699
      %p702 = scmp.ne.s32.totalorder %s687, %s701
      %p703 = scmp.eq.s32.totalorder %s84, 0
      %p704 = por %p702, %p703
      %s706 = sadd.s32 %s705, 1
      %p709 = scmp.eq.s32.totalorder %s78, 1
      %p710 = scmp.ne.s32.totalorder %s705, %s707
      %p711 = scmp.eq.s32.totalorder %s78, 0
      %p712 = por %p710, %p711
      %p713 = scmp.ne.s32.totalorder %s705, %s707
      %p714 = scmp.eq.s32.totalorder %s83, 1
      %p715 = por %p713, %p714
      %p716 = scmp.ne.s32.totalorder %s707, %s708
      %p717 = scmp.eq.s32.totalorder %s83, 0
      %p718 = por %p716, %p717
      %p719 = scmp.ne.s32.totalorder %s707, %s708
      %p720 = scmp.eq.s32.totalorder %s84, 1
      %p721 = por %p719, %p720
      %p723 = scmp.ne.s32.totalorder %s708, %s722
      %p724 = scmp.eq.s32.totalorder %s84, 0
      %p725 = por %p723, %p724
      %s727 = sadd.s32 %s726, 1
      %p730 = scmp.eq.s32.totalorder %s78, 1
      %p731 = scmp.ne.s32.totalorder %s726, %s728
      %p732 = scmp.eq.s32.totalorder %s78, 0
      %p733 = por %p731, %p732
      %p734 = scmp.ne.s32.totalorder %s726, %s728
      %p735 = scmp.eq.s32.totalorder %s83, 1
      %p736 = por %p734, %p735
      %p737 = scmp.ne.s32.totalorder %s728, %s729
      %p738 = scmp.eq.s32.totalorder %s83, 0
      %p739 = por %p737, %p738
      %p740 = scmp.ne.s32.totalorder %s728, %s729
      %p741 = scmp.eq.s32.totalorder %s84, 1
      %p742 = por %p740, %p741
      %p744 = scmp.ne.s32.totalorder %s729, %s743
      %p745 = scmp.eq.s32.totalorder %s84, 0
      %p746 = por %p744, %p745
      %s748 = sadd.s32 %s747, 1
      %p751 = scmp.eq.s32.totalorder %s78, 1
      %p752 = scmp.ne.s32.totalorder %s747, %s749
      %p753 = scmp.eq.s32.totalorder %s78, 0
      %p754 = por %p752, %p753
      %p755 = scmp.ne.s32.totalorder %s747, %s749
      %p756 = scmp.eq.s32.totalorder %s83, 1
      %p757 = por %p755, %p756
      %p758 = scmp.ne.s32.totalorder %s749, %s750
      %p759 = scmp.eq.s32.totalorder %s83, 0
      %p760 = por %p758, %p759
      %p761 = scmp.ne.s32.totalorder %s749, %s750
      %p762 = scmp.eq.s32.totalorder %s84, 1
      %p763 = por %p761, %p762
      %p765 = scmp.ne.s32.totalorder %s750, %s764
      %p766 = scmp.eq.s32.totalorder %s84, 0
      %p767 = por %p765, %p766
      %s769 = sadd.s32 %s768, 1
      %p772 = scmp.eq.s32.totalorder %s78, 1
      %p773 = scmp.ne.s32.totalorder %s768, %s770
      %p774 = scmp.eq.s32.totalorder %s78, 0
      %p775 = por %p773, %p774
      %p776 = scmp.ne.s32.totalorder %s768, %s770
      %p777 = scmp.eq.s32.totalorder %s83, 1
      %p778 = por %p776, %p777
      %p779 = scmp.ne.s32.totalorder %s770, %s771
      %p780 = scmp.eq.s32.totalorder %s83, 0
      %p781 = por %p779, %p780
      %p782 = scmp.ne.s32.totalorder %s770, %s771
      %p783 = scmp.eq.s32.totalorder %s84, 1
      %p784 = por %p782, %p783
      %p786 = scmp.ne.s32.totalorder %s771, %s785
      %p787 = scmp.eq.s32.totalorder %s84, 0
      %p788 = por %p786, %p787
      %s790 = sadd.s32 %s789, 1
      %p793 = scmp.eq.s32.totalorder %s78, 1
      %p794 = scmp.ne.s32.totalorder %s789, %s791
      %p795 = scmp.eq.s32.totalorder %s78, 0
      %p796 = por %p794, %p795
      %p797 = scmp.ne.s32.totalorder %s789, %s791
      %p798 = scmp.eq.s32.totalorder %s83, 1
      %p799 = por %p797, %p798
      %p800 = scmp.ne.s32.totalorder %s791, %s792
      %p801 = scmp.eq.s32.totalorder %s83, 0
      %p802 = por %p800, %p801
      %p803 = scmp.ne.s32.totalorder %s791, %s792
      %p804 = scmp.eq.s32.totalorder %s84, 1
      %p805 = por %p803, %p804
      %p807 = scmp.ne.s32.totalorder %s792, %s806
      %p808 = scmp.eq.s32.totalorder %s84, 0
      %p809 = por %p807, %p808
      %s810 = ssub.s32 %s78, %s85
      %p811 = scmp.eq.s32.totalorder %s810, 0
      %s813 = sadd.s32 %s812, 1
      %s814 = scalar_select %p811, %s812, %s813
      %p817 = pneg %p811
      %p818 = scmp.eq.s32.totalorder %s78, 1
      %p819 = por %p817, %p818
      %p820 = scmp.ne.s32.totalorder %s812, %s815
      %p821 = scmp.eq.s32.totalorder %s78, 0
      %p822 = por %p820, %p821
      %p823 = scmp.ne.s32.totalorder %s812, %s815
      %p824 = scmp.eq.s32.totalorder %s83, 1
      %p825 = por %p823, %p824
      %p826 = scmp.ne.s32.totalorder %s815, %s816
      %p827 = scmp.eq.s32.totalorder %s83, 0
      %p828 = por %p826, %p827
      %p829 = scmp.ne.s32.totalorder %s815, %s816
      %p830 = scmp.eq.s32.totalorder %s84, 1
      %p831 = por %p829, %p830
      %p833 = scmp.ne.s32.totalorder %s816, %s832
      %p834 = scmp.eq.s32.totalorder %s84, 0
      %p835 = por %p833, %p834
      %p836 = scmp.le.s32.totalorder 1, %s78
      %p837 = scmp.lt.s32.totalorder %s78, 3
      %p838 = pnand %p836, %p837
      %p839 = pneg %p838
      // Predicated region
      $region9: #{tpu_custom_call.1} parent=5 // pred_check
        _
      $region10: #{tpu_custom_call.1} parent=5 // pred_check_branch
        %841 = sbr.rel (%p838) target = $region12
      $region11: #{tpu_custom_call.1} parent=5 // pred_region
        %s842 = ssub.s32 %s78, 1
        // Predicated region
        $region13: #{tpu_custom_call.1} parent=11 // pred_check
          %p843 = pneg %p151
        $region14: #{tpu_custom_call.1} parent=11 // pred_check_branch
          %845 = sbr.rel (%p843) target = $region16
        $region15: #{tpu_custom_call.1} parent=11 // pred_region
          _
        $region16: #{tpu_custom_call.1} parent=11 // pred_fallthru
          _
        // Predicated region
        $region17: #{tpu_custom_call.1} parent=11 // pred_check
          %p846 = pneg %p172
        $region18: #{tpu_custom_call.1} parent=11 // pred_check_branch
          %848 = sbr.rel (%p846) target = $region20
        $region19: #{tpu_custom_call.1} parent=11 // pred_region
          _
        $region20: #{tpu_custom_call.1} parent=11 // pred_fallthru
          _
        // Predicated region
        $region21: #{tpu_custom_call.1} parent=11 // pred_check
          %p849 = pneg %p193
        $region22: #{tpu_custom_call.1} parent=11 // pred_check_branch
          %851 = sbr.rel (%p849) target = $region24
        $region23: #{tpu_custom_call.1} parent=11 // pred_region
          _
        $region24: #{tpu_custom_call.1} parent=11 // pred_fallthru
          _
        // Predicated region
        $region25: #{tpu_custom_call.1} parent=11 // pred_check
          %p852 = pneg %p214
        $region26: #{tpu_custom_call.1} parent=11 // pred_check_branch
          %854 = sbr.rel (%p852) target = $region28
        $region27: #{tpu_custom_call.1} parent=11 // pred_region
          _
        $region28: #{tpu_custom_call.1} parent=11 // pred_fallthru
          _
        // Predicated region
        $region29: #{tpu_custom_call.1} parent=11 // pred_check
          %p855 = pneg %p235
        $region30: #{tpu_custom_call.1} parent=11 // pred_check_branch
          %857 = sbr.rel (%p855) target = $region32
        $region31: #{tpu_custom_call.1} parent=11 // pred_region
          _
        $region32: #{tpu_custom_call.1} parent=11 // pred_fallthru
          _
        // Predicated region
        $region33: #{tpu_custom_call.1} parent=11 // pred_check
          %p858 = pneg %p256
        $region34: #{tpu_custom_call.1} parent=11 // pred_check_branch
          %860 = sbr.rel (%p858) target = $region36
        $region35: #{tpu_custom_call.1} parent=11 // pred_region
          _
        $region36: #{tpu_custom_call.1} parent=11 // pred_fallthru
          _
        // Predicated region
        $region37: #{tpu_custom_call.1} parent=11 // pred_check
          %p861 = pneg %p277
        $region38: #{tpu_custom_call.1} parent=11 // pred_check_branch
          %863 = sbr.rel (%p861) target = $region40
        $region39: #{tpu_custom_call.1} parent=11 // pred_region
          _
        $region40: #{tpu_custom_call.1} parent=11 // pred_fallthru
          _
        // Predicated region
        $region41: #{tpu_custom_call.1} parent=11 // pred_check
          %p864 = pneg %p298
        $region42: #{tpu_custom_call.1} parent=11 // pred_check_branch
          %866 = sbr.rel (%p864) target = $region44
        $region43: #{tpu_custom_call.1} parent=11 // pred_region
          _
        $region44: #{tpu_custom_call.1} parent=11 // pred_fallthru
          _
        // Predicated region
        $region45: #{tpu_custom_call.1} parent=11 // pred_check
          %p867 = pneg %p319
        $region46: #{tpu_custom_call.1} parent=11 // pred_check_branch
          %869 = sbr.rel (%p867) target = $region48
        $region47: #{tpu_custom_call.1} parent=11 // pred_region
          _
        $region48: #{tpu_custom_call.1} parent=11 // pred_fallthru
          _
        // Predicated region
        $region49: #{tpu_custom_call.1} parent=11 // pred_check
          %p870 = pneg %p340
        $region50: #{tpu_custom_call.1} parent=11 // pred_check_branch
          %872 = sbr.rel (%p870) target = $region52
        $region51: #{tpu_custom_call.1} parent=11 // pred_region
          _
        $region52: #{tpu_custom_call.1} parent=11 // pred_fallthru
          _
        // Predicated region
        $region53: #{tpu_custom_call.1} parent=11 // pred_check
          %p873 = pneg %p361
        $region54: #{tpu_custom_call.1} parent=11 // pred_check_branch
          %875 = sbr.rel (%p873) target = $region56
        $region55: #{tpu_custom_call.1} parent=11 // pred_region
          _
        $region56: #{tpu_custom_call.1} parent=11 // pred_fallthru
          _
        // Predicated region
        $region57: #{tpu_custom_call.1} parent=11 // pred_check
          %p876 = pneg %p382
        $region58: #{tpu_custom_call.1} parent=11 // pred_check_branch
          %878 = sbr.rel (%p876) target = $region60
        $region59: #{tpu_custom_call.1} parent=11 // pred_region
          _
        $region60: #{tpu_custom_call.1} parent=11 // pred_fallthru
          _
        // Predicated region
        $region61: #{tpu_custom_call.1} parent=11 // pred_check
          %p879 = pneg %p403
        $region62: #{tpu_custom_call.1} parent=11 // pred_check_branch
          %881 = sbr.rel (%p879) target = $region64
        $region63: #{tpu_custom_call.1} parent=11 // pred_region
          _
        $region64: #{tpu_custom_call.1} parent=11 // pred_fallthru
          _
        // Predicated region
        $region65: #{tpu_custom_call.1} parent=11 // pred_check
          %p882 = pneg %p424
        $region66: #{tpu_custom_call.1} parent=11 // pred_check_branch
          %884 = sbr.rel (%p882) target = $region68
        $region67: #{tpu_custom_call.1} parent=11 // pred_region
          _
        $region68: #{tpu_custom_call.1} parent=11 // pred_fallthru
          _
        // Predicated region
        $region69: #{tpu_custom_call.1} parent=11 // pred_check
          %p885 = pneg %p445
        $region70: #{tpu_custom_call.1} parent=11 // pred_check_branch
          %887 = sbr.rel (%p885) target = $region72
        $region71: #{tpu_custom_call.1} parent=11 // pred_region
          _
        $region72: #{tpu_custom_call.1} parent=11 // pred_fallthru
          _
        // Predicated region
        $region73: #{tpu_custom_call.1} parent=11 // pred_check
          %p888 = pneg %p466
        $region74: #{tpu_custom_call.1} parent=11 // pred_check_branch
          %890 = sbr.rel (%p888) target = $region76
        $region75: #{tpu_custom_call.1} parent=11 // pred_region
          _
        $region76: #{tpu_custom_call.1} parent=11 // pred_fallthru
          _
        // Predicated region
        $region77: #{tpu_custom_call.1} parent=11 // pred_check
          %p891 = pneg %p487
        $region78: #{tpu_custom_call.1} parent=11 // pred_check_branch
          %893 = sbr.rel (%p891) target = $region80
        $region79: #{tpu_custom_call.1} parent=11 // pred_region
          _
        $region80: #{tpu_custom_call.1} parent=11 // pred_fallthru
          _
        // Predicated region
        $region81: #{tpu_custom_call.1} parent=11 // pred_check
          %p894 = pneg %p508
        $region82: #{tpu_custom_call.1} parent=11 // pred_check_branch
          %896 = sbr.rel (%p894) target = $region84
        $region83: #{tpu_custom_call.1} parent=11 // pred_region
          _
        $region84: #{tpu_custom_call.1} parent=11 // pred_fallthru
          _
        // Predicated region
        $region85: #{tpu_custom_call.1} parent=11 // pred_check
          %p897 = pneg %p529
        $region86: #{tpu_custom_call.1} parent=11 // pred_check_branch
          %899 = sbr.rel (%p897) target = $region88
        $region87: #{tpu_custom_call.1} parent=11 // pred_region
          _
        $region88: #{tpu_custom_call.1} parent=11 // pred_fallthru
          _
        // Predicated region
        $region89: #{tpu_custom_call.1} parent=11 // pred_check
          %p900 = pneg %p550
        $region90: #{tpu_custom_call.1} parent=11 // pred_check_branch
          %902 = sbr.rel (%p900) target = $region92
        $region91: #{tpu_custom_call.1} parent=11 // pred_region
          _
        $region92: #{tpu_custom_call.1} parent=11 // pred_fallthru
          _
        // Predicated region
        $region93: #{tpu_custom_call.1} parent=11 // pred_check
          %p903 = pneg %p571
        $region94: #{tpu_custom_call.1} parent=11 // pred_check_branch
          %905 = sbr.rel (%p903) target = $region96
        $region95: #{tpu_custom_call.1} parent=11 // pred_region
          _
        $region96: #{tpu_custom_call.1} parent=11 // pred_fallthru
          _
        // Predicated region
        $region97: #{tpu_custom_call.1} parent=11 // pred_check
          %p906 = pneg %p592
        $region98: #{tpu_custom_call.1} parent=11 // pred_check_branch
          %908 = sbr.rel (%p906) target = $region100
        $region99: #{tpu_custom_call.1} parent=11 // pred_region
          _
        $region100: #{tpu_custom_call.1} parent=11 // pred_fallthru
          _
        // Predicated region
        $region101: #{tpu_custom_call.1} parent=11 // pred_check
          %p909 = pneg %p613
        $region102: #{tpu_custom_call.1} parent=11 // pred_check_branch
          %911 = sbr.rel (%p909) target = $region104
        $region103: #{tpu_custom_call.1} parent=11 // pred_region
          _
        $region104: #{tpu_custom_call.1} parent=11 // pred_fallthru
          _
        // Predicated region
        $region105: #{tpu_custom_call.1} parent=11 // pred_check
          %p912 = pneg %p634
        $region106: #{tpu_custom_call.1} parent=11 // pred_check_branch
          %914 = sbr.rel (%p912) target = $region108
        $region107: #{tpu_custom_call.1} parent=11 // pred_region
          _
        $region108: #{tpu_custom_call.1} parent=11 // pred_fallthru
          _
        // Predicated region
        $region109: #{tpu_custom_call.1} parent=11 // pred_check
          %p915 = pneg %p655
        $region110: #{tpu_custom_call.1} parent=11 // pred_check_branch
          %917 = sbr.rel (%p915) target = $region112
        $region111: #{tpu_custom_call.1} parent=11 // pred_region
          _
        $region112: #{tpu_custom_call.1} parent=11 // pred_fallthru
          _
        // Predicated region
        $region113: #{tpu_custom_call.1} parent=11 // pred_check
          %p918 = pneg %p676
        $region114: #{tpu_custom_call.1} parent=11 // pred_check_branch
          %920 = sbr.rel (%p918) target = $region116
        $region115: #{tpu_custom_call.1} parent=11 // pred_region
          _
        $region116: #{tpu_custom_call.1} parent=11 // pred_fallthru
          _
        // Predicated region
        $region117: #{tpu_custom_call.1} parent=11 // pred_check
          %p921 = pneg %p697
        $region118: #{tpu_custom_call.1} parent=11 // pred_check_branch
          %923 = sbr.rel (%p921) target = $region120
        $region119: #{tpu_custom_call.1} parent=11 // pred_region
          _
        $region120: #{tpu_custom_call.1} parent=11 // pred_fallthru
          _
        // Predicated region
        $region121: #{tpu_custom_call.1} parent=11 // pred_check
          %p924 = pneg %p718
        $region122: #{tpu_custom_call.1} parent=11 // pred_check_branch
          %926 = sbr.rel (%p924) target = $region124
        $region123: #{tpu_custom_call.1} parent=11 // pred_region
          _
        $region124: #{tpu_custom_call.1} parent=11 // pred_fallthru
          _
        // Predicated region
        $region125: #{tpu_custom_call.1} parent=11 // pred_check
          %p927 = pneg %p739
        $region126: #{tpu_custom_call.1} parent=11 // pred_check_branch
          %929 = sbr.rel (%p927) target = $region128
        $region127: #{tpu_custom_call.1} parent=11 // pred_region
          _
        $region128: #{tpu_custom_call.1} parent=11 // pred_fallthru
          _
        // Predicated region
        $region129: #{tpu_custom_call.1} parent=11 // pred_check
          %p930 = pneg %p760
        $region130: #{tpu_custom_call.1} parent=11 // pred_check_branch
          %932 = sbr.rel (%p930) target = $region132
        $region131: #{tpu_custom_call.1} parent=11 // pred_region
          _
        $region132: #{tpu_custom_call.1} parent=11 // pred_fallthru
          _
        // Predicated region
        $region133: #{tpu_custom_call.1} parent=11 // pred_check
          %p933 = pneg %p781
        $region134: #{tpu_custom_call.1} parent=11 // pred_check_branch
          %935 = sbr.rel (%p933) target = $region136
        $region135: #{tpu_custom_call.1} parent=11 // pred_region
          _
        $region136: #{tpu_custom_call.1} parent=11 // pred_fallthru
          _
        // Predicated region
        $region137: #{tpu_custom_call.1} parent=11 // pred_check
          %p936 = pneg %p802
        $region138: #{tpu_custom_call.1} parent=11 // pred_check_branch
          %938 = sbr.rel (%p936) target = $region140
        $region139: #{tpu_custom_call.1} parent=11 // pred_region
          _
        $region140: #{tpu_custom_call.1} parent=11 // pred_fallthru
          _
      $region12: #{tpu_custom_call.1} parent=5 // pred_fallthru
        _
      %p939 = scmp.lt.s32.totalorder %s78, 2
      // Predicated region
      $region141: #{tpu_custom_call.1} parent=5 // pred_check
        %p940 = pneg %p939
      $region142: #{tpu_custom_call.1} parent=5 // pred_check_branch
        %942 = sbr.rel (%p940) target = $region144
      $region143: #{tpu_custom_call.1} parent=5 // pred_region
        // Predicated region
        $region145: #{tpu_custom_call.1} parent=143 // pred_check
          %p943 = pneg %p98
        $region146: #{tpu_custom_call.1} parent=143 // pred_check_branch
          %945 = sbr.rel (%p943) target = $region148
        $region147: #{tpu_custom_call.1} parent=143 // pred_region
          %s946 = smul.u32 2, %s78
          %p947 = scmp.lt.s32.totalorder %s946, 3
          %s948 = scalar_select %p947, %s946, 3
          %s949 = smul.addr %s948, 8
          %s950 = scalar_lea.vmem %s1, %s949
          %s951 = smul.u32 2, %s78
        $region148: #{tpu_custom_call.1} parent=143 // pred_fallthru
          _
        // Predicated region
        $region149: #{tpu_custom_call.1} parent=143 // pred_check
          %p952 = pneg %p124
        $region150: #{tpu_custom_call.1} parent=143 // pred_check_branch
          %954 = sbr.rel (%p952) target = $region152
        $region151: #{tpu_custom_call.1} parent=143 // pred_region
          %s955 = smul.u32 4, %s78
          %p956 = scmp.lt.s32.totalorder %s955, 7
          %s957 = scalar_select %p956, %s955, 7
          %s958 = smul.addr %s957, 4
          %s959 = scalar_lea.vmem %s3, %s958
          %s960 = smul.u32 4, %s78
        $region152: #{tpu_custom_call.1} parent=143 // pred_fallthru
          _
      $region144: #{tpu_custom_call.1} parent=5 // pred_fallthru
        _
      %p961 = scmp.le.s32.totalorder 1, %s78
      %p962 = scmp.lt.s32.totalorder %s78, 3
      %p963 = pnand %p961, %p962
      %p964 = pneg %p963
      // Predicated region
      $region153: #{tpu_custom_call.1} parent=5 // pred_check
        _
      $region154: #{tpu_custom_call.1} parent=5 // pred_check_branch
        %966 = sbr.rel (%p963) target = $region156
      $region155: #{tpu_custom_call.1} parent=5 // pred_region
        %s967 = ssub.s32 %s78, 1
        %s968 = smul.u32 2, %s83
        %p969 = scmp.lt.s32.totalorder %s968, 3
        %s970 = scalar_select %p969, %s968, 3
        %s971 = smul.addr %s970, 8
        %s972 = scalar_lea.vmem %s1, %s971
        %p973 = pneg %p104
        %p974 = pneg %p101
        %s975 = smul.u32 4, %s83
        %p976 = scmp.lt.s32.totalorder %s975, 7
        %s977 = scalar_select %p976, %s975, 7
        %s978 = smul.addr %s977, 4
        %s979 = scalar_lea.vmem %s3, %s978
        %p980 = pneg %p130
        %p981 = pneg %p127
        %p982 = pneg %p151
        %p983 = pneg %p148
        %p984 = pneg %p172
        %p985 = pneg %p169
        %p986 = pneg %p193
        %p987 = pneg %p190
        %p988 = pneg %p214
        %p989 = pneg %p211
        %p990 = pneg %p235
        %p991 = pneg %p232
        %p992 = pneg %p256
        %p993 = pneg %p253
        %p994 = pneg %p277
        %p995 = pneg %p274
        %p996 = pneg %p298
        %p997 = pneg %p295
        %p998 = pneg %p319
        %p999 = pneg %p316
        %p1000 = pneg %p340
        %p1001 = pneg %p337
        %p1002 = pneg %p361
        %p1003 = pneg %p358
        %p1004 = pneg %p382
        %p1005 = pneg %p379
        %p1006 = pneg %p403
        %p1007 = pneg %p400
        %p1008 = pneg %p424
        %p1009 = pneg %p421
        %p1010 = pneg %p445
        %p1011 = pneg %p442
        %p1012 = pneg %p466
        %p1013 = pneg %p463
        %p1014 = pneg %p487
        %p1015 = pneg %p484
        %p1016 = pneg %p508
        %p1017 = pneg %p505
        %p1018 = pneg %p529
        %p1019 = pneg %p526
        %p1020 = pneg %p550
        %p1021 = pneg %p547
        %p1022 = pneg %p571
        %p1023 = pneg %p568
        %p1024 = pneg %p592
        %p1025 = pneg %p589
        %p1026 = pneg %p613
        %p1027 = pneg %p610
        %p1028 = pneg %p634
        %p1029 = pneg %p631
        %p1030 = pneg %p655
        %p1031 = pneg %p652
        %p1032 = pneg %p676
        %p1033 = pneg %p673
        %p1034 = pneg %p697
        %p1035 = pneg %p694
        %p1036 = pneg %p718
        %p1037 = pneg %p715
        %p1038 = pneg %p739
        %p1039 = pneg %p736
        %p1040 = pneg %p760
        %p1041 = pneg %p757
        %p1042 = pneg %p781
        %p1043 = pneg %p778
        %p1044 = pneg %p802
        %p1045 = pneg %p799
        %p1046 = pneg %p828
        %p1047 = pneg %p825
        %s1048 = sand.u32 %s815, 1
        %s1049 = scalar_lea.sflag [#allocation3], %s1048
        %s1050 = sand.u32 %s815, 1
        %s1051 = smul.addr %s1050, 16
        %s1052 = scalar_lea.vmem [#allocation2], %s1051
        %s1053 = smul.u32 2, %s83
        %p1054 = scmp.lt.s32.totalorder %s1053, 3
        %s1055 = scalar_select %p1054, %s1053, 3
        %s1056 = smul.addr %s1055, 8
        %s1057 = scalar_lea.vmem %s1, %s1056
        %s1058 = smul.u32 2, %s83
        %s1059 = smul.u32 4, %s83
        %p1060 = scmp.lt.s32.totalorder %s1059, 7
        %s1061 = scalar_select %p1060, %s1059, 7
        %s1062 = smul.addr %s1061, 4
        %s1063 = scalar_lea.vmem %s3, %s1062
        %s1064 = smul.u32 4, %s83
        %s1065 = smul.u32 2, %s83
        %v1067 = vld [vmem:[%s63] sm:$0xff]
        %v1068 = vld [vmem:[%s63 + $0x8] sm:$0xff]
        %v1069 = vld [vmem:[%s63 + $0x10] sm:$0xff]
        %v1070 = vld [vmem:[%s63 + $0x18] sm:$0xff]
        %v1071 = vld [vmem:[%s63 + $0x20] sm:$0xff]
        %v1072 = vld [vmem:[%s63 + $0x28] sm:$0xff]
        %v1073 = vld [vmem:[%s63 + $0x30] sm:$0xff]
        %v1074 = vld [vmem:[%s63 + $0x38] sm:$0xff]
        %v1075 = vld [vmem:[%s1057] sm:$0xff]
        %v1076 = vld [vmem:[%s1057 + $0x8] sm:$0xff]
        %v1077 = vlaneseq
        %v1078 = vand.u32 %v1077, 127
        %1079 = vset.pattern.permute.xlu0 0
        %1080 = vperm.xlu0 %1079, %v1075
        %v1081 = vpop.permute.xlu0 %1080
        %1082 = vset.pattern.permute.xlu0 0
        %1083 = vperm.xlu0 %1082, %v1076
        %v1084 = vpop.permute.xlu0 %1083
        %vm1085 = vcmp.eq.s32.totalorder %v1078, %v1081
        %vm1086 = vcmp.eq.s32.totalorder %v1078, %v1084
        %v1087 = vsel %vm1085, 1, 0
        %v1088 = vsel %vm1086, 1, 0
        %v1089 = vcvt.s32.f32 %v1087
        %v1090 = vcvt.s32.f32 %v1088
        %v1091 = vpack.c.bf16 %v1090, %v1089
        %v1092 = vld [vmem:[%s5] sm:$0xf]
        %v1093 = vld [vmem:[%s5 + $0x4] sm:$0xf]
        %v1096 = vunpack.c.l.b16 %v1092
        %v1097 = vunpack.c.l.b16 %v1093
        %v1098 = vpack.c.b16 %v1097, %v1096
        %vm1100 = vcmask 130048
        %v1102 = vsel %vm1100, %v1091, 0
        %1104 = vmatprep.subr.bf16.mxu0 0
        %1105 = vmatpush1.bf16.msra.mxu0 %v1098
        %1106 = vmatprep.subr.bf16.mxu0 0
        %1107 = vmatpush1.bf16.msra.mxu0 0
        %1108 = vmatprep.subr.bf16.mxu0 0
        %1109 = vmatpush1.bf16.msra.mxu0 0
        %1110 = vmatprep.subr.bf16.mxu0 0
        %1111 = vmatpush1.bf16.msra.mxu0 0
        %1112 = vmatprep.subr.bf16.mxu0 0
        %1113 = vmatpush1.bf16.msra.mxu0 0
        %1114 = vmatprep.subr.bf16.mxu0 0
        %1115 = vmatpush1.bf16.msra.mxu0 0
        %1116 = vmatprep.subr.bf16.mxu0 0
        %1117 = vmatpush1.bf16.msra.mxu0 0
        %1118 = vmatprep.subr.bf16.mxu0 0
        %1119 = vmatpush1.bf16.msra.mxu0 0
        %1120 = vmatprep.subr.bf16.mxu0 0
        %1121 = vmatpush1.bf16.msra.mxu0 0
        %1122 = vmatprep.subr.bf16.mxu0 0
        %1123 = vmatpush1.bf16.msra.mxu0 0
        %1124 = vmatprep.subr.bf16.mxu0 0
        %1125 = vmatpush1.bf16.msra.mxu0 0
        %1126 = vmatprep.subr.bf16.mxu0 0
        %1127 = vmatpush1.bf16.msra.mxu0 0
        %1128 = vmatprep.subr.bf16.mxu0 0
        %1129 = vmatpush1.bf16.msra.mxu0 0
        %1130 = vmatprep.subr.bf16.mxu0 0
        %1131 = vmatpush1.bf16.msra.mxu0 0
        %1132 = vmatprep.subr.bf16.mxu0 0
        %1133 = vmatpush1.bf16.msra.mxu0 0
        %1134 = vmatprep.subr.bf16.mxu0 0
        %1135 = vmatpush1.bf16.msra.mxu0 0
        %1136 = vmatprep.mubr.bf16.mxu0 0
        %1137 = vmatmul.mubr.bf16.gmra.mrb[0].mxu0 %v1102
        %v1138 = vpop.f32.mrb[0].mxu0
        %v1139 = vadd.f32 0.0, %v1138
        %v1140 = vpop.f32.mrb[0].mxu0
        %v1141 = vpop.f32.mrb[0].mxu0
        %v1142 = vadd.f32 0.0, %v1141
        %v1143 = vpop.f32.mrb[0].mxu0
        %1144 = vdwg.mxu0
        %v1145 = vpack.c.bf16 %v1142, %v1139
        %v1146 = vld [vmem:[%s65] sm:$0xff]
        %v1147 = vld [vmem:[%s65 + $0x8] sm:$0xff]
        %v1148 = vld [vmem:[%s65 + $0x10] sm:$0xff]
        %v1149 = vld [vmem:[%s65 + $0x18] sm:$0xff]
        %v1150 = vld [vmem:[%s65 + $0x20] sm:$0xff]
        %v1151 = vld [vmem:[%s65 + $0x28] sm:$0xff]
        %v1152 = vld [vmem:[%s65 + $0x30] sm:$0xff]
        %v1153 = vld [vmem:[%s65 + $0x38] sm:$0xff]
        %v1154 = vld [vmem:[%s7] sm:$0xf]
        %v1155 = vld [vmem:[%s7 + $0x4] sm:$0xf]
        %v1156 = vld [vmem:[%s7 + $0x8] sm:$0xf]
        %v1157 = vld [vmem:[%s7 + $0xc] sm:$0xf]
        %v1158 = vld [vmem:[%s9] sm:$0x1]
        %v1160 = vlaneseq
        %v1161 = vshrl.u32 %v1160, 7
        %v1162 = vsub.s32 0, %v1161
        %v1163 = vrot.slane %v1158, %v1162
        %v1169 = vunpack.c.l.b16 %v1154
        %v1170 = vunpack.c.l.b16 %v1155
        %v1171 = vunpack.c.l.b16 %v1156
        %v1172 = vunpack.c.l.b16 %v1157
        %v1173 = vpack.c.b16 %v1170, %v1169
        %v1174 = vpack.c.b16 %v1172, %v1171
        %vm1177 = vcmask 261120
        %v1179 = vsel %vm1177, %v1145, 0
        %1181 = vmatprep.subr.bf16.mxu0 0
        %1182 = vmatpush1.bf16.msra.mxu0 %v1173
        %1183 = vmatprep.subr.bf16.mxu0 0
        %1184 = vmatpush1.bf16.msra.mxu0 %v1174
        %1185 = vmatprep.subr.bf16.mxu0 0
        %1186 = vmatpush1.bf16.msra.mxu0 0
        %1187 = vmatprep.subr.bf16.mxu0 0
        %1188 = vmatpush1.bf16.msra.mxu0 0
        %1189 = vmatprep.subr.bf16.mxu0 0
        %1190 = vmatpush1.bf16.msra.mxu0 0
        %1191 = vmatprep.subr.bf16.mxu0 0
        %1192 = vmatpush1.bf16.msra.mxu0 0
        %1193 = vmatprep.subr.bf16.mxu0 0
        %1194 = vmatpush1.bf16.msra.mxu0 0
        %1195 = vmatprep.subr.bf16.mxu0 0
        %1196 = vmatpush1.bf16.msra.mxu0 0
        %1197 = vmatprep.subr.bf16.mxu0 0
        %1198 = vmatpush1.bf16.msra.mxu0 0
        %1199 = vmatprep.subr.bf16.mxu0 0
        %1200 = vmatpush1.bf16.msra.mxu0 0
        %1201 = vmatprep.subr.bf16.mxu0 0
        %1202 = vmatpush1.bf16.msra.mxu0 0
        %1203 = vmatprep.subr.bf16.mxu0 0
        %1204 = vmatpush1.bf16.msra.mxu0 0
        %1205 = vmatprep.subr.bf16.mxu0 0
        %1206 = vmatpush1.bf16.msra.mxu0 0
        %1207 = vmatprep.subr.bf16.mxu0 0
        %1208 = vmatpush1.bf16.msra.mxu0 0
        %1209 = vmatprep.subr.bf16.mxu0 0
        %1210 = vmatpush1.bf16.msra.mxu0 0
        %1211 = vmatprep.subr.bf16.mxu0 0
        %1212 = vmatpush1.bf16.msra.mxu0 0
        %1213 = vmatprep.mubr.bf16.mxu0 0
        %1214 = vmatmul.mubr.bf16.gmra.mrb[0].mxu0 %v1179
        %v1215 = vpop.f32.mrb[0].mxu0
        %v1216 = vadd.f32 %v1163, %v1215
        %v1217 = vpop.f32.mrb[0].mxu0
        %v1218 = vpop.f32.mrb[0].mxu0
        %v1219 = vadd.f32 %v1163, %v1218
        %v1220 = vpop.f32.mrb[0].mxu0
        %1221 = vdwg.mxu0
        %v1222 = vmul.f32 %v1216, %v1067
        %v1223 = vmul.f32 %v1219, %v1068
        %v1224 = vmul.f32 %v1216, %v1069
        %v1225 = vmul.f32 %v1219, %v1070
        %v1226 = vmul.f32 %v1216, %v1071
        %v1227 = vmul.f32 %v1219, %v1072
        %v1228 = vmul.f32 %v1216, %v1073
        %v1229 = vmul.f32 %v1219, %v1074
        %v1230 = vpack.c.bf16 %v1223, %v1222
        %v1231 = vpack.c.bf16 %v1225, %v1224
        %v1232 = vpack.c.bf16 %v1227, %v1226
        %v1233 = vpack.c.bf16 %v1229, %v1228
        %v1234 = vld [vmem:[%s11] sm:$0xf]
        %v1235 = vld [vmem:[%s11 + $0x4] sm:$0xf]
        %v1236 = vld [vmem:[%s11 + $0x8] sm:$0xf]
        %v1237 = vld [vmem:[%s11 + $0xc] sm:$0xf]
        %v1238 = vld [vmem:[%s13] sm:$0x1]
        %v1240 = vlaneseq
        %v1241 = vshrl.u32 %v1240, 7
        %v1242 = vsub.s32 0, %v1241
        %v1243 = vrot.slane %v1238, %v1242
        %v1249 = vunpack.c.l.b16 %v1234
        %v1250 = vunpack.c.l.b16 %v1235
        %v1251 = vunpack.c.l.b16 %v1236
        %v1252 = vunpack.c.l.b16 %v1237
        %v1253 = vpack.c.b16 %v1250, %v1249
        %v1254 = vpack.c.b16 %v1252, %v1251
        %1257 = vmatprep.subr.bf16.mxu0 0
        %1258 = vmatpush1.bf16.msra.mxu0 %v1253
        %1259 = vmatprep.subr.bf16.mxu0 0
        %1260 = vmatpush1.bf16.msra.mxu0 %v1254
        %1261 = vmatprep.subr.bf16.mxu0 0
        %1262 = vmatpush1.bf16.msra.mxu0 0
        %1263 = vmatprep.subr.bf16.mxu0 0
        %1264 = vmatpush1.bf16.msra.mxu0 0
        %1265 = vmatprep.subr.bf16.mxu0 0
        %1266 = vmatpush1.bf16.msra.mxu0 0
        %1267 = vmatprep.subr.bf16.mxu0 0
        %1268 = vmatpush1.bf16.msra.mxu0 0
        %1269 = vmatprep.subr.bf16.mxu0 0
        %1270 = vmatpush1.bf16.msra.mxu0 0
        %1271 = vmatprep.subr.bf16.mxu0 0
        %1272 = vmatpush1.bf16.msra.mxu0 0
        %1273 = vmatprep.subr.bf16.mxu0 0
        %1274 = vmatpush1.bf16.msra.mxu0 0
        %1275 = vmatprep.subr.bf16.mxu0 0
        %1276 = vmatpush1.bf16.msra.mxu0 0
        %1277 = vmatprep.subr.bf16.mxu0 0
        %1278 = vmatpush1.bf16.msra.mxu0 0
        %1279 = vmatprep.subr.bf16.mxu0 0
        %1280 = vmatpush1.bf16.msra.mxu0 0
        %1281 = vmatprep.subr.bf16.mxu0 0
        %1282 = vmatpush1.bf16.msra.mxu0 0
        %1283 = vmatprep.subr.bf16.mxu0 0
        %1284 = vmatpush1.bf16.msra.mxu0 0
        %1285 = vmatprep.subr.bf16.mxu0 0
        %1286 = vmatpush1.bf16.msra.mxu0 0
        %1287 = vmatprep.subr.bf16.mxu0 0
        %1288 = vmatpush1.bf16.msra.mxu0 0
        %1289 = vmatprep.mubr.bf16.mxu0 0
        %1290 = vmatmul.mubr.bf16.gmra.mrb[0].mxu0 %v1179
        %v1291 = vpop.f32.mrb[0].mxu0
        %v1292 = vadd.f32 %v1243, %v1291
        %v1293 = vpop.f32.mrb[0].mxu0
        %v1294 = vpop.f32.mrb[0].mxu0
        %v1295 = vadd.f32 %v1243, %v1294
        %v1296 = vpop.f32.mrb[0].mxu0
        %1297 = vdwg.mxu0
        %v1298 = vpack.c.bf16 %v1295, %v1292
        %v1299 = vld [vmem:[%s15] sm:$0xf]
        %v1300 = vld [vmem:[%s15 + $0x4] sm:$0xf]
        %v1301 = vld [vmem:[%s15 + $0x8] sm:$0xf]
        %v1302 = vld [vmem:[%s15 + $0xc] sm:$0xf]
        %v1303 = vld [vmem:[%s17] sm:$0x1]
        %v1305 = vlaneseq
        %v1306 = vshrl.u32 %v1305, 7
        %v1307 = vsub.s32 0, %v1306
        %v1308 = vrot.slane %v1303, %v1307
        %v1314 = vunpack.c.l.b16 %v1299
        %v1315 = vunpack.c.l.b16 %v1300
        %v1316 = vunpack.c.l.b16 %v1301
        %v1317 = vunpack.c.l.b16 %v1302
        %v1318 = vpack.c.b16 %v1315, %v1314
        %v1319 = vpack.c.b16 %v1317, %v1316
        %1322 = vmatprep.subr.bf16.mxu0 0
        %1323 = vmatpush1.bf16.msra.mxu0 %v1318
        %1324 = vmatprep.subr.bf16.mxu0 0
        %1325 = vmatpush1.bf16.msra.mxu0 %v1319
        %1326 = vmatprep.subr.bf16.mxu0 0
        %1327 = vmatpush1.bf16.msra.mxu0 0
        %1328 = vmatprep.subr.bf16.mxu0 0
        %1329 = vmatpush1.bf16.msra.mxu0 0
        %1330 = vmatprep.subr.bf16.mxu0 0
        %1331 = vmatpush1.bf16.msra.mxu0 0
        %1332 = vmatprep.subr.bf16.mxu0 0
        %1333 = vmatpush1.bf16.msra.mxu0 0
        %1334 = vmatprep.subr.bf16.mxu0 0
        %1335 = vmatpush1.bf16.msra.mxu0 0
        %1336 = vmatprep.subr.bf16.mxu0 0
        %1337 = vmatpush1.bf16.msra.mxu0 0
        %1338 = vmatprep.subr.bf16.mxu0 0
        %1339 = vmatpush1.bf16.msra.mxu0 0
        %1340 = vmatprep.subr.bf16.mxu0 0
        %1341 = vmatpush1.bf16.msra.mxu0 0
        %1342 = vmatprep.subr.bf16.mxu0 0
        %1343 = vmatpush1.bf16.msra.mxu0 0
        %1344 = vmatprep.subr.bf16.mxu0 0
        %1345 = vmatpush1.bf16.msra.mxu0 0
        %1346 = vmatprep.subr.bf16.mxu0 0
        %1347 = vmatpush1.bf16.msra.mxu0 0
        %1348 = vmatprep.subr.bf16.mxu0 0
        %1349 = vmatpush1.bf16.msra.mxu0 0
        %1350 = vmatprep.subr.bf16.mxu0 0
        %1351 = vmatpush1.bf16.msra.mxu0 0
        %1352 = vmatprep.subr.bf16.mxu0 0
        %1353 = vmatpush1.bf16.msra.mxu0 0
        %1354 = vmatprep.mubr.bf16.mxu0 0
        %1355 = vmatmul.mubr.bf16.gmra.mrb[0].mxu0 %v1179
        %v1356 = vpop.f32.mrb[0].mxu0
        %v1357 = vadd.f32 %v1308, %v1356
        %v1358 = vpop.f32.mrb[0].mxu0
        %v1359 = vpop.f32.mrb[0].mxu0
        %v1360 = vadd.f32 %v1308, %v1359
        %v1361 = vpop.f32.mrb[0].mxu0
        %1362 = vdwg.mxu0
        %v1363 = vpack.c.bf16 %v1360, %v1357
        %v1365 = vsel %vm1177, %v1230, 0
        %v1368 = vsel %vm1177, %v1231, 0
        %v1371 = vsel %vm1177, %v1232, 0
        %v1374 = vsel %vm1177, %v1233, 0
        %v1377 = vsel %vm1177, %v1298, 0
        %1379 = vmatprep.subr.bf16.mxu0 0
        %1380 = vmatpush1.bf16.xpose.msra.mxu0 %v1377
        %1381 = vmatprep.subr.bf16.mxu0 0
        %1382 = vmatpush1.bf16.xpose.msra.mxu0 0
        %1383 = vmatprep.subr.bf16.mxu0 0
        %1384 = vmatpush1.bf16.xpose.msra.mxu0 0
        %1385 = vmatprep.subr.bf16.mxu0 0
        %1386 = vmatpush1.bf16.xpose.msra.mxu0 0
        %1387 = vmatprep.subr.bf16.mxu0 0
        %1388 = vmatpush1.bf16.xpose.msra.mxu0 0
        %1389 = vmatprep.subr.bf16.mxu0 0
        %1390 = vmatpush1.bf16.xpose.msra.mxu0 0
        %1391 = vmatprep.subr.bf16.mxu0 0
        %1392 = vmatpush1.bf16.xpose.msra.mxu0 0
        %1393 = vmatprep.subr.bf16.mxu0 0
        %1394 = vmatpush1.bf16.xpose.msra.mxu0 0
        %1395 = vmatprep.subr.bf16.mxu0 0
        %1396 = vmatpush1.bf16.xpose.msra.mxu0 0
        %1397 = vmatprep.subr.bf16.mxu0 0
        %1398 = vmatpush1.bf16.xpose.msra.mxu0 0
        %1399 = vmatprep.subr.bf16.mxu0 0
        %1400 = vmatpush1.bf16.xpose.msra.mxu0 0
        %1401 = vmatprep.subr.bf16.mxu0 0
        %1402 = vmatpush1.bf16.xpose.msra.mxu0 0
        %1403 = vmatprep.subr.bf16.mxu0 0
        %1404 = vmatpush1.bf16.xpose.msra.mxu0 0
        %1405 = vmatprep.subr.bf16.mxu0 0
        %1406 = vmatpush1.bf16.xpose.msra.mxu0 0
        %1407 = vmatprep.subr.bf16.mxu0 0
        %1408 = vmatpush1.bf16.xpose.msra.mxu0 0
        %1409 = vmatprep.subr.bf16.mxu0 0
        %1410 = vmatpush1.bf16.xpose.msra.mxu0 0
        %1411 = vmatprep.mubr.bf16.mxu0 0
        %1412 = vmatmul.mubr.bf16.gmra.mrb[0].mxu0 %v1365
        %v1413 = vpop.f32.mrb[0].mxu0
        %v1414 = vadd.f32 %v1146, %v1413
        %v1415 = vpop.f32.mrb[0].mxu0
        %v1416 = vpop.f32.mrb[0].mxu0
        %v1417 = vadd.f32 %v1147, %v1416
        %v1418 = vpop.f32.mrb[0].mxu0
        %1419 = vmatprep.mubr.bf16.mxu0 0
        %1420 = vmatmul.mubr.bf16.gmra.mrb[0].mxu0 %v1368
        %v1421 = vpop.f32.mrb[0].mxu0
        %v1422 = vadd.f32 %v1148, %v1421
        %v1423 = vpop.f32.mrb[0].mxu0
        %v1424 = vpop.f32.mrb[0].mxu0
        %v1425 = vadd.f32 %v1149, %v1424
        %v1426 = vpop.f32.mrb[0].mxu0
        %1427 = vmatprep.mubr.bf16.mxu0 0
        %1428 = vmatmul.mubr.bf16.gmra.mrb[0].mxu0 %v1371
        %v1429 = vpop.f32.mrb[0].mxu0
        %v1430 = vadd.f32 %v1150, %v1429
        %v1431 = vpop.f32.mrb[0].mxu0
        %v1432 = vpop.f32.mrb[0].mxu0
        %v1433 = vadd.f32 %v1151, %v1432
        %v1434 = vpop.f32.mrb[0].mxu0
        %1435 = vmatprep.mubr.bf16.mxu0 0
        %1436 = vmatmul.mubr.bf16.gmra.mrb[0].mxu0 %v1374
        %v1437 = vpop.f32.mrb[0].mxu0
        %v1438 = vadd.f32 %v1152, %v1437
        %v1439 = vpop.f32.mrb[0].mxu0
        %v1440 = vpop.f32.mrb[0].mxu0
        %v1441 = vadd.f32 %v1153, %v1440
        %v1442 = vpop.f32.mrb[0].mxu0
        %1443 = vdwg.mxu0
        %v1444 = vsel %vm1100, %v1414, -inf
        %1445 = vmax.xlane.f32.xlu0 %v1444
        %v1446 = vpop.xlane.xlu0 %1445
        %v1447 = vsel %vm1100, %v1417, -inf
        %1448 = vmax.xlane.f32.xlu0 %v1447
        %v1449 = vpop.xlane.xlu0 %1448
        %v1450 = vsel %vm1100, %v1422, -inf
        %1451 = vmax.xlane.f32.xlu0 %v1450
        %v1452 = vpop.xlane.xlu0 %1451
        %v1453 = vsel %vm1100, %v1425, -inf
        %1454 = vmax.xlane.f32.xlu0 %v1453
        %v1455 = vpop.xlane.xlu0 %1454
        %v1456 = vsel %vm1100, %v1430, -inf
        %1457 = vmax.xlane.f32.xlu0 %v1456
        %v1458 = vpop.xlane.xlu0 %1457
        %v1459 = vsel %vm1100, %v1433, -inf
        %1460 = vmax.xlane.f32.xlu0 %v1459
        %v1461 = vpop.xlane.xlu0 %1460
        %v1462 = vsel %vm1100, %v1438, -inf
        %1463 = vmax.xlane.f32.xlu0 %v1462
        %v1464 = vpop.xlane.xlu0 %1463
        %v1465 = vsel %vm1100, %v1441, -inf
        %1466 = vmax.xlane.f32.xlu0 %v1465
        %v1467 = vpop.xlane.xlu0 %1466
        %v1468 = vsub.f32 %v1414, %v1446
        %v1469 = vsub.f32 %v1417, %v1449
        %v1470 = vsub.f32 %v1422, %v1452
        %v1471 = vsub.f32 %v1425, %v1455
        %v1472 = vsub.f32 %v1430, %v1458
        %v1473 = vsub.f32 %v1433, %v1461
        %v1474 = vsub.f32 %v1438, %v1464
        %v1475 = vsub.f32 %v1441, %v1467
        %v1476 = vmul.f32 %v1468, 1.442695
        %v1477 = vpow.pop %v1476
        %v1478 = vmul.f32 %v1469, 1.442695
        %v1479 = vpow.pop %v1478
        %v1480 = vmul.f32 %v1470, 1.442695
        %v1481 = vpow.pop %v1480
        %v1482 = vmul.f32 %v1471, 1.442695
        %v1483 = vpow.pop %v1482
        %v1484 = vmul.f32 %v1472, 1.442695
        %v1485 = vpow.pop %v1484
        %v1486 = vmul.f32 %v1473, 1.442695
        %v1487 = vpow.pop %v1486
        %v1488 = vmul.f32 %v1474, 1.442695
        %v1489 = vpow.pop %v1488
        %v1490 = vmul.f32 %v1475, 1.442695
        %v1491 = vpow.pop %v1490
        %v1492 = vsel %vm1100, %v1477, 0.0
        %1493 = vadd.xlane.f32.xlu0 %v1492
        %v1494 = vpop.xlane.xlu0 %1493
        %v1495 = vsel %vm1100, %v1479, 0.0
        %1496 = vadd.xlane.f32.xlu0 %v1495
        %v1497 = vpop.xlane.xlu0 %1496
        %v1498 = vsel %vm1100, %v1481, 0.0
        %1499 = vadd.xlane.f32.xlu0 %v1498
        %v1500 = vpop.xlane.xlu0 %1499
        %v1501 = vsel %vm1100, %v1483, 0.0
        %1502 = vadd.xlane.f32.xlu0 %v1501
        %v1503 = vpop.xlane.xlu0 %1502
        %v1504 = vsel %vm1100, %v1485, 0.0
        %1505 = vadd.xlane.f32.xlu0 %v1504
        %v1506 = vpop.xlane.xlu0 %1505
        %v1507 = vsel %vm1100, %v1487, 0.0
        %1508 = vadd.xlane.f32.xlu0 %v1507
        %v1509 = vpop.xlane.xlu0 %1508
        %v1510 = vsel %vm1100, %v1489, 0.0
        %1511 = vadd.xlane.f32.xlu0 %v1510
        %v1512 = vpop.xlane.xlu0 %1511
        %v1513 = vsel %vm1100, %v1491, 0.0
        %1514 = vadd.xlane.f32.xlu0 %v1513
        %v1515 = vpop.xlane.xlu0 %1514
        %v1516 = vrcp.pop %v1494
        %v1517 = vrcp.pop %v1497
        %v1518 = vrcp.pop %v1500
        %v1519 = vrcp.pop %v1503
        %v1520 = vrcp.pop %v1506
        %v1521 = vrcp.pop %v1509
        %v1522 = vrcp.pop %v1512
        %v1523 = vrcp.pop %v1515
        %v1524 = vmul.f32 %v1477, %v1516
        %v1525 = vmul.f32 %v1479, %v1517
        %v1526 = vmul.f32 %v1481, %v1518
        %v1527 = vmul.f32 %v1483, %v1519
        %v1528 = vmul.f32 %v1485, %v1520
        %v1529 = vmul.f32 %v1487, %v1521
        %v1530 = vmul.f32 %v1489, %v1522
        %v1531 = vmul.f32 %v1491, %v1523
        %v1532 = vpack.c.bf16 %v1525, %v1524
        %v1533 = vpack.c.bf16 %v1527, %v1526
        %v1534 = vpack.c.bf16 %v1529, %v1528
        %v1535 = vpack.c.bf16 %v1531, %v1530
        %v1537 = vsel %vm1100, %v1532, 0
        %v1540 = vsel %vm1100, %v1533, 0
        %v1543 = vsel %vm1100, %v1534, 0
        %v1546 = vsel %vm1100, %v1535, 0
        %1548 = vmatprep.subr.bf16.mxu0 0
        %1549 = vmatpush1.bf16.msra.mxu0 %v1363
        %1550 = vmatprep.subr.bf16.mxu0 0
        %1551 = vmatpush1.bf16.msra.mxu0 0
        %1552 = vmatprep.subr.bf16.mxu0 0
        %1553 = vmatpush1.bf16.msra.mxu0 0
        %1554 = vmatprep.subr.bf16.mxu0 0
        %1555 = vmatpush1.bf16.msra.mxu0 0
        %1556 = vmatprep.subr.bf16.mxu0 0
        %1557 = vmatpush1.bf16.msra.mxu0 0
        %1558 = vmatprep.subr.bf16.mxu0 0
        %1559 = vmatpush1.bf16.msra.mxu0 0
        %1560 = vmatprep.subr.bf16.mxu0 0
        %1561 = vmatpush1.bf16.msra.mxu0 0
        %1562 = vmatprep.subr.bf16.mxu0 0
        %1563 = vmatpush1.bf16.msra.mxu0 0
        %1564 = vmatprep.subr.bf16.mxu0 0
        %1565 = vmatpush1.bf16.msra.mxu0 0
        %1566 = vmatprep.subr.bf16.mxu0 0
        %1567 = vmatpush1.bf16.msra.mxu0 0
        %1568 = vmatprep.subr.bf16.mxu0 0
        %1569 = vmatpush1.bf16.msra.mxu0 0
        %1570 = vmatprep.subr.bf16.mxu0 0
        %1571 = vmatpush1.bf16.msra.mxu0 0
        %1572 = vmatprep.subr.bf16.mxu0 0
        %1573 = vmatpush1.bf16.msra.mxu0 0
        %1574 = vmatprep.subr.bf16.mxu0 0
        %1575 = vmatpush1.bf16.msra.mxu0 0
        %1576 = vmatprep.subr.bf16.mxu0 0
        %1577 = vmatpush1.bf16.msra.mxu0 0
        %1578 = vmatprep.subr.bf16.mxu0 0
        %1579 = vmatpush1.bf16.msra.mxu0 0
        %1580 = vmatprep.mubr.bf16.mxu0 0
        %1581 = vmatmul.mubr.bf16.gmra.mrb[0].mxu0 %v1537
        %v1582 = vpop.f32.mrb[0].mxu0
        %v1583 = vadd.f32 0.0, %v1582
        %v1584 = vpop.f32.mrb[0].mxu0
        %v1585 = vpop.f32.mrb[0].mxu0
        %v1586 = vadd.f32 0.0, %v1585
        %v1587 = vpop.f32.mrb[0].mxu0
        %1588 = vmatprep.mubr.bf16.mxu0 0
        %1589 = vmatmul.mubr.bf16.gmra.mrb[0].mxu0 %v1540
        %v1590 = vpop.f32.mrb[0].mxu0
        %v1591 = vadd.f32 0.0, %v1590
        %v1592 = vpop.f32.mrb[0].mxu0
        %v1593 = vpop.f32.mrb[0].mxu0
        %v1594 = vadd.f32 0.0, %v1593
        %v1595 = vpop.f32.mrb[0].mxu0
        %1596 = vmatprep.mubr.bf16.mxu0 0
        %1597 = vmatmul.mubr.bf16.gmra.mrb[0].mxu0 %v1543
        %v1598 = vpop.f32.mrb[0].mxu0
        %v1599 = vadd.f32 0.0, %v1598
        %v1600 = vpop.f32.mrb[0].mxu0
        %v1601 = vpop.f32.mrb[0].mxu0
        %v1602 = vadd.f32 0.0, %v1601
        %v1603 = vpop.f32.mrb[0].mxu0
        %1604 = vmatprep.mubr.bf16.mxu0 0
        %1605 = vmatmul.mubr.bf16.gmra.mrb[0].mxu0 %v1546
        %v1606 = vpop.f32.mrb[0].mxu0
        %v1607 = vadd.f32 0.0, %v1606
        %v1608 = vpop.f32.mrb[0].mxu0
        %v1609 = vpop.f32.mrb[0].mxu0
        %v1610 = vadd.f32 0.0, %v1609
        %v1611 = vpop.f32.mrb[0].mxu0
        %1612 = vdwg.mxu0
        %v1613 = vmul.f32 %v1583, %v1067
        %v1614 = vmul.f32 %v1586, %v1068
        %v1615 = vmul.f32 %v1591, %v1069
        %v1616 = vmul.f32 %v1594, %v1070
        %v1617 = vmul.f32 %v1599, %v1071
        %v1618 = vmul.f32 %v1602, %v1072
        %v1619 = vmul.f32 %v1607, %v1073
        %v1620 = vmul.f32 %v1610, %v1074
        %v1621 = vpack.c.bf16 %v1614, %v1613
        %v1622 = vpack.c.bf16 %v1616, %v1615
        %v1623 = vpack.c.bf16 %v1618, %v1617
        %v1624 = vpack.c.bf16 %v1620, %v1619
        %v1625 = vld [vmem:[%s19] sm:$0xf]
        %v1626 = vld [vmem:[%s19 + $0x4] sm:$0xf]
        %v1627 = vld [vmem:[%s19 + $0x8] sm:$0xf]
        %v1628 = vld [vmem:[%s19 + $0xc] sm:$0xf]
        %v1633 = vunpack.c.l.b16 %v1625
        %v1634 = vunpack.c.l.b16 %v1626
        %v1635 = vunpack.c.l.b16 %v1627
        %v1636 = vunpack.c.l.b16 %v1628
        %v1637 = vpack.c.b16 %v1634, %v1633
        %v1638 = vpack.c.b16 %v1636, %v1635
        %v1642 = vsel %vm1177, %v1621, 0
        %v1645 = vsel %vm1177, %v1622, 0
        %v1648 = vsel %vm1177, %v1623, 0
        %v1651 = vsel %vm1177, %v1624, 0
        %1653 = vmatprep.subr.bf16.mxu0 0
        %1654 = vmatpush1.bf16.msra.mxu0 %v1637
        %1655 = vmatprep.subr.bf16.mxu0 0
        %1656 = vmatpush1.bf16.msra.mxu0 %v1638
        %1657 = vmatprep.subr.bf16.mxu0 0
        %1658 = vmatpush1.bf16.msra.mxu0 0
        %1659 = vmatprep.subr.bf16.mxu0 0
        %1660 = vmatpush1.bf16.msra.mxu0 0
        %1661 = vmatprep.subr.bf16.mxu0 0
        %1662 = vmatpush1.bf16.msra.mxu0 0
        %1663 = vmatprep.subr.bf16.mxu0 0
        %1664 = vmatpush1.bf16.msra.mxu0 0
        %1665 = vmatprep.subr.bf16.mxu0 0
        %1666 = vmatpush1.bf16.msra.mxu0 0
        %1667 = vmatprep.subr.bf16.mxu0 0
        %1668 = vmatpush1.bf16.msra.mxu0 0
        %1669 = vmatprep.subr.bf16.mxu0 0
        %1670 = vmatpush1.bf16.msra.mxu0 0
        %1671 = vmatprep.subr.bf16.mxu0 0
        %1672 = vmatpush1.bf16.msra.mxu0 0
        %1673 = vmatprep.subr.bf16.mxu0 0
        %1674 = vmatpush1.bf16.msra.mxu0 0
        %1675 = vmatprep.subr.bf16.mxu0 0
        %1676 = vmatpush1.bf16.msra.mxu0 0
        %1677 = vmatprep.subr.bf16.mxu0 0
        %1678 = vmatpush1.bf16.msra.mxu0 0
        %1679 = vmatprep.subr.bf16.mxu0 0
        %1680 = vmatpush1.bf16.msra.mxu0 0
        %1681 = vmatprep.subr.bf16.mxu0 0
        %1682 = vmatpush1.bf16.msra.mxu0 0
        %1683 = vmatprep.subr.bf16.mxu0 0
        %1684 = vmatpush1.bf16.msra.mxu0 0
        %1685 = vmatprep.mubr.bf16.mxu0 0
        %1686 = vmatmul.mubr.bf16.gmra.mrb[0].mxu0 %v1642
        %v1687 = vpop.f32.mrb[0].mxu0
        %v1688 = vadd.f32 0.0, %v1687
        %v1689 = vpop.f32.mrb[0].mxu0
        %v1690 = vpop.f32.mrb[0].mxu0
        %v1691 = vadd.f32 0.0, %v1690
        %v1692 = vpop.f32.mrb[0].mxu0
        %1693 = vmatprep.mubr.bf16.mxu0 0
        %1694 = vmatmul.mubr.bf16.gmra.mrb[0].mxu0 %v1645
        %v1695 = vpop.f32.mrb[0].mxu0
        %v1696 = vadd.f32 0.0, %v1695
        %v1697 = vpop.f32.mrb[0].mxu0
        %v1698 = vpop.f32.mrb[0].mxu0
        %v1699 = vadd.f32 0.0, %v1698
        %v1700 = vpop.f32.mrb[0].mxu0
        %1701 = vmatprep.mubr.bf16.mxu0 0
        %1702 = vmatmul.mubr.bf16.gmra.mrb[0].mxu0 %v1648
        %v1703 = vpop.f32.mrb[0].mxu0
        %v1704 = vadd.f32 0.0, %v1703
        %v1705 = vpop.f32.mrb[0].mxu0
        %v1706 = vpop.f32.mrb[0].mxu0
        %v1707 = vadd.f32 0.0, %v1706
        %v1708 = vpop.f32.mrb[0].mxu0
        %1709 = vmatprep.mubr.bf16.mxu0 0
        %1710 = vmatmul.mubr.bf16.gmra.mrb[0].mxu0 %v1651
        %v1711 = vpop.f32.mrb[0].mxu0
        %v1712 = vadd.f32 0.0, %v1711
        %v1713 = vpop.f32.mrb[0].mxu0
        %v1714 = vpop.f32.mrb[0].mxu0
        %v1715 = vadd.f32 0.0, %v1714
        %v1716 = vpop.f32.mrb[0].mxu0
        %1717 = vdwg.mxu0
        %v1718 = vadd.f32 %v1688, %v1696
        %v1719 = vadd.f32 %v1691, %v1699
        %v1720 = vadd.f32 %v1718, %v1704
        %v1721 = vadd.f32 %v1719, %v1707
        %v1722 = vadd.f32 %v1720, %v1712
        %v1723 = vadd.f32 %v1721, %v1715
        %v1724 = vld [vmem:[%s21] sm:$0x1]
        %v1726 = vlaneseq
        %v1727 = vshrl.u32 %v1726, 7
        %v1728 = vsub.s32 0, %v1727
        %v1729 = vrot.slane %v1724, %v1728
        %v1731 = vadd.f32 %v1722, %v1729
        %v1732 = vadd.f32 %v1723, %v1729
        %v1733 = vadd.f32 %v1731, %v1139
        %v1734 = vadd.f32 %v1732, %v1142
        %v1735 = vld [vmem:[%s23] sm:$0x1]
        %v1736 = vld [vmem:[%s25] sm:$0x1]
        %v1737 = vsel %vm1177, %v1733, 0.0
        %1738 = vadd.xlane.f32.xlu0 %v1737
        %v1739 = vpop.xlane.xlu0 %1738
        %v1740 = vsel %vm1177, %v1734, 0.0
        %1741 = vadd.xlane.f32.xlu0 %v1740
        %v1742 = vpop.xlane.xlu0 %1741
        %v1743 = vrcp.pop 32.0
        %v1744 = vmul.f32 %v1739, %v1743
        %v1745 = vmul.f32 %v1742, %v1743
        %v1746 = vsub.f32 %v1733, %v1744
        %v1747 = vsub.f32 %v1734, %v1745
        %v1748 = vmul.f32 %v1746, %v1746
        %v1749 = vmul.f32 %v1747, %v1747
        %v1750 = vsel %vm1177, %v1748, 0.0
        %1751 = vadd.xlane.f32.xlu0 %v1750
        %v1752 = vpop.xlane.xlu0 %1751
        %v1753 = vsel %vm1177, %v1749, 0.0
        %1754 = vadd.xlane.f32.xlu0 %v1753
        %v1755 = vpop.xlane.xlu0 %1754
        %v1756 = vmul.f32 %v1752, %v1743
        %v1757 = vmul.f32 %v1755, %v1743
        %v1758 = vadd.f32 %v1756, 1e-05
        %v1759 = vadd.f32 %v1757, 1e-05
        %v1760 = vrsqrt.pop %v1758
        %v1761 = vrsqrt.pop %v1759
        %v1762 = vmul.f32 %v1746, %v1760
        %v1763 = vmul.f32 %v1747, %v1761
        %v1765 = vlaneseq
        %v1766 = vshrl.u32 %v1765, 7
        %v1767 = vsub.s32 0, %v1766
        %v1768 = vrot.slane %v1735, %v1767
        %v1770 = vmul.f32 %v1762, %v1768
        %v1771 = vmul.f32 %v1763, %v1768
        %v1773 = vlaneseq
        %v1774 = vshrl.u32 %v1773, 7
        %v1775 = vsub.s32 0, %v1774
        %v1776 = vrot.slane %v1736, %v1775
        %v1778 = vadd.f32 %v1770, %v1776
        %v1779 = vadd.f32 %v1771, %v1776
        %v1780 = vpack.c.bf16 %v1779, %v1778
        %v1781 = vld [vmem:[%s1063] sm:$0xf]
        %v1782 = vld [vmem:[%s1063 + $0x4] sm:$0xf]
        %v1783 = vld [vmem:[%s1063 + $0x8] sm:$0xf]
        %v1784 = vld [vmem:[%s1063 + $0xc] sm:$0xf]
        %v1785 = vld [vmem:[%s67] sm:$0xff]
        %v1786 = vld [vmem:[%s67 + $0x8] sm:$0xff]
        %v1787 = vld [vmem:[%s67 + $0x10] sm:$0xff]
        %v1788 = vld [vmem:[%s67 + $0x18] sm:$0xff]
        %v1789 = vld [vmem:[%s67 + $0x20] sm:$0xff]
        %v1790 = vld [vmem:[%s67 + $0x28] sm:$0xff]
        %v1791 = vld [vmem:[%s67 + $0x30] sm:$0xff]
        %v1792 = vld [vmem:[%s67 + $0x38] sm:$0xff]
        %v1793 = vld [vmem:[%s27] sm:$0xf]
        %v1794 = vld [vmem:[%s27 + $0x4] sm:$0xf]
        %v1795 = vld [vmem:[%s27 + $0x8] sm:$0xf]
        %v1796 = vld [vmem:[%s27 + $0xc] sm:$0xf]
        %v1797 = vld [vmem:[%s29] sm:$0x1]
        %v1799 = vlaneseq
        %v1800 = vshrl.u32 %v1799, 7
        %v1801 = vsub.s32 0, %v1800
        %v1802 = vrot.slane %v1797, %v1801
        %v1808 = vunpack.c.l.b16 %v1793
        %v1809 = vunpack.c.l.b16 %v1794
        %v1810 = vunpack.c.l.b16 %v1795
        %v1811 = vunpack.c.l.b16 %v1796
        %v1812 = vpack.c.b16 %v1809, %v1808
        %v1813 = vpack.c.b16 %v1811, %v1810
        %v1817 = vsel %vm1177, %v1780, 0
        %1819 = vmatprep.subr.bf16.mxu0 0
        %1820 = vmatpush1.bf16.msra.mxu0 %v1812
        %1821 = vmatprep.subr.bf16.mxu0 0
        %1822 = vmatpush1.bf16.msra.mxu0 %v1813
        %1823 = vmatprep.subr.bf16.mxu0 0
        %1824 = vmatpush1.bf16.msra.mxu0 0
        %1825 = vmatprep.subr.bf16.mxu0 0
        %1826 = vmatpush1.bf16.msra.mxu0 0
        %1827 = vmatprep.subr.bf16.mxu0 0
        %1828 = vmatpush1.bf16.msra.mxu0 0
        %1829 = vmatprep.subr.bf16.mxu0 0
        %1830 = vmatpush1.bf16.msra.mxu0 0
        %1831 = vmatprep.subr.bf16.mxu0 0
        %1832 = vmatpush1.bf16.msra.mxu0 0
        %1833 = vmatprep.subr.bf16.mxu0 0
        %1834 = vmatpush1.bf16.msra.mxu0 0
        %1835 = vmatprep.subr.bf16.mxu0 0
        %1836 = vmatpush1.bf16.msra.mxu0 0
        %1837 = vmatprep.subr.bf16.mxu0 0
        %1838 = vmatpush1.bf16.msra.mxu0 0
        %1839 = vmatprep.subr.bf16.mxu0 0
        %1840 = vmatpush1.bf16.msra.mxu0 0
        %1841 = vmatprep.subr.bf16.mxu0 0
        %1842 = vmatpush1.bf16.msra.mxu0 0
        %1843 = vmatprep.subr.bf16.mxu0 0
        %1844 = vmatpush1.bf16.msra.mxu0 0
        %1845 = vmatprep.subr.bf16.mxu0 0
        %1846 = vmatpush1.bf16.msra.mxu0 0
        %1847 = vmatprep.subr.bf16.mxu0 0
        %1848 = vmatpush1.bf16.msra.mxu0 0
        %1849 = vmatprep.subr.bf16.mxu0 0
        %1850 = vmatpush1.bf16.msra.mxu0 0
        %1851 = vmatprep.mubr.bf16.mxu0 0
        %1852 = vmatmul.mubr.bf16.gmra.mrb[0].mxu0 %v1817
        %v1853 = vpop.f32.mrb[0].mxu0
        %v1854 = vadd.f32 %v1802, %v1853
        %v1855 = vpop.f32.mrb[0].mxu0
        %v1856 = vpop.f32.mrb[0].mxu0
        %v1857 = vadd.f32 %v1802, %v1856
        %v1858 = vpop.f32.mrb[0].mxu0
        %1859 = vdwg.mxu0
        %v1860 = vmul.f32 %v1854, %v1067
        %v1861 = vmul.f32 %v1857, %v1068
        %v1862 = vmul.f32 %v1854, %v1069
        %v1863 = vmul.f32 %v1857, %v1070
        %v1864 = vmul.f32 %v1854, %v1071
        %v1865 = vmul.f32 %v1857, %v1072
        %v1866 = vmul.f32 %v1854, %v1073
        %v1867 = vmul.f32 %v1857, %v1074
        %v1868 = vpack.c.bf16 %v1861, %v1860
        %v1869 = vpack.c.bf16 %v1863, %v1862
        %v1870 = vpack.c.bf16 %v1865, %v1864
        %v1871 = vpack.c.bf16 %v1867, %v1866
        %v1872 = vld [vmem:[%s31] sm:$0xf]
        %v1873 = vld [vmem:[%s31 + $0x4] sm:$0xf]
        %v1874 = vld [vmem:[%s31 + $0x8] sm:$0xf]
        %v1875 = vld [vmem:[%s31 + $0xc] sm:$0xf]
        %v1876 = vld [vmem:[%s33] sm:$0x1]
        %v1878 = vlaneseq
        %v1879 = vshrl.u32 %v1878, 7
        %v1880 = vsub.s32 0, %v1879
        %v1881 = vrot.slane %v1876, %v1880
        %v1887 = vunpack.c.l.b16 %v1781
        %v1888 = vunpack.c.l.b16 %v1782
        %v1889 = vunpack.c.l.b16 %v1783
        %v1890 = vunpack.c.l.b16 %v1784
        %v1891 = vpack.c.b16 %v1888, %v1887
        %v1892 = vpack.c.b16 %v1890, %v1889
        %v1897 = vunpack.c.l.b16 %v1872
        %v1898 = vunpack.c.l.b16 %v1873
        %v1899 = vunpack.c.l.b16 %v1874
        %v1900 = vunpack.c.l.b16 %v1875
        %v1901 = vpack.c.b16 %v1898, %v1897
        %v1902 = vpack.c.b16 %v1900, %v1899
        %v1906 = vsel %vm1177, %v1891, 0
        %v1909 = vsel %vm1177, %v1892, 0
        %1911 = vmatprep.subr.bf16.mxu0 0
        %1912 = vmatpush1.bf16.msra.mxu0 %v1901
        %1913 = vmatprep.subr.bf16.mxu0 0
        %1914 = vmatpush1.bf16.msra.mxu0 %v1902
        %1915 = vmatprep.subr.bf16.mxu0 0
        %1916 = vmatpush1.bf16.msra.mxu0 0
        %1917 = vmatprep.subr.bf16.mxu0 0
        %1918 = vmatpush1.bf16.msra.mxu0 0
        %1919 = vmatprep.subr.bf16.mxu0 0
        %1920 = vmatpush1.bf16.msra.mxu0 0
        %1921 = vmatprep.subr.bf16.mxu0 0
        %1922 = vmatpush1.bf16.msra.mxu0 0
        %1923 = vmatprep.subr.bf16.mxu0 0
        %1924 = vmatpush1.bf16.msra.mxu0 0
        %1925 = vmatprep.subr.bf16.mxu0 0
        %1926 = vmatpush1.bf16.msra.mxu0 0
        %1927 = vmatprep.subr.bf16.mxu0 0
        %1928 = vmatpush1.bf16.msra.mxu0 0
        %1929 = vmatprep.subr.bf16.mxu0 0
        %1930 = vmatpush1.bf16.msra.mxu0 0
        %1931 = vmatprep.subr.bf16.mxu0 0
        %1932 = vmatpush1.bf16.msra.mxu0 0
        %1933 = vmatprep.subr.bf16.mxu0 0
        %1934 = vmatpush1.bf16.msra.mxu0 0
        %1935 = vmatprep.subr.bf16.mxu0 0
        %1936 = vmatpush1.bf16.msra.mxu0 0
        %1937 = vmatprep.subr.bf16.mxu0 0
        %1938 = vmatpush1.bf16.msra.mxu0 0
        %1939 = vmatprep.subr.bf16.mxu0 0
        %1940 = vmatpush1.bf16.msra.mxu0 0
        %1941 = vmatprep.subr.bf16.mxu0 0
        %1942 = vmatpush1.bf16.msra.mxu0 0
        %1943 = vmatprep.mubr.bf16.mxu0 0
        %1944 = vmatmul.mubr.bf16.gmra.mrb[0].mxu0 %v1906
        %v1945 = vpop.f32.mrb[0].mxu0
        %v1946 = vadd.f32 %v1881, %v1945
        %v1947 = vpop.f32.mrb[0].mxu0
        %v1948 = vpop.f32.mrb[0].mxu0
        %v1949 = vadd.f32 %v1881, %v1948
        %v1950 = vpop.f32.mrb[0].mxu0
        %1951 = vmatprep.mubr.bf16.mxu0 0
        %1952 = vmatmul.mubr.bf16.gmra.mrb[0].mxu0 %v1909
        %v1953 = vpop.f32.mrb[0].mxu0
        %v1954 = vadd.f32 %v1881, %v1953
        %v1955 = vpop.f32.mrb[0].mxu0
        %v1956 = vpop.f32.mrb[0].mxu0
        %v1957 = vadd.f32 %v1881, %v1956
        %v1958 = vpop.f32.mrb[0].mxu0
        %1959 = vdwg.mxu0
        %v1960 = vpack.c.bf16 %v1949, %v1946
        %v1961 = vpack.c.bf16 %v1957, %v1954
        %v1962 = vld [vmem:[%s35] sm:$0xf]
        %v1963 = vld [vmem:[%s35 + $0x4] sm:$0xf]
        %v1964 = vld [vmem:[%s35 + $0x8] sm:$0xf]
        %v1965 = vld [vmem:[%s35 + $0xc] sm:$0xf]
        %v1966 = vld [vmem:[%s37] sm:$0x1]
        %v1968 = vlaneseq
        %v1969 = vshrl.u32 %v1968, 7
        %v1970 = vsub.s32 0, %v1969
        %v1971 = vrot.slane %v1966, %v1970
        %v1977 = vunpack.c.l.b16 %v1962
        %v1978 = vunpack.c.l.b16 %v1963
        %v1979 = vunpack.c.l.b16 %v1964
        %v1980 = vunpack.c.l.b16 %v1965
        %v1981 = vpack.c.b16 %v1978, %v1977
        %v1982 = vpack.c.b16 %v1980, %v1979
        %1985 = vmatprep.subr.bf16.mxu0 0
        %1986 = vmatpush1.bf16.msra.mxu0 %v1981
        %1987 = vmatprep.subr.bf16.mxu0 0
        %1988 = vmatpush1.bf16.msra.mxu0 %v1982
        %1989 = vmatprep.subr.bf16.mxu0 0
        %1990 = vmatpush1.bf16.msra.mxu0 0
        %1991 = vmatprep.subr.bf16.mxu0 0
        %1992 = vmatpush1.bf16.msra.mxu0 0
        %1993 = vmatprep.subr.bf16.mxu0 0
        %1994 = vmatpush1.bf16.msra.mxu0 0
        %1995 = vmatprep.subr.bf16.mxu0 0
        %1996 = vmatpush1.bf16.msra.mxu0 0
        %1997 = vmatprep.subr.bf16.mxu0 0
        %1998 = vmatpush1.bf16.msra.mxu0 0
        %1999 = vmatprep.subr.bf16.mxu0 0
        %2000 = vmatpush1.bf16.msra.mxu0 0
        %2001 = vmatprep.subr.bf16.mxu0 0
        %2002 = vmatpush1.bf16.msra.mxu0 0
        %2003 = vmatprep.subr.bf16.mxu0 0
        %2004 = vmatpush1.bf16.msra.mxu0 0
        %2005 = vmatprep.subr.bf16.mxu0 0
        %2006 = vmatpush1.bf16.msra.mxu0 0
        %2007 = vmatprep.subr.bf16.mxu0 0
        %2008 = vmatpush1.bf16.msra.mxu0 0
        %2009 = vmatprep.subr.bf16.mxu0 0
        %2010 = vmatpush1.bf16.msra.mxu0 0
        %2011 = vmatprep.subr.bf16.mxu0 0
        %2012 = vmatpush1.bf16.msra.mxu0 0
        %2013 = vmatprep.subr.bf16.mxu0 0
        %2014 = vmatpush1.bf16.msra.mxu0 0
        %2015 = vmatprep.subr.bf16.mxu0 0
        %2016 = vmatpush1.bf16.msra.mxu0 0
        %2017 = vmatprep.mubr.bf16.mxu0 0
        %2018 = vmatmul.mubr.bf16.gmra.mrb[0].mxu0 %v1906
        %v2019 = vpop.f32.mrb[0].mxu0
        %v2020 = vadd.f32 %v1971, %v2019
        %v2021 = vpop.f32.mrb[0].mxu0
        %v2022 = vpop.f32.mrb[0].mxu0
        %v2023 = vadd.f32 %v1971, %v2022
        %v2024 = vpop.f32.mrb[0].mxu0
        %2025 = vmatprep.mubr.bf16.mxu0 0
        %2026 = vmatmul.mubr.bf16.gmra.mrb[0].mxu0 %v1909
        %v2027 = vpop.f32.mrb[0].mxu0
        %v2028 = vadd.f32 %v1971, %v2027
        %v2029 = vpop.f32.mrb[0].mxu0
        %v2030 = vpop.f32.mrb[0].mxu0
        %v2031 = vadd.f32 %v1971, %v2030
        %v2032 = vpop.f32.mrb[0].mxu0
        %2033 = vdwg.mxu0
        %v2034 = vpack.c.bf16 %v2023, %v2020
        %v2035 = vpack.c.bf16 %v2031, %v2028
        %v2037 = vsel %vm1177, %v1868, 0
        %v2040 = vsel %vm1177, %v1869, 0
        %v2043 = vsel %vm1177, %v1870, 0
        %v2046 = vsel %vm1177, %v1871, 0
        %v2049 = vsel %vm1177, %v1960, 0
        %v2052 = vsel %vm1177, %v1961, 0
        %2054 = vmatprep.subr.bf16.mxu0 0
        %2055 = vmatpush1.bf16.xpose.msra.mxu0 %v2049
        %2056 = vmatprep.subr.bf16.mxu0 0
        %2057 = vmatpush1.bf16.xpose.msra.mxu0 %v2052
        %2058 = vmatprep.subr.bf16.mxu0 0
        %2059 = vmatpush1.bf16.xpose.msra.mxu0 0
        %2060 = vmatprep.subr.bf16.mxu0 0
        %2061 = vmatpush1.bf16.xpose.msra.mxu0 0
        %2062 = vmatprep.subr.bf16.mxu0 0
        %2063 = vmatpush1.bf16.xpose.msra.mxu0 0
        %2064 = vmatprep.subr.bf16.mxu0 0
        %2065 = vmatpush1.bf16.xpose.msra.mxu0 0
        %2066 = vmatprep.subr.bf16.mxu0 0
        %2067 = vmatpush1.bf16.xpose.msra.mxu0 0
        %2068 = vmatprep.subr.bf16.mxu0 0
        %2069 = vmatpush1.bf16.xpose.msra.mxu0 0
        %2070 = vmatprep.subr.bf16.mxu0 0
        %2071 = vmatpush1.bf16.xpose.msra.mxu0 0
        %2072 = vmatprep.subr.bf16.mxu0 0
        %2073 = vmatpush1.bf16.xpose.msra.mxu0 0
        %2074 = vmatprep.subr.bf16.mxu0 0
        %2075 = vmatpush1.bf16.xpose.msra.mxu0 0
        %2076 = vmatprep.subr.bf16.mxu0 0
        %2077 = vmatpush1.bf16.xpose.msra.mxu0 0
        %2078 = vmatprep.subr.bf16.mxu0 0
        %2079 = vmatpush1.bf16.xpose.msra.mxu0 0
        %2080 = vmatprep.subr.bf16.mxu0 0
        %2081 = vmatpush1.bf16.xpose.msra.mxu0 0
        %2082 = vmatprep.subr.bf16.mxu0 0
        %2083 = vmatpush1.bf16.xpose.msra.mxu0 0
        %2084 = vmatprep.subr.bf16.mxu0 0
        %2085 = vmatpush1.bf16.xpose.msra.mxu0 0
        %2086 = vmatprep.mubr.bf16.mxu0 0
        %2087 = vmatmul.mubr.bf16.gmra.mrb[0].mxu0 %v2037
        %v2088 = vpop.f32.mrb[0].mxu0
        %v2089 = vadd.f32 %v1785, %v2088
        %v2090 = vpop.f32.mrb[0].mxu0
        %v2091 = vpop.f32.mrb[0].mxu0
        %v2092 = vadd.f32 %v1786, %v2091
        %v2093 = vpop.f32.mrb[0].mxu0
        %2094 = vmatprep.mubr.bf16.mxu0 0
        %2095 = vmatmul.mubr.bf16.gmra.mrb[0].mxu0 %v2040
        %v2096 = vpop.f32.mrb[0].mxu0
        %v2097 = vadd.f32 %v1787, %v2096
        %v2098 = vpop.f32.mrb[0].mxu0
        %v2099 = vpop.f32.mrb[0].mxu0
        %v2100 = vadd.f32 %v1788, %v2099
        %v2101 = vpop.f32.mrb[0].mxu0
        %2102 = vmatprep.mubr.bf16.mxu0 0
        %2103 = vmatmul.mubr.bf16.gmra.mrb[0].mxu0 %v2043
        %v2104 = vpop.f32.mrb[0].mxu0
        %v2105 = vadd.f32 %v1789, %v2104
        %v2106 = vpop.f32.mrb[0].mxu0
        %v2107 = vpop.f32.mrb[0].mxu0
        %v2108 = vadd.f32 %v1790, %v2107
        %v2109 = vpop.f32.mrb[0].mxu0
        %2110 = vmatprep.mubr.bf16.mxu0 0
        %2111 = vmatmul.mubr.bf16.gmra.mrb[0].mxu0 %v2046
        %v2112 = vpop.f32.mrb[0].mxu0
        %v2113 = vadd.f32 %v1791, %v2112
        %v2114 = vpop.f32.mrb[0].mxu0
        %v2115 = vpop.f32.mrb[0].mxu0
        %v2116 = vadd.f32 %v1792, %v2115
        %v2117 = vpop.f32.mrb[0].mxu0
        %2118 = vdwg.mxu0
        %v2119 = vsel %vm1177, %v2089, -inf
        %2120 = vmax.xlane.f32.xlu0 %v2119
        %v2121 = vpop.xlane.xlu0 %2120
        %v2122 = vsel %vm1177, %v2092, -inf
        %2123 = vmax.xlane.f32.xlu0 %v2122
        %v2124 = vpop.xlane.xlu0 %2123
        %v2125 = vsel %vm1177, %v2097, -inf
        %2126 = vmax.xlane.f32.xlu0 %v2125
        %v2127 = vpop.xlane.xlu0 %2126
        %v2128 = vsel %vm1177, %v2100, -inf
        %2129 = vmax.xlane.f32.xlu0 %v2128
        %v2130 = vpop.xlane.xlu0 %2129
        %v2131 = vsel %vm1177, %v2105, -inf
        %2132 = vmax.xlane.f32.xlu0 %v2131
        %v2133 = vpop.xlane.xlu0 %2132
        %v2134 = vsel %vm1177, %v2108, -inf
        %2135 = vmax.xlane.f32.xlu0 %v2134
        %v2136 = vpop.xlane.xlu0 %2135
        %v2137 = vsel %vm1177, %v2113, -inf
        %2138 = vmax.xlane.f32.xlu0 %v2137
        %v2139 = vpop.xlane.xlu0 %2138
        %v2140 = vsel %vm1177, %v2116, -inf
        %2141 = vmax.xlane.f32.xlu0 %v2140
        %v2142 = vpop.xlane.xlu0 %2141
        %v2143 = vsub.f32 %v2089, %v2121
        %v2144 = vsub.f32 %v2092, %v2124
        %v2145 = vsub.f32 %v2097, %v2127
        %v2146 = vsub.f32 %v2100, %v2130
        %v2147 = vsub.f32 %v2105, %v2133
        %v2148 = vsub.f32 %v2108, %v2136
        %v2149 = vsub.f32 %v2113, %v2139
        %v2150 = vsub.f32 %v2116, %v2142
        %v2151 = vmul.f32 %v2143, 1.442695
        %v2152 = vpow.pop %v2151
        %v2153 = vmul.f32 %v2144, 1.442695
        %v2154 = vpow.pop %v2153
        %v2155 = vmul.f32 %v2145, 1.442695
        %v2156 = vpow.pop %v2155
        %v2157 = vmul.f32 %v2146, 1.442695
        %v2158 = vpow.pop %v2157
        %v2159 = vmul.f32 %v2147, 1.442695
        %v2160 = vpow.pop %v2159
        %v2161 = vmul.f32 %v2148, 1.442695
        %v2162 = vpow.pop %v2161
        %v2163 = vmul.f32 %v2149, 1.442695
        %v2164 = vpow.pop %v2163
        %v2165 = vmul.f32 %v2150, 1.442695
        %v2166 = vpow.pop %v2165
        %v2167 = vsel %vm1177, %v2152, 0.0
        %2168 = vadd.xlane.f32.xlu0 %v2167
        %v2169 = vpop.xlane.xlu0 %2168
        %v2170 = vsel %vm1177, %v2154, 0.0
        %2171 = vadd.xlane.f32.xlu0 %v2170
        %v2172 = vpop.xlane.xlu0 %2171
        %v2173 = vsel %vm1177, %v2156, 0.0
        %2174 = vadd.xlane.f32.xlu0 %v2173
        %v2175 = vpop.xlane.xlu0 %2174
        %v2176 = vsel %vm1177, %v2158, 0.0
        %2177 = vadd.xlane.f32.xlu0 %v2176
        %v2178 = vpop.xlane.xlu0 %2177
        %v2179 = vsel %vm1177, %v2160, 0.0
        %2180 = vadd.xlane.f32.xlu0 %v2179
        %v2181 = vpop.xlane.xlu0 %2180
        %v2182 = vsel %vm1177, %v2162, 0.0
        %2183 = vadd.xlane.f32.xlu0 %v2182
        %v2184 = vpop.xlane.xlu0 %2183
        %v2185 = vsel %vm1177, %v2164, 0.0
        %2186 = vadd.xlane.f32.xlu0 %v2185
        %v2187 = vpop.xlane.xlu0 %2186
        %v2188 = vsel %vm1177, %v2166, 0.0
        %2189 = vadd.xlane.f32.xlu0 %v2188
        %v2190 = vpop.xlane.xlu0 %2189
        %v2191 = vrcp.pop %v2169
        %v2192 = vrcp.pop %v2172
        %v2193 = vrcp.pop %v2175
        %v2194 = vrcp.pop %v2178
        %v2195 = vrcp.pop %v2181
        %v2196 = vrcp.pop %v2184
        %v2197 = vrcp.pop %v2187
        %v2198 = vrcp.pop %v2190
        %v2199 = vmul.f32 %v2152, %v2191
        %v2200 = vmul.f32 %v2154, %v2192
        %v2201 = vmul.f32 %v2156, %v2193
        %v2202 = vmul.f32 %v2158, %v2194
        %v2203 = vmul.f32 %v2160, %v2195
        %v2204 = vmul.f32 %v2162, %v2196
        %v2205 = vmul.f32 %v2164, %v2197
        %v2206 = vmul.f32 %v2166, %v2198
        %v2207 = vpack.c.bf16 %v2200, %v2199
        %v2208 = vpack.c.bf16 %v2202, %v2201
        %v2209 = vpack.c.bf16 %v2204, %v2203
        %v2210 = vpack.c.bf16 %v2206, %v2205
        %v2212 = vsel %vm1177, %v2207, 0
        %v2215 = vsel %vm1177, %v2208, 0
        %v2218 = vsel %vm1177, %v2209, 0
        %v2221 = vsel %vm1177, %v2210, 0
        %2223 = vmatprep.subr.bf16.mxu0 0
        %2224 = vmatpush1.bf16.msra.mxu0 %v2034
        %2225 = vmatprep.subr.bf16.mxu0 0
        %2226 = vmatpush1.bf16.msra.mxu0 %v2035
        %2227 = vmatprep.subr.bf16.mxu0 0
        %2228 = vmatpush1.bf16.msra.mxu0 0
        %2229 = vmatprep.subr.bf16.mxu0 0
        %2230 = vmatpush1.bf16.msra.mxu0 0
        %2231 = vmatprep.subr.bf16.mxu0 0
        %2232 = vmatpush1.bf16.msra.mxu0 0
        %2233 = vmatprep.subr.bf16.mxu0 0
        %2234 = vmatpush1.bf16.msra.mxu0 0
        %2235 = vmatprep.subr.bf16.mxu0 0
        %2236 = vmatpush1.bf16.msra.mxu0 0
        %2237 = vmatprep.subr.bf16.mxu0 0
        %2238 = vmatpush1.bf16.msra.mxu0 0
        %2239 = vmatprep.subr.bf16.mxu0 0
        %2240 = vmatpush1.bf16.msra.mxu0 0
        %2241 = vmatprep.subr.bf16.mxu0 0
        %2242 = vmatpush1.bf16.msra.mxu0 0
        %2243 = vmatprep.subr.bf16.mxu0 0
        %2244 = vmatpush1.bf16.msra.mxu0 0
        %2245 = vmatprep.subr.bf16.mxu0 0
        %2246 = vmatpush1.bf16.msra.mxu0 0
        %2247 = vmatprep.subr.bf16.mxu0 0
        %2248 = vmatpush1.bf16.msra.mxu0 0
        %2249 = vmatprep.subr.bf16.mxu0 0
        %2250 = vmatpush1.bf16.msra.mxu0 0
        %2251 = vmatprep.subr.bf16.mxu0 0
        %2252 = vmatpush1.bf16.msra.mxu0 0
        %2253 = vmatprep.subr.bf16.mxu0 0
        %2254 = vmatpush1.bf16.msra.mxu0 0
        %2255 = vmatprep.mubr.bf16.mxu0 0
        %2256 = vmatmul.mubr.bf16.gmra.mrb[0].mxu0 %v2212
        %v2257 = vpop.f32.mrb[0].mxu0
        %v2258 = vadd.f32 0.0, %v2257
        %v2259 = vpop.f32.mrb[0].mxu0
        %v2260 = vpop.f32.mrb[0].mxu0
        %v2261 = vadd.f32 0.0, %v2260
        %v2262 = vpop.f32.mrb[0].mxu0
        %2263 = vmatprep.mubr.bf16.mxu0 0
        %2264 = vmatmul.mubr.bf16.gmra.mrb[0].mxu0 %v2215
        %v2265 = vpop.f32.mrb[0].mxu0
        %v2266 = vadd.f32 0.0, %v2265
        %v2267 = vpop.f32.mrb[0].mxu0
        %v2268 = vpop.f32.mrb[0].mxu0
        %v2269 = vadd.f32 0.0, %v2268
        %v2270 = vpop.f32.mrb[0].mxu0
        %2271 = vmatprep.mubr.bf16.mxu0 0
        %2272 = vmatmul.mubr.bf16.gmra.mrb[0].mxu0 %v2218
        %v2273 = vpop.f32.mrb[0].mxu0
        %v2274 = vadd.f32 0.0, %v2273
        %v2275 = vpop.f32.mrb[0].mxu0
        %v2276 = vpop.f32.mrb[0].mxu0
        %v2277 = vadd.f32 0.0, %v2276
        %v2278 = vpop.f32.mrb[0].mxu0
        %2279 = vmatprep.mubr.bf16.mxu0 0
        %2280 = vmatmul.mubr.bf16.gmra.mrb[0].mxu0 %v2221
        %v2281 = vpop.f32.mrb[0].mxu0
        %v2282 = vadd.f32 0.0, %v2281
        %v2283 = vpop.f32.mrb[0].mxu0
        %v2284 = vpop.f32.mrb[0].mxu0
        %v2285 = vadd.f32 0.0, %v2284
        %v2286 = vpop.f32.mrb[0].mxu0
        %2287 = vdwg.mxu0
        %v2288 = vmul.f32 %v2258, %v1067
        %v2289 = vmul.f32 %v2261, %v1068
        %v2290 = vmul.f32 %v2266, %v1069
        %v2291 = vmul.f32 %v2269, %v1070
        %v2292 = vmul.f32 %v2274, %v1071
        %v2293 = vmul.f32 %v2277, %v1072
        %v2294 = vmul.f32 %v2282, %v1073
        %v2295 = vmul.f32 %v2285, %v1074
        %v2296 = vpack.c.bf16 %v2289, %v2288
        %v2297 = vpack.c.bf16 %v2291, %v2290
        %v2298 = vpack.c.bf16 %v2293, %v2292
        %v2299 = vpack.c.bf16 %v2295, %v2294
        %v2300 = vld [vmem:[%s39] sm:$0xf]
        %v2301 = vld [vmem:[%s39 + $0x4] sm:$0xf]
        %v2302 = vld [vmem:[%s39 + $0x8] sm:$0xf]
        %v2303 = vld [vmem:[%s39 + $0xc] sm:$0xf]
        %v2308 = vunpack.c.l.b16 %v2300
        %v2309 = vunpack.c.l.b16 %v2301
        %v2310 = vunpack.c.l.b16 %v2302
        %v2311 = vunpack.c.l.b16 %v2303
        %v2312 = vpack.c.b16 %v2309, %v2308
        %v2313 = vpack.c.b16 %v2311, %v2310
        %v2317 = vsel %vm1177, %v2296, 0
        %v2320 = vsel %vm1177, %v2297, 0
        %v2323 = vsel %vm1177, %v2298, 0
        %v2326 = vsel %vm1177, %v2299, 0
        %2328 = vmatprep.subr.bf16.mxu0 0
        %2329 = vmatpush1.bf16.msra.mxu0 %v2312
        %2330 = vmatprep.subr.bf16.mxu0 0
        %2331 = vmatpush1.bf16.msra.mxu0 %v2313
        %2332 = vmatprep.subr.bf16.mxu0 0
        %2333 = vmatpush1.bf16.msra.mxu0 0
        %2334 = vmatprep.subr.bf16.mxu0 0
        %2335 = vmatpush1.bf16.msra.mxu0 0
        %2336 = vmatprep.subr.bf16.mxu0 0
        %2337 = vmatpush1.bf16.msra.mxu0 0
        %2338 = vmatprep.subr.bf16.mxu0 0
        %2339 = vmatpush1.bf16.msra.mxu0 0
        %2340 = vmatprep.subr.bf16.mxu0 0
        %2341 = vmatpush1.bf16.msra.mxu0 0
        %2342 = vmatprep.subr.bf16.mxu0 0
        %2343 = vmatpush1.bf16.msra.mxu0 0
        %2344 = vmatprep.subr.bf16.mxu0 0
        %2345 = vmatpush1.bf16.msra.mxu0 0
        %2346 = vmatprep.subr.bf16.mxu0 0
        %2347 = vmatpush1.bf16.msra.mxu0 0
        %2348 = vmatprep.subr.bf16.mxu0 0
        %2349 = vmatpush1.bf16.msra.mxu0 0
        %2350 = vmatprep.subr.bf16.mxu0 0
        %2351 = vmatpush1.bf16.msra.mxu0 0
        %2352 = vmatprep.subr.bf16.mxu0 0
        %2353 = vmatpush1.bf16.msra.mxu0 0
        %2354 = vmatprep.subr.bf16.mxu0 0
        %2355 = vmatpush1.bf16.msra.mxu0 0
        %2356 = vmatprep.subr.bf16.mxu0 0
        %2357 = vmatpush1.bf16.msra.mxu0 0
        %2358 = vmatprep.subr.bf16.mxu0 0
        %2359 = vmatpush1.bf16.msra.mxu0 0
        %2360 = vmatprep.mubr.bf16.mxu0 0
        %2361 = vmatmul.mubr.bf16.gmra.mrb[0].mxu0 %v2317
        %v2362 = vpop.f32.mrb[0].mxu0
        %v2363 = vadd.f32 0.0, %v2362
        %v2364 = vpop.f32.mrb[0].mxu0
        %v2365 = vpop.f32.mrb[0].mxu0
        %v2366 = vadd.f32 0.0, %v2365
        %v2367 = vpop.f32.mrb[0].mxu0
        %2368 = vmatprep.mubr.bf16.mxu0 0
        %2369 = vmatmul.mubr.bf16.gmra.mrb[0].mxu0 %v2320
        %v2370 = vpop.f32.mrb[0].mxu0
        %v2371 = vadd.f32 0.0, %v2370
        %v2372 = vpop.f32.mrb[0].mxu0
        %v2373 = vpop.f32.mrb[0].mxu0
        %v2374 = vadd.f32 0.0, %v2373
        %v2375 = vpop.f32.mrb[0].mxu0
        %2376 = vmatprep.mubr.bf16.mxu0 0
        %2377 = vmatmul.mubr.bf16.gmra.mrb[0].mxu0 %v2323
        %v2378 = vpop.f32.mrb[0].mxu0
        %v2379 = vadd.f32 0.0, %v2378
        %v2380 = vpop.f32.mrb[0].mxu0
        %v2381 = vpop.f32.mrb[0].mxu0
        %v2382 = vadd.f32 0.0, %v2381
        %v2383 = vpop.f32.mrb[0].mxu0
        %2384 = vmatprep.mubr.bf16.mxu0 0
        %2385 = vmatmul.mubr.bf16.gmra.mrb[0].mxu0 %v2326
        %v2386 = vpop.f32.mrb[0].mxu0
        %v2387 = vadd.f32 0.0, %v2386
        %v2388 = vpop.f32.mrb[0].mxu0
        %v2389 = vpop.f32.mrb[0].mxu0
        %v2390 = vadd.f32 0.0, %v2389
        %v2391 = vpop.f32.mrb[0].mxu0
        %2392 = vdwg.mxu0
        %v2393 = vadd.f32 %v2363, %v2371
        %v2394 = vadd.f32 %v2366, %v2374
        %v2395 = vadd.f32 %v2393, %v2379
        %v2396 = vadd.f32 %v2394, %v2382
        %v2397 = vadd.f32 %v2395, %v2387
        %v2398 = vadd.f32 %v2396, %v2390
        %v2399 = vld [vmem:[%s41] sm:$0x1]
        %v2401 = vlaneseq
        %v2402 = vshrl.u32 %v2401, 7
        %v2403 = vsub.s32 0, %v2402
        %v2404 = vrot.slane %v2399, %v2403
        %v2406 = vadd.f32 %v2397, %v2404
        %v2407 = vadd.f32 %v2398, %v2404
        %v2408 = vadd.f32 %v2406, %v1778
        %v2409 = vadd.f32 %v2407, %v1779
        %v2410 = vld [vmem:[%s43] sm:$0x1]
        %v2411 = vld [vmem:[%s45] sm:$0x1]
        %v2412 = vsel %vm1177, %v2408, 0.0
        %2413 = vadd.xlane.f32.xlu0 %v2412
        %v2414 = vpop.xlane.xlu0 %2413
        %v2415 = vsel %vm1177, %v2409, 0.0
        %2416 = vadd.xlane.f32.xlu0 %v2415
        %v2417 = vpop.xlane.xlu0 %2416
        %v2418 = vmul.f32 %v2414, %v1743
        %v2419 = vmul.f32 %v2417, %v1743
        %v2420 = vsub.f32 %v2408, %v2418
        %v2421 = vsub.f32 %v2409, %v2419
        %v2422 = vmul.f32 %v2420, %v2420
        %v2423 = vmul.f32 %v2421, %v2421
        %v2424 = vsel %vm1177, %v2422, 0.0
        %2425 = vadd.xlane.f32.xlu0 %v2424
        %v2426 = vpop.xlane.xlu0 %2425
        %v2427 = vsel %vm1177, %v2423, 0.0
        %2428 = vadd.xlane.f32.xlu0 %v2427
        %v2429 = vpop.xlane.xlu0 %2428
        %v2430 = vmul.f32 %v2426, %v1743
        %v2431 = vmul.f32 %v2429, %v1743
        %v2432 = vadd.f32 %v2430, 1e-05
        %v2433 = vadd.f32 %v2431, 1e-05
        %v2434 = vrsqrt.pop %v2432
        %v2435 = vrsqrt.pop %v2433
        %v2436 = vmul.f32 %v2420, %v2434
        %v2437 = vmul.f32 %v2421, %v2435
        %v2439 = vlaneseq
        %v2440 = vshrl.u32 %v2439, 7
        %v2441 = vsub.s32 0, %v2440
        %v2442 = vrot.slane %v2410, %v2441
        %v2444 = vmul.f32 %v2436, %v2442
        %v2445 = vmul.f32 %v2437, %v2442
        %v2447 = vlaneseq
        %v2448 = vshrl.u32 %v2447, 7
        %v2449 = vsub.s32 0, %v2448
        %v2450 = vrot.slane %v2411, %v2449
        %v2452 = vadd.f32 %v2444, %v2450
        %v2453 = vadd.f32 %v2445, %v2450
        %v2454 = vpack.c.bf16 %v2453, %v2452
        %v2455 = vld [vmem:[%s47] sm:$0xf]
        %v2456 = vld [vmem:[%s47 + $0x4] sm:$0xf]
        %v2457 = vld [vmem:[%s47 + $0x8] sm:$0xf]
        %v2458 = vld [vmem:[%s47 + $0xc] sm:$0xf]
        %v2459 = vld [vmem:[%s49] sm:$0x1]
        %v2461 = vlaneseq
        %v2462 = vshrl.u32 %v2461, 7
        %v2463 = vsub.s32 0, %v2462
        %v2464 = vrot.slane %v2459, %v2463
        %v2470 = vunpack.c.l.b16 %v2455
        %v2471 = vunpack.c.l.b16 %v2456
        %v2472 = vunpack.c.l.b16 %v2457
        %v2473 = vunpack.c.l.b16 %v2458
        %v2474 = vpack.c.b16 %v2471, %v2470
        %v2475 = vpack.c.b16 %v2473, %v2472
        %v2479 = vsel %vm1177, %v2454, 0
        %2481 = vmatprep.subr.bf16.mxu0 0
        %2482 = vmatpush1.bf16.msra.mxu0 %v2474
        %2483 = vmatprep.subr.bf16.mxu0 0
        %2484 = vmatpush1.bf16.msra.mxu0 %v2475
        %2485 = vmatprep.subr.bf16.mxu0 0
        %2486 = vmatpush1.bf16.msra.mxu0 0
        %2487 = vmatprep.subr.bf16.mxu0 0
        %2488 = vmatpush1.bf16.msra.mxu0 0
        %2489 = vmatprep.subr.bf16.mxu0 0
        %2490 = vmatpush1.bf16.msra.mxu0 0
        %2491 = vmatprep.subr.bf16.mxu0 0
        %2492 = vmatpush1.bf16.msra.mxu0 0
        %2493 = vmatprep.subr.bf16.mxu0 0
        %2494 = vmatpush1.bf16.msra.mxu0 0
        %2495 = vmatprep.subr.bf16.mxu0 0
        %2496 = vmatpush1.bf16.msra.mxu0 0
        %2497 = vmatprep.subr.bf16.mxu0 0
        %2498 = vmatpush1.bf16.msra.mxu0 0
        %2499 = vmatprep.subr.bf16.mxu0 0
        %2500 = vmatpush1.bf16.msra.mxu0 0
        %2501 = vmatprep.subr.bf16.mxu0 0
        %2502 = vmatpush1.bf16.msra.mxu0 0
        %2503 = vmatprep.subr.bf16.mxu0 0
        %2504 = vmatpush1.bf16.msra.mxu0 0
        %2505 = vmatprep.subr.bf16.mxu0 0
        %2506 = vmatpush1.bf16.msra.mxu0 0
        %2507 = vmatprep.subr.bf16.mxu0 0
        %2508 = vmatpush1.bf16.msra.mxu0 0
        %2509 = vmatprep.subr.bf16.mxu0 0
        %2510 = vmatpush1.bf16.msra.mxu0 0
        %2511 = vmatprep.subr.bf16.mxu0 0
        %2512 = vmatpush1.bf16.msra.mxu0 0
        %2513 = vmatprep.mubr.bf16.mxu0 0
        %2514 = vmatmul.mubr.bf16.gmra.mrb[0].mxu0 %v2479
        %v2515 = vpop.f32.mrb[0].mxu0
        %v2516 = vadd.f32 %v2464, %v2515
        %v2517 = vpop.f32.mrb[0].mxu0
        %v2518 = vpop.f32.mrb[0].mxu0
        %v2519 = vadd.f32 %v2464, %v2518
        %v2520 = vpop.f32.mrb[0].mxu0
        %2521 = vdwg.mxu0
        %v2522 = vmax.f32 %v2516, 0.0
        %v2523 = vmax.f32 %v2519, 0.0
        %v2524 = vpack.c.bf16 %v2523, %v2522
        %v2525 = vld [vmem:[%s51] sm:$0xf]
        %v2526 = vld [vmem:[%s51 + $0x4] sm:$0xf]
        %v2527 = vld [vmem:[%s51 + $0x8] sm:$0xf]
        %v2528 = vld [vmem:[%s51 + $0xc] sm:$0xf]
        %v2529 = vld [vmem:[%s51 + $0x10] sm:$0xf]
        %v2530 = vld [vmem:[%s51 + $0x14] sm:$0xf]
        %v2531 = vld [vmem:[%s51 + $0x18] sm:$0xf]
        %v2532 = vld [vmem:[%s51 + $0x1c] sm:$0xf]
        %v2533 = vld [vmem:[%s53] sm:$0x1]
        %v2535 = vlaneseq
        %v2536 = vshrl.u32 %v2535, 7
        %v2537 = vsub.s32 0, %v2536
        %v2538 = vrot.slane %v2533, %v2537
        %v2548 = vunpack.c.l.b16 %v2525
        %v2549 = vunpack.c.l.b16 %v2526
        %v2550 = vunpack.c.l.b16 %v2527
        %v2551 = vunpack.c.l.b16 %v2528
        %v2552 = vunpack.c.l.b16 %v2529
        %v2553 = vunpack.c.l.b16 %v2530
        %v2554 = vunpack.c.l.b16 %v2531
        %v2555 = vunpack.c.l.b16 %v2532
        %v2556 = vpack.c.b16 %v2549, %v2548
        %v2557 = vpack.c.b16 %v2551, %v2550
        %v2558 = vpack.c.b16 %v2553, %v2552
        %v2559 = vpack.c.b16 %v2555, %v2554
        %vm2564 = vcmask 523264
        %v2566 = vsel %vm2564, %v2524, 0
        %2568 = vmatprep.subr.bf16.mxu0 0
        %2569 = vmatpush1.bf16.msra.mxu0 %v2556
        %2570 = vmatprep.subr.bf16.mxu0 0
        %2571 = vmatpush1.bf16.msra.mxu0 %v2557
        %2572 = vmatprep.subr.bf16.mxu0 0
        %2573 = vmatpush1.bf16.msra.mxu0 %v2558
        %2574 = vmatprep.subr.bf16.mxu0 0
        %2575 = vmatpush1.bf16.msra.mxu0 %v2559
        %2576 = vmatprep.subr.bf16.mxu0 0
        %2577 = vmatpush1.bf16.msra.mxu0 0
        %2578 = vmatprep.subr.bf16.mxu0 0
        %2579 = vmatpush1.bf16.msra.mxu0 0
        %2580 = vmatprep.subr.bf16.mxu0 0
        %2581 = vmatpush1.bf16.msra.mxu0 0
        %2582 = vmatprep.subr.bf16.mxu0 0
        %2583 = vmatpush1.bf16.msra.mxu0 0
        %2584 = vmatprep.subr.bf16.mxu0 0
        %2585 = vmatpush1.bf16.msra.mxu0 0
        %2586 = vmatprep.subr.bf16.mxu0 0
        %2587 = vmatpush1.bf16.msra.mxu0 0
        %2588 = vmatprep.subr.bf16.mxu0 0
        %2589 = vmatpush1.bf16.msra.mxu0 0
        %2590 = vmatprep.subr.bf16.mxu0 0
        %2591 = vmatpush1.bf16.msra.mxu0 0
        %2592 = vmatprep.subr.bf16.mxu0 0
        %2593 = vmatpush1.bf16.msra.mxu0 0
        %2594 = vmatprep.subr.bf16.mxu0 0
        %2595 = vmatpush1.bf16.msra.mxu0 0
        %2596 = vmatprep.subr.bf16.mxu0 0
        %2597 = vmatpush1.bf16.msra.mxu0 0
        %2598 = vmatprep.subr.bf16.mxu0 0
        %2599 = vmatpush1.bf16.msra.mxu0 0
        %2600 = vmatprep.mubr.bf16.mxu0 0
        %2601 = vmatmul.mubr.bf16.gmra.mrb[0].mxu0 %v2566
        %v2602 = vpop.f32.mrb[0].mxu0
        %v2603 = vadd.f32 %v2538, %v2602
        %v2604 = vpop.f32.mrb[0].mxu0
        %v2605 = vpop.f32.mrb[0].mxu0
        %v2606 = vadd.f32 %v2538, %v2605
        %v2607 = vpop.f32.mrb[0].mxu0
        %2608 = vdwg.mxu0
        %v2609 = vadd.f32 %v2603, %v2452
        %v2610 = vadd.f32 %v2606, %v2453
        %v2611 = vld [vmem:[%s55] sm:$0x1]
        %v2612 = vld [vmem:[%s57] sm:$0x1]
        %v2613 = vsel %vm1177, %v2609, 0.0
        %2614 = vadd.xlane.f32.xlu0 %v2613
        %v2615 = vpop.xlane.xlu0 %2614
        %v2616 = vsel %vm1177, %v2610, 0.0
        %2617 = vadd.xlane.f32.xlu0 %v2616
        %v2618 = vpop.xlane.xlu0 %2617
        %v2619 = vmul.f32 %v2615, %v1743
        %v2620 = vmul.f32 %v2618, %v1743
        %v2621 = vsub.f32 %v2609, %v2619
        %v2622 = vsub.f32 %v2610, %v2620
        %v2623 = vmul.f32 %v2621, %v2621
        %v2624 = vmul.f32 %v2622, %v2622
        %v2625 = vsel %vm1177, %v2623, 0.0
        %2626 = vadd.xlane.f32.xlu0 %v2625
        %v2627 = vpop.xlane.xlu0 %2626
        %v2628 = vsel %vm1177, %v2624, 0.0
        %2629 = vadd.xlane.f32.xlu0 %v2628
        %v2630 = vpop.xlane.xlu0 %2629
        %v2631 = vmul.f32 %v2627, %v1743
        %v2632 = vmul.f32 %v2630, %v1743
        %v2633 = vadd.f32 %v2631, 1e-05
        %v2634 = vadd.f32 %v2632, 1e-05
        %v2635 = vrsqrt.pop %v2633
        %v2636 = vrsqrt.pop %v2634
        %v2637 = vmul.f32 %v2621, %v2635
        %v2638 = vmul.f32 %v2622, %v2636
        %v2640 = vlaneseq
        %v2641 = vshrl.u32 %v2640, 7
        %v2642 = vsub.s32 0, %v2641
        %v2643 = vrot.slane %v2611, %v2642
        %v2645 = vmul.f32 %v2637, %v2643
        %v2646 = vmul.f32 %v2638, %v2643
        %v2648 = vlaneseq
        %v2649 = vshrl.u32 %v2648, 7
        %v2650 = vsub.s32 0, %v2649
        %v2651 = vrot.slane %v2612, %v2650
        %v2653 = vadd.f32 %v2645, %v2651
        %v2654 = vadd.f32 %v2646, %v2651
        %v2655 = vpack.c.bf16 %v2654, %v2653
        %v2656 = vld [vmem:[%s59] sm:$0xf]
        %v2657 = vld [vmem:[%s59 + $0x4] sm:$0xf]
        %v2658 = vld [vmem:[%s59 + $0x8] sm:$0xf]
        %v2659 = vld [vmem:[%s59 + $0xc] sm:$0xf]
        %v2660 = vld [vmem:[%s61] sm:$0x1]
        %v2662 = vlaneseq
        %v2663 = vshrl.u32 %v2662, 7
        %v2664 = vsub.s32 0, %v2663
        %v2665 = vrot.slane %v2660, %v2664
        %v2671 = vunpack.c.l.b16 %v2656
        %v2672 = vunpack.c.l.b16 %v2657
        %v2673 = vunpack.c.l.b16 %v2658
        %v2674 = vunpack.c.l.b16 %v2659
        %v2675 = vpack.c.b16 %v2672, %v2671
        %v2676 = vpack.c.b16 %v2674, %v2673
        %v2680 = vsel %vm1177, %v2655, 0
        %2682 = vmatprep.subr.bf16.mxu0 0
        %2683 = vmatpush1.bf16.msra.mxu0 %v2675
        %2684 = vmatprep.subr.bf16.mxu0 0
        %2685 = vmatpush1.bf16.msra.mxu0 %v2676
        %2686 = vmatprep.subr.bf16.mxu0 0
        %2687 = vmatpush1.bf16.msra.mxu0 0
        %2688 = vmatprep.subr.bf16.mxu0 0
        %2689 = vmatpush1.bf16.msra.mxu0 0
        %2690 = vmatprep.subr.bf16.mxu0 0
        %2691 = vmatpush1.bf16.msra.mxu0 0
        %2692 = vmatprep.subr.bf16.mxu0 0
        %2693 = vmatpush1.bf16.msra.mxu0 0
        %2694 = vmatprep.subr.bf16.mxu0 0
        %2695 = vmatpush1.bf16.msra.mxu0 0
        %2696 = vmatprep.subr.bf16.mxu0 0
        %2697 = vmatpush1.bf16.msra.mxu0 0
        %2698 = vmatprep.subr.bf16.mxu0 0
        %2699 = vmatpush1.bf16.msra.mxu0 0
        %2700 = vmatprep.subr.bf16.mxu0 0
        %2701 = vmatpush1.bf16.msra.mxu0 0
        %2702 = vmatprep.subr.bf16.mxu0 0
        %2703 = vmatpush1.bf16.msra.mxu0 0
        %2704 = vmatprep.subr.bf16.mxu0 0
        %2705 = vmatpush1.bf16.msra.mxu0 0
        %2706 = vmatprep.subr.bf16.mxu0 0
        %2707 = vmatpush1.bf16.msra.mxu0 0
        %2708 = vmatprep.subr.bf16.mxu0 0
        %2709 = vmatpush1.bf16.msra.mxu0 0
        %2710 = vmatprep.subr.bf16.mxu0 0
        %2711 = vmatpush1.bf16.msra.mxu0 0
        %2712 = vmatprep.subr.bf16.mxu0 0
        %2713 = vmatpush1.bf16.msra.mxu0 0
        %2714 = vmatprep.mubr.bf16.mxu0 0
        %2715 = vmatmul.mubr.bf16.gmra.mrb[0].mxu0 %v2680
        %v2716 = vpop.f32.mrb[0].mxu0
        %v2717 = vadd.f32 %v2665, %v2716
        %v2718 = vpop.f32.mrb[0].mxu0
        %v2719 = vpop.f32.mrb[0].mxu0
        %v2720 = vadd.f32 %v2665, %v2719
        %v2721 = vpop.f32.mrb[0].mxu0
        %2722 = vdwg.mxu0
        %2723 = vst [vmem:[%s1052] sm:$0xff] %v2717
        %2724 = vst [vmem:[%s1052 + $0x8] sm:$0xff] %v2720
        %s2725 = sand.u32 %s815, 1
        %s2726 = scalar_lea.sflag [#allocation3], %s2725
        %s2727 = sand.u32 %s815, 1
        %s2728 = smul.addr %s2727, 16
        %s2729 = scalar_lea.vmem [#allocation2], %s2728
        // Predicated region
        $region157: #{tpu_custom_call.1} parent=155 // pred_check
          %p2730 = pneg %p825
        $region158: #{tpu_custom_call.1} parent=155 // pred_check_branch
          %2732 = sbr.rel (%p2730) target = $region160
        $region159: #{tpu_custom_call.1} parent=155 // pred_region
          %s2733 = smul.u32 2, %s83
          %s2735 = ssub.s32 256, 256
          %2736 = vsyncadd %s2726, %s2735
          %s2737 = smul.addr %s2733, 128
          %s2738 = scalar_lea.hbm %s69, %s2737
          %s2739 = sshll.u32 %s2729, 4
          %s2740 = int_to_ptr.vmem [resolvable:$true] %s2739
          %2745 = dma.vmem_to_hbm [thread:$0]  %s2740, 256, %s2738, %s2726, 128, 128, 8
        $region160: #{tpu_custom_call.1} parent=155 // pred_fallthru
          _
      $region156: #{tpu_custom_call.1} parent=5 // pred_fallthru
        _
      %p2746 = scmp.le.s32.totalorder 2, %s78
      // Predicated region
      $region161: #{tpu_custom_call.1} parent=5 // pred_check
        %p2747 = pneg %p2746
      $region162: #{tpu_custom_call.1} parent=5 // pred_check_branch
        %2749 = sbr.rel (%p2747) target = $region164
      $region163: #{tpu_custom_call.1} parent=5 // pred_region
        %s2750 = ssub.s32 %s78, 2
        // Predicated region
        $region165: #{tpu_custom_call.1} parent=163 // pred_check
          %p2751 = pneg %p831
        $region166: #{tpu_custom_call.1} parent=163 // pred_check_branch
          %2753 = sbr.rel (%p2751) target = $region168
        $region167: #{tpu_custom_call.1} parent=163 // pred_region
          %s2754 = sand.u32 %s816, 1
          %s2755 = scalar_lea.sflag [#allocation3], %s2754
          %s2756 = sand.u32 %s816, 1
          %s2757 = smul.addr %s2756, 16
          %s2758 = scalar_lea.vmem [#allocation2], %s2757
          %2759 = dma.done %s2755, 256
        $region168: #{tpu_custom_call.1} parent=163 // pred_fallthru
          _
      $region164: #{tpu_custom_call.1} parent=5 // pred_fallthru
        _
    $region6: #{tpu_custom_call.1} parent=1 // loop_footer
      %s82 = sadd.s32 1, %s78
    $region7: #{tpu_custom_call.1} parent=1 // loop_footer_branch
      %77 = sbr.rel target = $region3
    $region8: #{tpu_custom_call.1} parent=1 // loop_exit
      _
    %2760 = vsyncpa [#allocation3], 1
    %s2761 = scalar_lea.sflag [#allocation3], 1
    %2762 = vsyncpa %s2761, 1

</llo_original>
